<compile_context>
chip_gen: v7x
topology: tpu7x:2x2x1
jax: 0.10.0
libtpu: 0.0.40
codegen_flags: <defaults>
</compile_context>

<pallas_src>
import math

import jax
import jax.numpy as jnp
from jax.experimental import pallas as pl
from jax.experimental.pallas import tpu as pltpu

# ----------------------------- config (tiny DistilBERT-like) -----------------------------
B = 2            # batch
S = 8            # sequence length
H = 32           # hidden size
N_HEADS = 2
D_HEAD = H // N_HEADS
FFN = 64
N_LAYERS = 2
VOCAB = 100
MAX_POS = 16
NUM_LABELS = 2
LN_EPS = 1e-12


# ----------------------------- in-kernel helpers (traced into the kernel) -----------------------------
def _layernorm(x, g, b):
    mu = jnp.mean(x, axis=-1, keepdims=True)
    xc = x - mu
    var = jnp.mean(xc * xc, axis=-1, keepdims=True)
    return xc * jax.lax.rsqrt(var + LN_EPS) * g + b


def _gelu(x):
    # tanh-approx GELU (runs on the EUP).
    # TODO(synk): HF DistilBERT uses exact erf GELU; tanh approximation deviates slightly.
    c = math.sqrt(2.0 / math.pi)
    return 0.5 * x * (1.0 + jnp.tanh(c * (x + 0.044715 * x * x * x)))


def _mm(x, w_bf16):
    # bf16 MXU inputs, f32 accumulation.
    return jnp.dot(x.astype(jnp.bfloat16), w_bf16, preferred_element_type=jnp.float32)


# ----------------------------- the single fused kernel -----------------------------
def _fused_model_kernel(
        # inputs
        x_ref, bias_ref, emb_g_ref, emb_b_ref,
        w_qkv_ref, b_qkv_ref, w_o_ref, b_o_ref, sa_ln_g_ref, sa_ln_b_ref,
        w_f1_ref, b_f1_ref, w_f2_ref, b_f2_ref, out_ln_g_ref, out_ln_b_ref,
        w_pre_ref, b_pre_ref, w_cls_ref, b_cls_ref,
        # output
        logits_ref,
        # VMEM scratch
        qkv_ref, attn_ref):
    scale = 1.0 / math.sqrt(D_HEAD)

    # ---- embeddings LayerNorm (no residual) ----
    x = _layernorm(x_ref[...], emb_g_ref[...], emb_b_ref[...])          # (B*S, H) f32

    for li in range(N_LAYERS):                                          # static unroll
        # ---- fused QKV projection: (B*S, H) @ (H, 3H), staged in VMEM scratch ----
        qkv_ref[...] = _mm(x, w_qkv_ref[li]) + b_qkv_ref[li]            # (B*S, 3H)
        w_o = w_o_ref[li]                                               # (H, H) bf16

        # ---- multi-head self-attention on the flat slab ----
        for b in range(B):
            r0 = b * S
            bias_row = bias_ref[b:b + 1, :]                             # (1, S)
            attn_b = None
            for h in range(N_HEADS):
                c0 = h * D_HEAD
                q = qkv_ref[r0:r0 + S, c0:c0 + D_HEAD] * scale          # (S, D_HEAD)
                k = qkv_ref[r0:r0 + S, H + c0:H + c0 + D_HEAD]
                v = qkv_ref[r0:r0 + S, 2 * H + c0:2 * H + c0 + D_HEAD]
                s = jax.lax.dot_general(q, k, (((1,), (1,)), ((), ())),
                                        preferred_element_type=jnp.float32)   # (S, S)
                s = s + bias_row
                m = jnp.max(s, axis=-1, keepdims=True)
                p = jnp.exp(s - m)
                p = p / jnp.sum(p, axis=-1, keepdims=True)
                ctx = jnp.dot(p, v, preferred_element_type=jnp.float32)       # (S, D_HEAD)
                # fold the output projection per head: ctx @ W_o[h*D:(h+1)*D, :]
                contrib = _mm(ctx, w_o[c0:c0 + D_HEAD, :])                    # (S, H)
                attn_b = contrib if attn_b is None else attn_b + contrib
            attn_ref[r0:r0 + S, :] = attn_b                              # aligned row store

        sa = attn_ref[...] + b_o_ref[li]
        x = _layernorm(sa + x, sa_ln_g_ref[li], sa_ln_b_ref[li])

        # ---- feed-forward ----
        hdn = _gelu(_mm(x, w_f1_ref[li]) + b_f1_ref[li])                 # (B*S, FFN)
        ffn = _mm(hdn, w_f2_ref[li]) + b_f2_ref[li]
        x = _layernorm(ffn + x, out_ln_g_ref[li], out_ln_b_ref[li])

    # ---- classification head (row-wise; CLS rows selected outside the kernel) ----
    h_pre = jnp.maximum(_mm(x, w_pre_ref[...]) + b_pre_ref[...], 0.0)    # ReLU; dropout = identity
    logits_ref[...] = _mm(h_pre, w_cls_ref[...]) + b_cls_ref[...]        # (B*S, NUM_LABELS)


# ----------------------------- parameters (synthetic, packed / stacked) -----------------------------
def init_params(key):
    ks = jax.random.split(key, 8)

    def w(k, shape):
        return jax.random.normal(k, shape, jnp.float32) * 0.02

    return {
        "word_emb": w(ks[0], (VOCAB, H)),
        "pos_emb": w(ks[1], (MAX_POS, H)),
        "emb_ln_g": jnp.ones((1, H), jnp.float32),
        "emb_ln_b": jnp.zeros((1, H), jnp.float32),
        # per-layer weights stacked along a leading layer axis; matmul weights stored bf16
        "w_qkv": w(ks[2], (N_LAYERS, H, 3 * H)).astype(jnp.bfloat16),
        "b_qkv": jnp.zeros((N_LAYERS, 1, 3 * H), jnp.float32),
        "w_o": w(ks[3], (N_LAYERS, H, H)).astype(jnp.bfloat16),
        "b_o": jnp.zeros((N_LAYERS, 1, H), jnp.float32),
        "sa_ln_g": jnp.ones((N_LAYERS, 1, H), jnp.float32),
        "sa_ln_b": jnp.zeros((N_LAYERS, 1, H), jnp.float32),
        "w_f1": w(ks[4], (N_LAYERS, H, FFN)).astype(jnp.bfloat16),
        "b_f1": jnp.zeros((N_LAYERS, 1, FFN), jnp.float32),
        "w_f2": w(ks[5], (N_LAYERS, FFN, H)).astype(jnp.bfloat16),
        "b_f2": jnp.zeros((N_LAYERS, 1, H), jnp.float32),
        "out_ln_g": jnp.ones((N_LAYERS, 1, H), jnp.float32),
        "out_ln_b": jnp.zeros((N_LAYERS, 1, H), jnp.float32),
        # classification head
        "w_pre": w(ks[6], (H, H)).astype(jnp.bfloat16),
        "b_pre": jnp.zeros((1, H), jnp.float32),
        "w_cls": w(ks[7], (H, NUM_LABELS)).astype(jnp.bfloat16),
        "b_cls": jnp.zeros((1, NUM_LABELS), jnp.float32),
    }


# ----------------------------- forward -----------------------------
def imdb_forward(params, input_ids, attention_mask):
    b, s = input_ids.shape
    # embedding gather is JAX glue (no clean tiny-Pallas equivalent); everything else is in-kernel
    x_emb = params["word_emb"][input_ids] + params["pos_emb"][jnp.arange(s)][None, :, :]
    x_emb = x_emb.reshape(b * s, H).astype(jnp.float32)
    # additive attention-mask bias, (B, S)
    bias = (1.0 - attention_mask.astype(jnp.float32)) * -1e9

    logits_all = pl.pallas_call(
        _fused_model_kernel,
        out_shape=jax.ShapeDtypeStruct((b * s, NUM_LABELS), jnp.float32),
        scratch_shapes=[
            pltpu.VMEM((b * s, 3 * H), jnp.float32),   # fused QKV staging
            pltpu.VMEM((b * s, H), jnp.float32),       # attention-output assembly
        ],
    )(x_emb, bias,
      params["emb_ln_g"], params["emb_ln_b"],
      params["w_qkv"], params["b_qkv"], params["w_o"], params["b_o"],
      params["sa_ln_g"], params["sa_ln_b"],
      params["w_f1"], params["b_f1"], params["w_f2"], params["b_f2"],
      params["out_ln_g"], params["out_ln_b"],
      params["w_pre"], params["b_pre"], params["w_cls"], params["b_cls"])

    # pooled_output = hidden_state[:, 0]; the head is row-wise, so selecting the CLS row after
    # the in-kernel head is identical to pooling first.
    return logits_all.reshape(b, s, NUM_LABELS)[:, 0, :]


# ----------------------------- main -----------------------------
if __name__ == "__main__":
    key = jax.random.PRNGKey(0)
    kp, kid = jax.random.split(key)
    params = init_params(kp)

    input_ids = jax.random.randint(kid, (B, S), 0, VOCAB, dtype=jnp.int32)
    attention_mask = jnp.ones((B, S), jnp.float32).at[1, S - 2:].set(0.0)  # pad last 2 of sample 1

    logits = jax.jit(imdb_forward)(params, input_ids, attention_mask)
    logits = jax.block_until_ready(logits)

    assert logits.shape == (B, NUM_LABELS)
    assert bool(jnp.all(jnp.isfinite(logits)))
    print("KERNEL_OK")
</pallas_src>

<mosaic_0001>
module attributes {stable_mosaic.version = 11 : i64} {
  func.func @_fused_model_kernel(%arg0: memref<16x32xf32, #tpu.memory_space<vmem>>, %arg1: memref<2x8xf32, #tpu.memory_space<vmem>>, %arg2: memref<1x32xf32, #tpu.memory_space<vmem>>, %arg3: memref<1x32xf32, #tpu.memory_space<vmem>>, %arg4: memref<2x32x96xbf16, #tpu.memory_space<vmem>>, %arg5: memref<2x1x96xf32, #tpu.memory_space<vmem>>, %arg6: memref<2x32x32xbf16, #tpu.memory_space<vmem>>, %arg7: memref<2x1x32xf32, #tpu.memory_space<vmem>>, %arg8: memref<2x1x32xf32, #tpu.memory_space<vmem>>, %arg9: memref<2x1x32xf32, #tpu.memory_space<vmem>>, %arg10: memref<2x32x64xbf16, #tpu.memory_space<vmem>>, %arg11: memref<2x1x64xf32, #tpu.memory_space<vmem>>, %arg12: memref<2x64x32xbf16, #tpu.memory_space<vmem>>, %arg13: memref<2x1x32xf32, #tpu.memory_space<vmem>>, %arg14: memref<2x1x32xf32, #tpu.memory_space<vmem>>, %arg15: memref<2x1x32xf32, #tpu.memory_space<vmem>>, %arg16: memref<32x32xbf16, #tpu.memory_space<vmem>>, %arg17: memref<1x32xf32, #tpu.memory_space<vmem>>, %arg18: memref<32x2xbf16, #tpu.memory_space<vmem>>, %arg19: memref<1x2xf32, #tpu.memory_space<vmem>>, %arg20: memref<16x2xf32, #tpu.memory_space<vmem>>, %arg21: memref<16x96xf32, #tpu.memory_space<vmem>>, %arg22: memref<16x32xf32, #tpu.memory_space<vmem>>) attributes {dimension_semantics = [], scalar_prefetch = 0 : i64, scratch_operands = 2 : i64, tpu.core_type = #tpu.core_type<tc>} {
    %c0 = arith.constant 0 : index
    %c0_0 = arith.constant 0 : index
    %0 = vector.load %arg0[%c0, %c0_0] : memref<16x32xf32, #tpu.memory_space<vmem>>, vector<16x32xf32>
    %c0_1 = arith.constant 0 : index
    %c0_2 = arith.constant 0 : index
    %1 = vector.load %arg2[%c0_1, %c0_2] : memref<1x32xf32, #tpu.memory_space<vmem>>, vector<1x32xf32>
    %c0_3 = arith.constant 0 : index
    %c0_4 = arith.constant 0 : index
    %2 = vector.load %arg3[%c0_3, %c0_4] : memref<1x32xf32, #tpu.memory_space<vmem>>, vector<1x32xf32>
    %cst = arith.constant dense<0.000000e+00> : vector<16xf32>
    %3 = vector.multi_reduction <add>, %0, %cst [1] : vector<16x32xf32> to vector<16xf32>
    %4 = vector.shape_cast %3 : vector<16xf32> to vector<16x1xf32>
    %cst_5 = arith.constant 3.200000e+01 : f32
    %5 = vector.broadcast %cst_5 : f32 to vector<16x1xf32>
    %6 = arith.divf %4, %5 : vector<16x1xf32>
    %7 = vector.broadcast %6 : vector<16x1xf32> to vector<16x32xf32>
    %8 = arith.subf %0, %7 : vector<16x32xf32>
    %9 = arith.mulf %8, %8 : vector<16x32xf32>
    %cst_6 = arith.constant dense<0.000000e+00> : vector<16xf32>
    %10 = vector.multi_reduction <add>, %9, %cst_6 [1] : vector<16x32xf32> to vector<16xf32>
    %11 = vector.shape_cast %10 : vector<16xf32> to vector<16x1xf32>
    %cst_7 = arith.constant 3.200000e+01 : f32
    %12 = vector.broadcast %cst_7 : f32 to vector<16x1xf32>
    %13 = arith.divf %11, %12 : vector<16x1xf32>
    %cst_8 = arith.constant 9.99999996E-13 : f32
    %14 = vector.broadcast %cst_8 : f32 to vector<16x1xf32>
    %15 = arith.addf %13, %14 : vector<16x1xf32>
    %16 = math.rsqrt %15 : vector<16x1xf32>
    %17 = vector.broadcast %16 : vector<16x1xf32> to vector<16x32xf32>
    %18 = arith.mulf %8, %17 : vector<16x32xf32>
    %19 = vector.broadcast %1 : vector<1x32xf32> to vector<16x32xf32>
    %20 = arith.mulf %18, %19 : vector<16x32xf32>
    %21 = vector.broadcast %2 : vector<1x32xf32> to vector<16x32xf32>
    %22 = arith.addf %20, %21 : vector<16x32xf32>
    %c0_9 = arith.constant 0 : index
    %c0_10 = arith.constant 0 : index
    %c0_11 = arith.constant 0 : index
    %23 = vector.load %arg4[%c0_9, %c0_10, %c0_11] : memref<2x32x96xbf16, #tpu.memory_space<vmem>>, vector<1x32x96xbf16>
    %24 = vector.shape_cast %23 : vector<1x32x96xbf16> to vector<32x96xbf16>
    %25 = arith.truncf %22 : vector<16x32xf32> to vector<16x32xbf16>
    %cst_12 = arith.constant dense<0.000000e+00> : vector<16x96xf32>
    %26 = tpu.matmul %25, %24, %cst_12 {dimension_numbers = #tpu.dot_dimension_numbers<[1], [0], [0], [1], [0, 0, 1, 1], [], []>} : vector<16x32xbf16>, vector<32x96xbf16>, vector<16x96xf32> -> vector<16x96xf32>
    %c0_13 = arith.constant 0 : index
    %c0_14 = arith.constant 0 : index
    %c0_15 = arith.constant 0 : index
    %27 = vector.load %arg5[%c0_13, %c0_14, %c0_15] : memref<2x1x96xf32, #tpu.memory_space<vmem>>, vector<1x1x96xf32>
    %28 = vector.shape_cast %27 : vector<1x1x96xf32> to vector<1x96xf32>
    %29 = vector.broadcast %28 : vector<1x96xf32> to vector<16x96xf32>
    %30 = arith.addf %26, %29 : vector<16x96xf32>
    %c0_16 = arith.constant 0 : index
    %c0_17 = arith.constant 0 : index
    %31 = vector.load %arg21[%c0_16, %c0_17] : memref<16x96xf32, #tpu.memory_space<vmem>>, vector<16x96xf32>
    tpu.vector_store %arg21[%c0_16, %c0_17], %30 {strides = array<i32>} : memref<16x96xf32, #tpu.memory_space<vmem>>, vector<16x96xf32>,
    %c0_18 = arith.constant 0 : index
    %c0_19 = arith.constant 0 : index
    %c0_20 = arith.constant 0 : index
    %32 = vector.load %arg6[%c0_18, %c0_19, %c0_20] : memref<2x32x32xbf16, #tpu.memory_space<vmem>>, vector<1x32x32xbf16>
    %33 = vector.shape_cast %32 : vector<1x32x32xbf16> to vector<32x32xbf16>
    %c0_21 = arith.constant 0 : index
    %c0_22 = arith.constant 0 : index
    %34 = vector.load %arg1[%c0_21, %c0_22] : memref<2x8xf32, #tpu.memory_space<vmem>>, vector<1x8xf32>
    %c0_23 = arith.constant 0 : index
    %c0_24 = arith.constant 0 : index
    %35 = vector.load %arg21[%c0_23, %c0_24] : memref<16x96xf32, #tpu.memory_space<vmem>>, vector<8x16xf32>
    %cst_25 = arith.constant 2.500000e-01 : f32
    %36 = vector.broadcast %cst_25 : f32 to vector<8x16xf32>
    %37 = arith.mulf %35, %36 : vector<8x16xf32>
    %c0_26 = arith.constant 0 : index
    %c32 = arith.constant 32 : index
    %38 = vector.load %arg21[%c0_26, %c32] : memref<16x96xf32, #tpu.memory_space<vmem>>, vector<8x16xf32>
    %c0_27 = arith.constant 0 : index
    %c64 = arith.constant 64 : index
    %39 = vector.load %arg21[%c0_27, %c64] : memref<16x96xf32, #tpu.memory_space<vmem>>, vector<8x16xf32>
    %cst_28 = arith.constant dense<0.000000e+00> : vector<8x8xf32>
    %40 = tpu.matmul %37, %38, %cst_28 {dimension_numbers = #tpu.dot_dimension_numbers<[1], [1], [0], [0], [0, 0, 1, 0], [], []>} : vector<8x16xf32>, vector<8x16xf32>, vector<8x8xf32> -> vector<8x8xf32>
    %41 = vector.broadcast %34 : vector<1x8xf32> to vector<8x8xf32>
    %42 = arith.addf %40, %41 : vector<8x8xf32>
    %cst_29 = arith.constant dense<0xFF800000> : vector<8xf32>
    %43 = vector.multi_reduction <maximumf>, %42, %cst_29 [1] : vector<8x8xf32> to vector<8xf32>
    %44 = vector.shape_cast %43 : vector<8xf32> to vector<8x1xf32>
    %45 = vector.broadcast %44 : vector<8x1xf32> to vector<8x8xf32>
    %46 = arith.subf %42, %45 : vector<8x8xf32>
    %47 = math.exp %46 : vector<8x8xf32>
    %cst_30 = arith.constant dense<0.000000e+00> : vector<8xf32>
    %48 = vector.multi_reduction <add>, %47, %cst_30 [1] : vector<8x8xf32> to vector<8xf32>
    %49 = vector.shape_cast %48 : vector<8xf32> to vector<8x1xf32>
    %50 = vector.broadcast %49 : vector<8x1xf32> to vector<8x8xf32>
    %51 = arith.divf %47, %50 : vector<8x8xf32>
    %cst_31 = arith.constant dense<0.000000e+00> : vector<8x16xf32>
    %52 = tpu.matmul %51, %39, %cst_31 {dimension_numbers = #tpu.dot_dimension_numbers<[1], [0], [0], [1], [0, 0, 1, 1], [], []>} : vector<8x8xf32>, vector<8x16xf32>, vector<8x16xf32> -> vector<8x16xf32>
    %53 = vector.extract_strided_slice %33 {offsets = [0, 0], sizes = [16, 32], strides = [1, 1]} : vector<32x32xbf16> to vector<16x32xbf16>
    %54 = arith.truncf %52 : vector<8x16xf32> to vector<8x16xbf16>
    %cst_32 = arith.constant dense<0.000000e+00> : vector<8x32xf32>
    %55 = tpu.matmul %54, %53, %cst_32 {dimension_numbers = #tpu.dot_dimension_numbers<[1], [0], [0], [1], [0, 0, 1, 1], [], []>} : vector<8x16xbf16>, vector<16x32xbf16>, vector<8x32xf32> -> vector<8x32xf32>
    %c0_33 = arith.constant 0 : index
    %c16 = arith.constant 16 : index
    %56 = vector.load %arg21[%c0_33, %c16] : memref<16x96xf32, #tpu.memory_space<vmem>>, vector<8x16xf32>
    %cst_34 = arith.constant 2.500000e-01 : f32
    %57 = vector.broadcast %cst_34 : f32 to vector<8x16xf32>
    %58 = arith.mulf %56, %57 : vector<8x16xf32>
    %c0_35 = arith.constant 0 : index
    %c48 = arith.constant 48 : index
    %59 = vector.load %arg21[%c0_35, %c48] : memref<16x96xf32, #tpu.memory_space<vmem>>, vector<8x16xf32>
    %c0_36 = arith.constant 0 : index
    %c80 = arith.constant 80 : index
    %60 = vector.load %arg21[%c0_36, %c80] : memref<16x96xf32, #tpu.memory_space<vmem>>, vector<8x16xf32>
    %cst_37 = arith.constant dense<0.000000e+00> : vector<8x8xf32>
    %61 = tpu.matmul %58, %59, %cst_37 {dimension_numbers = #tpu.dot_dimension_numbers<[1], [1], [0], [0], [0, 0, 1, 0], [], []>} : vector<8x16xf32>, vector<8x16xf32>, vector<8x8xf32> -> vector<8x8xf32>
    %62 = vector.broadcast %34 : vector<1x8xf32> to vector<8x8xf32>
    %63 = arith.addf %61, %62 : vector<8x8xf32>
    %cst_38 = arith.constant dense<0xFF800000> : vector<8xf32>
    %64 = vector.multi_reduction <maximumf>, %63, %cst_38 [1] : vector<8x8xf32> to vector<8xf32>
    %65 = vector.shape_cast %64 : vector<8xf32> to vector<8x1xf32>
    %66 = vector.broadcast %65 : vector<8x1xf32> to vector<8x8xf32>
    %67 = arith.subf %63, %66 : vector<8x8xf32>
    %68 = math.exp %67 : vector<8x8xf32>
    %cst_39 = arith.constant dense<0.000000e+00> : vector<8xf32>
    %69 = vector.multi_reduction <add>, %68, %cst_39 [1] : vector<8x8xf32> to vector<8xf32>
    %70 = vector.shape_cast %69 : vector<8xf32> to vector<8x1xf32>
    %71 = vector.broadcast %70 : vector<8x1xf32> to vector<8x8xf32>
    %72 = arith.divf %68, %71 : vector<8x8xf32>
    %cst_40 = arith.constant dense<0.000000e+00> : vector<8x16xf32>
    %73 = tpu.matmul %72, %60, %cst_40 {dimension_numbers = #tpu.dot_dimension_numbers<[1], [0], [0], [1], [0, 0, 1, 1], [], []>} : vector<8x8xf32>, vector<8x16xf32>, vector<8x16xf32> -> vector<8x16xf32>
    %74 = vector.extract_strided_slice %33 {offsets = [16, 0], sizes = [16, 32], strides = [1, 1]} : vector<32x32xbf16> to vector<16x32xbf16>
    %75 = arith.truncf %73 : vector<8x16xf32> to vector<8x16xbf16>
    %cst_41 = arith.constant dense<0.000000e+00> : vector<8x32xf32>
    %76 = tpu.matmul %75, %74, %cst_41 {dimension_numbers = #tpu.dot_dimension_numbers<[1], [0], [0], [1], [0, 0, 1, 1], [], []>} : vector<8x16xbf16>, vector<16x32xbf16>, vector<8x32xf32> -> vector<8x32xf32>
    %77 = arith.addf %55, %76 : vector<8x32xf32>
    %c0_42 = arith.constant 0 : index
    %c0_43 = arith.constant 0 : index
    %78 = vector.load %arg22[%c0_42, %c0_43] : memref<16x32xf32, #tpu.memory_space<vmem>>, vector<8x32xf32>
    tpu.vector_store %arg22[%c0_42, %c0_43], %77 {strides = array<i32>} : memref<16x32xf32, #tpu.memory_space<vmem>>, vector<8x32xf32>,
    %c1 = arith.constant 1 : index
    %c0_44 = arith.constant 0 : index
    %79 = vector.load %arg1[%c1, %c0_44] : memref<2x8xf32, #tpu.memory_space<vmem>>, vector<1x8xf32>
    %c8 = arith.constant 8 : index
    %c0_45 = arith.constant 0 : index
    %80 = vector.load %arg21[%c8, %c0_45] : memref<16x96xf32, #tpu.memory_space<vmem>>, vector<8x16xf32>
    %cst_46 = arith.constant 2.500000e-01 : f32
    %81 = vector.broadcast %cst_46 : f32 to vector<8x16xf32>
    %82 = arith.mulf %80, %81 : vector<8x16xf32>
    %c8_47 = arith.constant 8 : index
    %c32_48 = arith.constant 32 : index
    %83 = vector.load %arg21[%c8_47, %c32_48] : memref<16x96xf32, #tpu.memory_space<vmem>>, vector<8x16xf32>
    %c8_49 = arith.constant 8 : index
    %c64_50 = arith.constant 64 : index
    %84 = vector.load %arg21[%c8_49, %c64_50] : memref<16x96xf32, #tpu.memory_space<vmem>>, vector<8x16xf32>
    %cst_51 = arith.constant dense<0.000000e+00> : vector<8x8xf32>
    %85 = tpu.matmul %82, %83, %cst_51 {dimension_numbers = #tpu.dot_dimension_numbers<[1], [1], [0], [0], [0, 0, 1, 0], [], []>} : vector<8x16xf32>, vector<8x16xf32>, vector<8x8xf32> -> vector<8x8xf32>
    %86 = vector.broadcast %79 : vector<1x8xf32> to vector<8x8xf32>
    %87 = arith.addf %85, %86 : vector<8x8xf32>
    %cst_52 = arith.constant dense<0xFF800000> : vector<8xf32>
    %88 = vector.multi_reduction <maximumf>, %87, %cst_52 [1] : vector<8x8xf32> to vector<8xf32>
    %89 = vector.shape_cast %88 : vector<8xf32> to vector<8x1xf32>
    %90 = vector.broadcast %89 : vector<8x1xf32> to vector<8x8xf32>
    %91 = arith.subf %87, %90 : vector<8x8xf32>
    %92 = math.exp %91 : vector<8x8xf32>
    %cst_53 = arith.constant dense<0.000000e+00> : vector<8xf32>
    %93 = vector.multi_reduction <add>, %92, %cst_53 [1] : vector<8x8xf32> to vector<8xf32>
    %94 = vector.shape_cast %93 : vector<8xf32> to vector<8x1xf32>
    %95 = vector.broadcast %94 : vector<8x1xf32> to vector<8x8xf32>
    %96 = arith.divf %92, %95 : vector<8x8xf32>
    %cst_54 = arith.constant dense<0.000000e+00> : vector<8x16xf32>
    %97 = tpu.matmul %96, %84, %cst_54 {dimension_numbers = #tpu.dot_dimension_numbers<[1], [0], [0], [1], [0, 0, 1, 1], [], []>} : vector<8x8xf32>, vector<8x16xf32>, vector<8x16xf32> -> vector<8x16xf32>
    %98 = vector.extract_strided_slice %33 {offsets = [0, 0], sizes = [16, 32], strides = [1, 1]} : vector<32x32xbf16> to vector<16x32xbf16>
    %99 = arith.truncf %97 : vector<8x16xf32> to vector<8x16xbf16>
    %cst_55 = arith.constant dense<0.000000e+00> : vector<8x32xf32>
    %100 = tpu.matmul %99, %98, %cst_55 {dimension_numbers = #tpu.dot_dimension_numbers<[1], [0], [0], [1], [0, 0, 1, 1], [], []>} : vector<8x16xbf16>, vector<16x32xbf16>, vector<8x32xf32> -> vector<8x32xf32>
    %c8_56 = arith.constant 8 : index
    %c16_57 = arith.constant 16 : index
    %101 = vector.load %arg21[%c8_56, %c16_57] : memref<16x96xf32, #tpu.memory_space<vmem>>, vector<8x16xf32>
    %cst_58 = arith.constant 2.500000e-01 : f32
    %102 = vector.broadcast %cst_58 : f32 to vector<8x16xf32>
    %103 = arith.mulf %101, %102 : vector<8x16xf32>
    %c8_59 = arith.constant 8 : index
    %c48_60 = arith.constant 48 : index
    %104 = vector.load %arg21[%c8_59, %c48_60] : memref<16x96xf32, #tpu.memory_space<vmem>>, vector<8x16xf32>
    %c8_61 = arith.constant 8 : index
    %c80_62 = arith.constant 80 : index
    %105 = vector.load %arg21[%c8_61, %c80_62] : memref<16x96xf32, #tpu.memory_space<vmem>>, vector<8x16xf32>
    %cst_63 = arith.constant dense<0.000000e+00> : vector<8x8xf32>
    %106 = tpu.matmul %103, %104, %cst_63 {dimension_numbers = #tpu.dot_dimension_numbers<[1], [1], [0], [0], [0, 0, 1, 0], [], []>} : vector<8x16xf32>, vector<8x16xf32>, vector<8x8xf32> -> vector<8x8xf32>
    %107 = vector.broadcast %79 : vector<1x8xf32> to vector<8x8xf32>
    %108 = arith.addf %106, %107 : vector<8x8xf32>
    %cst_64 = arith.constant dense<0xFF800000> : vector<8xf32>
    %109 = vector.multi_reduction <maximumf>, %108, %cst_64 [1] : vector<8x8xf32> to vector<8xf32>
    %110 = vector.shape_cast %109 : vector<8xf32> to vector<8x1xf32>
    %111 = vector.broadcast %110 : vector<8x1xf32> to vector<8x8xf32>
    %112 = arith.subf %108, %111 : vector<8x8xf32>
    %113 = math.exp %112 : vector<8x8xf32>
    %cst_65 = arith.constant dense<0.000000e+00> : vector<8xf32>
    %114 = vector.multi_reduction <add>, %113, %cst_65 [1] : vector<8x8xf32> to vector<8xf32>
    %115 = vector.shape_cast %114 : vector<8xf32> to vector<8x1xf32>
    %116 = vector.broadcast %115 : vector<8x1xf32> to vector<8x8xf32>
    %117 = arith.divf %113, %116 : vector<8x8xf32>
    %cst_66 = arith.constant dense<0.000000e+00> : vector<8x16xf32>
    %118 = tpu.matmul %117, %105, %cst_66 {dimension_numbers = #tpu.dot_dimension_numbers<[1], [0], [0], [1], [0, 0, 1, 1], [], []>} : vector<8x8xf32>, vector<8x16xf32>, vector<8x16xf32> -> vector<8x16xf32>
    %119 = vector.extract_strided_slice %33 {offsets = [16, 0], sizes = [16, 32], strides = [1, 1]} : vector<32x32xbf16> to vector<16x32xbf16>
    %120 = arith.truncf %118 : vector<8x16xf32> to vector<8x16xbf16>
    %cst_67 = arith.constant dense<0.000000e+00> : vector<8x32xf32>
    %121 = tpu.matmul %120, %119, %cst_67 {dimension_numbers = #tpu.dot_dimension_numbers<[1], [0], [0], [1], [0, 0, 1, 1], [], []>} : vector<8x16xbf16>, vector<16x32xbf16>, vector<8x32xf32> -> vector<8x32xf32>
    %122 = arith.addf %100, %121 : vector<8x32xf32>
    %c8_68 = arith.constant 8 : index
    %c0_69 = arith.constant 0 : index
    %123 = vector.load %arg22[%c8_68, %c0_69] : memref<16x32xf32, #tpu.memory_space<vmem>>, vector<8x32xf32>
    tpu.vector_store %arg22[%c8_68, %c0_69], %122 {strides = array<i32>} : memref<16x32xf32, #tpu.memory_space<vmem>>, vector<8x32xf32>,
    %c0_70 = arith.constant 0 : index
    %c0_71 = arith.constant 0 : index
    %124 = vector.load %arg22[%c0_70, %c0_71] : memref<16x32xf32, #tpu.memory_space<vmem>>, vector<16x32xf32>
    %c0_72 = arith.constant 0 : index
    %c0_73 = arith.constant 0 : index
    %c0_74 = arith.constant 0 : index
    %125 = vector.load %arg7[%c0_72, %c0_73, %c0_74] : memref<2x1x32xf32, #tpu.memory_space<vmem>>, vector<1x1x32xf32>
    %126 = vector.shape_cast %125 : vector<1x1x32xf32> to vector<1x32xf32>
    %127 = vector.broadcast %126 : vector<1x32xf32> to vector<16x32xf32>
    %128 = arith.addf %124, %127 : vector<16x32xf32>
    %129 = arith.addf %128, %22 : vector<16x32xf32>
    %c0_75 = arith.constant 0 : index
    %c0_76 = arith.constant 0 : index
    %c0_77 = arith.constant 0 : index
    %130 = vector.load %arg8[%c0_75, %c0_76, %c0_77] : memref<2x1x32xf32, #tpu.memory_space<vmem>>, vector<1x1x32xf32>
    %131 = vector.shape_cast %130 : vector<1x1x32xf32> to vector<1x32xf32>
    %c0_78 = arith.constant 0 : index
    %c0_79 = arith.constant 0 : index
    %c0_80 = arith.constant 0 : index
    %132 = vector.load %arg9[%c0_78, %c0_79, %c0_80] : memref<2x1x32xf32, #tpu.memory_space<vmem>>, vector<1x1x32xf32>
    %133 = vector.shape_cast %132 : vector<1x1x32xf32> to vector<1x32xf32>
    %cst_81 = arith.constant dense<0.000000e+00> : vector<16xf32>
    %134 = vector.multi_reduction <add>, %129, %cst_81 [1] : vector<16x32xf32> to vector<16xf32>
    %135 = vector.shape_cast %134 : vector<16xf32> to vector<16x1xf32>
    %cst_82 = arith.constant 3.200000e+01 : f32
    %136 = vector.broadcast %cst_82 : f32 to vector<16x1xf32>
    %137 = arith.divf %135, %136 : vector<16x1xf32>
    %138 = vector.broadcast %137 : vector<16x1xf32> to vector<16x32xf32>
    %139 = arith.subf %129, %138 : vector<16x32xf32>
    %140 = arith.mulf %139, %139 : vector<16x32xf32>
    %cst_83 = arith.constant dense<0.000000e+00> : vector<16xf32>
    %141 = vector.multi_reduction <add>, %140, %cst_83 [1] : vector<16x32xf32> to vector<16xf32>
    %142 = vector.shape_cast %141 : vector<16xf32> to vector<16x1xf32>
    %cst_84 = arith.constant 3.200000e+01 : f32
    %143 = vector.broadcast %cst_84 : f32 to vector<16x1xf32>
    %144 = arith.divf %142, %143 : vector<16x1xf32>
    %cst_85 = arith.constant 9.99999996E-13 : f32
    %145 = vector.broadcast %cst_85 : f32 to vector<16x1xf32>
    %146 = arith.addf %144, %145 : vector<16x1xf32>
    %147 = math.rsqrt %146 : vector<16x1xf32>
    %148 = vector.broadcast %147 : vector<16x1xf32> to vector<16x32xf32>
    %149 = arith.mulf %139, %148 : vector<16x32xf32>
    %150 = vector.broadcast %131 : vector<1x32xf32> to vector<16x32xf32>
    %151 = arith.mulf %149, %150 : vector<16x32xf32>
    %152 = vector.broadcast %133 : vector<1x32xf32> to vector<16x32xf32>
    %153 = arith.addf %151, %152 : vector<16x32xf32>
    %c0_86 = arith.constant 0 : index
    %c0_87 = arith.constant 0 : index
    %c0_88 = arith.constant 0 : index
    %154 = vector.load %arg10[%c0_86, %c0_87, %c0_88] : memref<2x32x64xbf16, #tpu.memory_space<vmem>>, vector<1x32x64xbf16>
    %155 = vector.shape_cast %154 : vector<1x32x64xbf16> to vector<32x64xbf16>
    %156 = arith.truncf %153 : vector<16x32xf32> to vector<16x32xbf16>
    %cst_89 = arith.constant dense<0.000000e+00> : vector<16x64xf32>
    %157 = tpu.matmul %156, %155, %cst_89 {dimension_numbers = #tpu.dot_dimension_numbers<[1], [0], [0], [1], [0, 0, 1, 1], [], []>} : vector<16x32xbf16>, vector<32x64xbf16>, vector<16x64xf32> -> vector<16x64xf32>
    %c0_90 = arith.constant 0 : index
    %c0_91 = arith.constant 0 : index
    %c0_92 = arith.constant 0 : index
    %158 = vector.load %arg11[%c0_90, %c0_91, %c0_92] : memref<2x1x64xf32, #tpu.memory_space<vmem>>, vector<1x1x64xf32>
    %159 = vector.shape_cast %158 : vector<1x1x64xf32> to vector<1x64xf32>
    %160 = vector.broadcast %159 : vector<1x64xf32> to vector<16x64xf32>
    %161 = arith.addf %157, %160 : vector<16x64xf32>
    %cst_93 = arith.constant 5.000000e-01 : f32
    %162 = vector.broadcast %cst_93 : f32 to vector<16x64xf32>
    %163 = arith.mulf %162, %161 : vector<16x64xf32>
    %cst_94 = arith.constant 4.471500e-02 : f32
    %164 = vector.broadcast %cst_94 : f32 to vector<16x64xf32>
    %165 = arith.mulf %164, %161 : vector<16x64xf32>
    %166 = arith.mulf %165, %161 : vector<16x64xf32>
    %167 = arith.mulf %166, %161 : vector<16x64xf32>
    %168 = arith.addf %161, %167 : vector<16x64xf32>
    %cst_95 = arith.constant 0.797884583 : f32
    %169 = vector.broadcast %cst_95 : f32 to vector<16x64xf32>
    %170 = arith.mulf %169, %168 : vector<16x64xf32>
    %171 = math.tanh %170 : vector<16x64xf32>
    %cst_96 = arith.constant 1.000000e+00 : f32
    %172 = vector.broadcast %cst_96 : f32 to vector<16x64xf32>
    %173 = arith.addf %172, %171 : vector<16x64xf32>
    %174 = arith.mulf %163, %173 : vector<16x64xf32>
    %c0_97 = arith.constant 0 : index
    %c0_98 = arith.constant 0 : index
    %c0_99 = arith.constant 0 : index
    %175 = vector.load %arg12[%c0_97, %c0_98, %c0_99] : memref<2x64x32xbf16, #tpu.memory_space<vmem>>, vector<1x64x32xbf16>
    %176 = vector.shape_cast %175 : vector<1x64x32xbf16> to vector<64x32xbf16>
    %177 = arith.truncf %174 : vector<16x64xf32> to vector<16x64xbf16>
    %cst_100 = arith.constant dense<0.000000e+00> : vector<16x32xf32>
    %178 = tpu.matmul %177, %176, %cst_100 {dimension_numbers = #tpu.dot_dimension_numbers<[1], [0], [0], [1], [0, 0, 1, 1], [], []>} : vector<16x64xbf16>, vector<64x32xbf16>, vector<16x32xf32> -> vector<16x32xf32>
    %c0_101 = arith.constant 0 : index
    %c0_102 = arith.constant 0 : index
    %c0_103 = arith.constant 0 : index
    %179 = vector.load %arg13[%c0_101, %c0_102, %c0_103] : memref<2x1x32xf32, #tpu.memory_space<vmem>>, vector<1x1x32xf32>
    %180 = vector.shape_cast %179 : vector<1x1x32xf32> to vector<1x32xf32>
    %181 = vector.broadcast %180 : vector<1x32xf32> to vector<16x32xf32>
    %182 = arith.addf %178, %181 : vector<16x32xf32>
    %183 = arith.addf %182, %153 : vector<16x32xf32>
    %c0_104 = arith.constant 0 : index
    %c0_105 = arith.constant 0 : index
    %c0_106 = arith.constant 0 : index
    %184 = vector.load %arg14[%c0_104, %c0_105, %c0_106] : memref<2x1x32xf32, #tpu.memory_space<vmem>>, vector<1x1x32xf32>
    %185 = vector.shape_cast %184 : vector<1x1x32xf32> to vector<1x32xf32>
    %c0_107 = arith.constant 0 : index
    %c0_108 = arith.constant 0 : index
    %c0_109 = arith.constant 0 : index
    %186 = vector.load %arg15[%c0_107, %c0_108, %c0_109] : memref<2x1x32xf32, #tpu.memory_space<vmem>>, vector<1x1x32xf32>
    %187 = vector.shape_cast %186 : vector<1x1x32xf32> to vector<1x32xf32>
    %cst_110 = arith.constant dense<0.000000e+00> : vector<16xf32>
    %188 = vector.multi_reduction <add>, %183, %cst_110 [1] : vector<16x32xf32> to vector<16xf32>
    %189 = vector.shape_cast %188 : vector<16xf32> to vector<16x1xf32>
    %cst_111 = arith.constant 3.200000e+01 : f32
    %190 = vector.broadcast %cst_111 : f32 to vector<16x1xf32>
    %191 = arith.divf %189, %190 : vector<16x1xf32>
    %192 = vector.broadcast %191 : vector<16x1xf32> to vector<16x32xf32>
    %193 = arith.subf %183, %192 : vector<16x32xf32>
    %194 = arith.mulf %193, %193 : vector<16x32xf32>
    %cst_112 = arith.constant dense<0.000000e+00> : vector<16xf32>
    %195 = vector.multi_reduction <add>, %194, %cst_112 [1] : vector<16x32xf32> to vector<16xf32>
    %196 = vector.shape_cast %195 : vector<16xf32> to vector<16x1xf32>
    %cst_113 = arith.constant 3.200000e+01 : f32
    %197 = vector.broadcast %cst_113 : f32 to vector<16x1xf32>
    %198 = arith.divf %196, %197 : vector<16x1xf32>
    %cst_114 = arith.constant 9.99999996E-13 : f32
    %199 = vector.broadcast %cst_114 : f32 to vector<16x1xf32>
    %200 = arith.addf %198, %199 : vector<16x1xf32>
    %201 = math.rsqrt %200 : vector<16x1xf32>
    %202 = vector.broadcast %201 : vector<16x1xf32> to vector<16x32xf32>
    %203 = arith.mulf %193, %202 : vector<16x32xf32>
    %204 = vector.broadcast %185 : vector<1x32xf32> to vector<16x32xf32>
    %205 = arith.mulf %203, %204 : vector<16x32xf32>
    %206 = vector.broadcast %187 : vector<1x32xf32> to vector<16x32xf32>
    %207 = arith.addf %205, %206 : vector<16x32xf32>
    %c1_115 = arith.constant 1 : index
    %c0_116 = arith.constant 0 : index
    %c0_117 = arith.constant 0 : index
    %208 = vector.load %arg4[%c1_115, %c0_116, %c0_117] : memref<2x32x96xbf16, #tpu.memory_space<vmem>>, vector<1x32x96xbf16>
    %209 = vector.shape_cast %208 : vector<1x32x96xbf16> to vector<32x96xbf16>
    %210 = arith.truncf %207 : vector<16x32xf32> to vector<16x32xbf16>
    %cst_118 = arith.constant dense<0.000000e+00> : vector<16x96xf32>
    %211 = tpu.matmul %210, %209, %cst_118 {dimension_numbers = #tpu.dot_dimension_numbers<[1], [0], [0], [1], [0, 0, 1, 1], [], []>} : vector<16x32xbf16>, vector<32x96xbf16>, vector<16x96xf32> -> vector<16x96xf32>
    %c1_119 = arith.constant 1 : index
    %c0_120 = arith.constant 0 : index
    %c0_121 = arith.constant 0 : index
    %212 = vector.load %arg5[%c1_119, %c0_120, %c0_121] : memref<2x1x96xf32, #tpu.memory_space<vmem>>, vector<1x1x96xf32>
    %213 = vector.shape_cast %212 : vector<1x1x96xf32> to vector<1x96xf32>
    %214 = vector.broadcast %213 : vector<1x96xf32> to vector<16x96xf32>
    %215 = arith.addf %211, %214 : vector<16x96xf32>
    %c0_122 = arith.constant 0 : index
    %c0_123 = arith.constant 0 : index
    %216 = vector.load %arg21[%c0_122, %c0_123] : memref<16x96xf32, #tpu.memory_space<vmem>>, vector<16x96xf32>
    tpu.vector_store %arg21[%c0_122, %c0_123], %215 {strides = array<i32>} : memref<16x96xf32, #tpu.memory_space<vmem>>, vector<16x96xf32>,
    %c1_124 = arith.constant 1 : index
    %c0_125 = arith.constant 0 : index
    %c0_126 = arith.constant 0 : index
    %217 = vector.load %arg6[%c1_124, %c0_125, %c0_126] : memref<2x32x32xbf16, #tpu.memory_space<vmem>>, vector<1x32x32xbf16>
    %218 = vector.shape_cast %217 : vector<1x32x32xbf16> to vector<32x32xbf16>
    %c0_127 = arith.constant 0 : index
    %c0_128 = arith.constant 0 : index
    %219 = vector.load %arg1[%c0_127, %c0_128] : memref<2x8xf32, #tpu.memory_space<vmem>>, vector<1x8xf32>
    %c0_129 = arith.constant 0 : index
    %c0_130 = arith.constant 0 : index
    %220 = vector.load %arg21[%c0_129, %c0_130] : memref<16x96xf32, #tpu.memory_space<vmem>>, vector<8x16xf32>
    %cst_131 = arith.constant 2.500000e-01 : f32
    %221 = vector.broadcast %cst_131 : f32 to vector<8x16xf32>
    %222 = arith.mulf %220, %221 : vector<8x16xf32>
    %c0_132 = arith.constant 0 : index
    %c32_133 = arith.constant 32 : index
    %223 = vector.load %arg21[%c0_132, %c32_133] : memref<16x96xf32, #tpu.memory_space<vmem>>, vector<8x16xf32>
    %c0_134 = arith.constant 0 : index
    %c64_135 = arith.constant 64 : index
    %224 = vector.load %arg21[%c0_134, %c64_135] : memref<16x96xf32, #tpu.memory_space<vmem>>, vector<8x16xf32>
    %cst_136 = arith.constant dense<0.000000e+00> : vector<8x8xf32>
    %225 = tpu.matmul %222, %223, %cst_136 {dimension_numbers = #tpu.dot_dimension_numbers<[1], [1], [0], [0], [0, 0, 1, 0], [], []>} : vector<8x16xf32>, vector<8x16xf32>, vector<8x8xf32> -> vector<8x8xf32>
    %226 = vector.broadcast %219 : vector<1x8xf32> to vector<8x8xf32>
    %227 = arith.addf %225, %226 : vector<8x8xf32>
    %cst_137 = arith.constant dense<0xFF800000> : vector<8xf32>
    %228 = vector.multi_reduction <maximumf>, %227, %cst_137 [1] : vector<8x8xf32> to vector<8xf32>
    %229 = vector.shape_cast %228 : vector<8xf32> to vector<8x1xf32>
    %230 = vector.broadcast %229 : vector<8x1xf32> to vector<8x8xf32>
    %231 = arith.subf %227, %230 : vector<8x8xf32>
    %232 = math.exp %231 : vector<8x8xf32>
    %cst_138 = arith.constant dense<0.000000e+00> : vector<8xf32>
    %233 = vector.multi_reduction <add>, %232, %cst_138 [1] : vector<8x8xf32> to vector<8xf32>
    %234 = vector.shape_cast %233 : vector<8xf32> to vector<8x1xf32>
    %235 = vector.broadcast %234 : vector<8x1xf32> to vector<8x8xf32>
    %236 = arith.divf %232, %235 : vector<8x8xf32>
    %cst_139 = arith.constant dense<0.000000e+00> : vector<8x16xf32>
    %237 = tpu.matmul %236, %224, %cst_139 {dimension_numbers = #tpu.dot_dimension_numbers<[1], [0], [0], [1], [0, 0, 1, 1], [], []>} : vector<8x8xf32>, vector<8x16xf32>, vector<8x16xf32> -> vector<8x16xf32>
    %238 = vector.extract_strided_slice %218 {offsets = [0, 0], sizes = [16, 32], strides = [1, 1]} : vector<32x32xbf16> to vector<16x32xbf16>
    %239 = arith.truncf %237 : vector<8x16xf32> to vector<8x16xbf16>
    %cst_140 = arith.constant dense<0.000000e+00> : vector<8x32xf32>
    %240 = tpu.matmul %239, %238, %cst_140 {dimension_numbers = #tpu.dot_dimension_numbers<[1], [0], [0], [1], [0, 0, 1, 1], [], []>} : vector<8x16xbf16>, vector<16x32xbf16>, vector<8x32xf32> -> vector<8x32xf32>
    %c0_141 = arith.constant 0 : index
    %c16_142 = arith.constant 16 : index
    %241 = vector.load %arg21[%c0_141, %c16_142] : memref<16x96xf32, #tpu.memory_space<vmem>>, vector<8x16xf32>
    %cst_143 = arith.constant 2.500000e-01 : f32
    %242 = vector.broadcast %cst_143 : f32 to vector<8x16xf32>
    %243 = arith.mulf %241, %242 : vector<8x16xf32>
    %c0_144 = arith.constant 0 : index
    %c48_145 = arith.constant 48 : index
    %244 = vector.load %arg21[%c0_144, %c48_145] : memref<16x96xf32, #tpu.memory_space<vmem>>, vector<8x16xf32>
    %c0_146 = arith.constant 0 : index
    %c80_147 = arith.constant 80 : index
    %245 = vector.load %arg21[%c0_146, %c80_147] : memref<16x96xf32, #tpu.memory_space<vmem>>, vector<8x16xf32>
    %cst_148 = arith.constant dense<0.000000e+00> : vector<8x8xf32>
    %246 = tpu.matmul %243, %244, %cst_148 {dimension_numbers = #tpu.dot_dimension_numbers<[1], [1], [0], [0], [0, 0, 1, 0], [], []>} : vector<8x16xf32>, vector<8x16xf32>, vector<8x8xf32> -> vector<8x8xf32>
    %247 = vector.broadcast %219 : vector<1x8xf32> to vector<8x8xf32>
    %248 = arith.addf %246, %247 : vector<8x8xf32>
    %cst_149 = arith.constant dense<0xFF800000> : vector<8xf32>
    %249 = vector.multi_reduction <maximumf>, %248, %cst_149 [1] : vector<8x8xf32> to vector<8xf32>
    %250 = vector.shape_cast %249 : vector<8xf32> to vector<8x1xf32>
    %251 = vector.broadcast %250 : vector<8x1xf32> to vector<8x8xf32>
    %252 = arith.subf %248, %251 : vector<8x8xf32>
    %253 = math.exp %252 : vector<8x8xf32>
    %cst_150 = arith.constant dense<0.000000e+00> : vector<8xf32>
    %254 = vector.multi_reduction <add>, %253, %cst_150 [1] : vector<8x8xf32> to vector<8xf32>
    %255 = vector.shape_cast %254 : vector<8xf32> to vector<8x1xf32>
    %256 = vector.broadcast %255 : vector<8x1xf32> to vector<8x8xf32>
    %257 = arith.divf %253, %256 : vector<8x8xf32>
    %cst_151 = arith.constant dense<0.000000e+00> : vector<8x16xf32>
    %258 = tpu.matmul %257, %245, %cst_151 {dimension_numbers = #tpu.dot_dimension_numbers<[1], [0], [0], [1], [0, 0, 1, 1], [], []>} : vector<8x8xf32>, vector<8x16xf32>, vector<8x16xf32> -> vector<8x16xf32>
    %259 = vector.extract_strided_slice %218 {offsets = [16, 0], sizes = [16, 32], strides = [1, 1]} : vector<32x32xbf16> to vector<16x32xbf16>
    %260 = arith.truncf %258 : vector<8x16xf32> to vector<8x16xbf16>
    %cst_152 = arith.constant dense<0.000000e+00> : vector<8x32xf32>
    %261 = tpu.matmul %260, %259, %cst_152 {dimension_numbers = #tpu.dot_dimension_numbers<[1], [0], [0], [1], [0, 0, 1, 1], [], []>} : vector<8x16xbf16>, vector<16x32xbf16>, vector<8x32xf32> -> vector<8x32xf32>
    %262 = arith.addf %240, %261 : vector<8x32xf32>
    %c0_153 = arith.constant 0 : index
    %c0_154 = arith.constant 0 : index
    %263 = vector.load %arg22[%c0_153, %c0_154] : memref<16x32xf32, #tpu.memory_space<vmem>>, vector<8x32xf32>
    tpu.vector_store %arg22[%c0_153, %c0_154], %262 {strides = array<i32>} : memref<16x32xf32, #tpu.memory_space<vmem>>, vector<8x32xf32>,
    %c1_155 = arith.constant 1 : index
    %c0_156 = arith.constant 0 : index
    %264 = vector.load %arg1[%c1_155, %c0_156] : memref<2x8xf32, #tpu.memory_space<vmem>>, vector<1x8xf32>
    %c8_157 = arith.constant 8 : index
    %c0_158 = arith.constant 0 : index
    %265 = vector.load %arg21[%c8_157, %c0_158] : memref<16x96xf32, #tpu.memory_space<vmem>>, vector<8x16xf32>
    %cst_159 = arith.constant 2.500000e-01 : f32
    %266 = vector.broadcast %cst_159 : f32 to vector<8x16xf32>
    %267 = arith.mulf %265, %266 : vector<8x16xf32>
    %c8_160 = arith.constant 8 : index
    %c32_161 = arith.constant 32 : index
    %268 = vector.load %arg21[%c8_160, %c32_161] : memref<16x96xf32, #tpu.memory_space<vmem>>, vector<8x16xf32>
    %c8_162 = arith.constant 8 : index
    %c64_163 = arith.constant 64 : index
    %269 = vector.load %arg21[%c8_162, %c64_163] : memref<16x96xf32, #tpu.memory_space<vmem>>, vector<8x16xf32>
    %cst_164 = arith.constant dense<0.000000e+00> : vector<8x8xf32>
    %270 = tpu.matmul %267, %268, %cst_164 {dimension_numbers = #tpu.dot_dimension_numbers<[1], [1], [0], [0], [0, 0, 1, 0], [], []>} : vector<8x16xf32>, vector<8x16xf32>, vector<8x8xf32> -> vector<8x8xf32>
    %271 = vector.broadcast %264 : vector<1x8xf32> to vector<8x8xf32>
    %272 = arith.addf %270, %271 : vector<8x8xf32>
    %cst_165 = arith.constant dense<0xFF800000> : vector<8xf32>
    %273 = vector.multi_reduction <maximumf>, %272, %cst_165 [1] : vector<8x8xf32> to vector<8xf32>
    %274 = vector.shape_cast %273 : vector<8xf32> to vector<8x1xf32>
    %275 = vector.broadcast %274 : vector<8x1xf32> to vector<8x8xf32>
    %276 = arith.subf %272, %275 : vector<8x8xf32>
    %277 = math.exp %276 : vector<8x8xf32>
    %cst_166 = arith.constant dense<0.000000e+00> : vector<8xf32>
    %278 = vector.multi_reduction <add>, %277, %cst_166 [1] : vector<8x8xf32> to vector<8xf32>
    %279 = vector.shape_cast %278 : vector<8xf32> to vector<8x1xf32>
    %280 = vector.broadcast %279 : vector<8x1xf32> to vector<8x8xf32>
    %281 = arith.divf %277, %280 : vector<8x8xf32>
    %cst_167 = arith.constant dense<0.000000e+00> : vector<8x16xf32>
    %282 = tpu.matmul %281, %269, %cst_167 {dimension_numbers = #tpu.dot_dimension_numbers<[1], [0], [0], [1], [0, 0, 1, 1], [], []>} : vector<8x8xf32>, vector<8x16xf32>, vector<8x16xf32> -> vector<8x16xf32>
    %283 = vector.extract_strided_slice %218 {offsets = [0, 0], sizes = [16, 32], strides = [1, 1]} : vector<32x32xbf16> to vector<16x32xbf16>
    %284 = arith.truncf %282 : vector<8x16xf32> to vector<8x16xbf16>
    %cst_168 = arith.constant dense<0.000000e+00> : vector<8x32xf32>
    %285 = tpu.matmul %284, %283, %cst_168 {dimension_numbers = #tpu.dot_dimension_numbers<[1], [0], [0], [1], [0, 0, 1, 1], [], []>} : vector<8x16xbf16>, vector<16x32xbf16>, vector<8x32xf32> -> vector<8x32xf32>
    %c8_169 = arith.constant 8 : index
    %c16_170 = arith.constant 16 : index
    %286 = vector.load %arg21[%c8_169, %c16_170] : memref<16x96xf32, #tpu.memory_space<vmem>>, vector<8x16xf32>
    %cst_171 = arith.constant 2.500000e-01 : f32
    %287 = vector.broadcast %cst_171 : f32 to vector<8x16xf32>
    %288 = arith.mulf %286, %287 : vector<8x16xf32>
    %c8_172 = arith.constant 8 : index
    %c48_173 = arith.constant 48 : index
    %289 = vector.load %arg21[%c8_172, %c48_173] : memref<16x96xf32, #tpu.memory_space<vmem>>, vector<8x16xf32>
    %c8_174 = arith.constant 8 : index
    %c80_175 = arith.constant 80 : index
    %290 = vector.load %arg21[%c8_174, %c80_175] : memref<16x96xf32, #tpu.memory_space<vmem>>, vector<8x16xf32>
    %cst_176 = arith.constant dense<0.000000e+00> : vector<8x8xf32>
    %291 = tpu.matmul %288, %289, %cst_176 {dimension_numbers = #tpu.dot_dimension_numbers<[1], [1], [0], [0], [0, 0, 1, 0], [], []>} : vector<8x16xf32>, vector<8x16xf32>, vector<8x8xf32> -> vector<8x8xf32>
    %292 = vector.broadcast %264 : vector<1x8xf32> to vector<8x8xf32>
    %293 = arith.addf %291, %292 : vector<8x8xf32>
    %cst_177 = arith.constant dense<0xFF800000> : vector<8xf32>
    %294 = vector.multi_reduction <maximumf>, %293, %cst_177 [1] : vector<8x8xf32> to vector<8xf32>
    %295 = vector.shape_cast %294 : vector<8xf32> to vector<8x1xf32>
    %296 = vector.broadcast %295 : vector<8x1xf32> to vector<8x8xf32>
    %297 = arith.subf %293, %296 : vector<8x8xf32>
    %298 = math.exp %297 : vector<8x8xf32>
    %cst_178 = arith.constant dense<0.000000e+00> : vector<8xf32>
    %299 = vector.multi_reduction <add>, %298, %cst_178 [1] : vector<8x8xf32> to vector<8xf32>
    %300 = vector.shape_cast %299 : vector<8xf32> to vector<8x1xf32>
    %301 = vector.broadcast %300 : vector<8x1xf32> to vector<8x8xf32>
    %302 = arith.divf %298, %301 : vector<8x8xf32>
    %cst_179 = arith.constant dense<0.000000e+00> : vector<8x16xf32>
    %303 = tpu.matmul %302, %290, %cst_179 {dimension_numbers = #tpu.dot_dimension_numbers<[1], [0], [0], [1], [0, 0, 1, 1], [], []>} : vector<8x8xf32>, vector<8x16xf32>, vector<8x16xf32> -> vector<8x16xf32>
    %304 = vector.extract_strided_slice %218 {offsets = [16, 0], sizes = [16, 32], strides = [1, 1]} : vector<32x32xbf16> to vector<16x32xbf16>
    %305 = arith.truncf %303 : vector<8x16xf32> to vector<8x16xbf16>
    %cst_180 = arith.constant dense<0.000000e+00> : vector<8x32xf32>
    %306 = tpu.matmul %305, %304, %cst_180 {dimension_numbers = #tpu.dot_dimension_numbers<[1], [0], [0], [1], [0, 0, 1, 1], [], []>} : vector<8x16xbf16>, vector<16x32xbf16>, vector<8x32xf32> -> vector<8x32xf32>
    %307 = arith.addf %285, %306 : vector<8x32xf32>
    %c8_181 = arith.constant 8 : index
    %c0_182 = arith.constant 0 : index
    %308 = vector.load %arg22[%c8_181, %c0_182] : memref<16x32xf32, #tpu.memory_space<vmem>>, vector<8x32xf32>
    tpu.vector_store %arg22[%c8_181, %c0_182], %307 {strides = array<i32>} : memref<16x32xf32, #tpu.memory_space<vmem>>, vector<8x32xf32>,
    %c0_183 = arith.constant 0 : index
    %c0_184 = arith.constant 0 : index
    %309 = vector.load %arg22[%c0_183, %c0_184] : memref<16x32xf32, #tpu.memory_space<vmem>>, vector<16x32xf32>
    %c1_185 = arith.constant 1 : index
    %c0_186 = arith.constant 0 : index
    %c0_187 = arith.constant 0 : index
    %310 = vector.load %arg7[%c1_185, %c0_186, %c0_187] : memref<2x1x32xf32, #tpu.memory_space<vmem>>, vector<1x1x32xf32>
    %311 = vector.shape_cast %310 : vector<1x1x32xf32> to vector<1x32xf32>
    %312 = vector.broadcast %311 : vector<1x32xf32> to vector<16x32xf32>
    %313 = arith.addf %309, %312 : vector<16x32xf32>
    %314 = arith.addf %313, %207 : vector<16x32xf32>
    %c1_188 = arith.constant 1 : index
    %c0_189 = arith.constant 0 : index
    %c0_190 = arith.constant 0 : index
    %315 = vector.load %arg8[%c1_188, %c0_189, %c0_190] : memref<2x1x32xf32, #tpu.memory_space<vmem>>, vector<1x1x32xf32>
    %316 = vector.shape_cast %315 : vector<1x1x32xf32> to vector<1x32xf32>
    %c1_191 = arith.constant 1 : index
    %c0_192 = arith.constant 0 : index
    %c0_193 = arith.constant 0 : index
    %317 = vector.load %arg9[%c1_191, %c0_192, %c0_193] : memref<2x1x32xf32, #tpu.memory_space<vmem>>, vector<1x1x32xf32>
    %318 = vector.shape_cast %317 : vector<1x1x32xf32> to vector<1x32xf32>
    %cst_194 = arith.constant dense<0.000000e+00> : vector<16xf32>
    %319 = vector.multi_reduction <add>, %314, %cst_194 [1] : vector<16x32xf32> to vector<16xf32>
    %320 = vector.shape_cast %319 : vector<16xf32> to vector<16x1xf32>
    %cst_195 = arith.constant 3.200000e+01 : f32
    %321 = vector.broadcast %cst_195 : f32 to vector<16x1xf32>
    %322 = arith.divf %320, %321 : vector<16x1xf32>
    %323 = vector.broadcast %322 : vector<16x1xf32> to vector<16x32xf32>
    %324 = arith.subf %314, %323 : vector<16x32xf32>
    %325 = arith.mulf %324, %324 : vector<16x32xf32>
    %cst_196 = arith.constant dense<0.000000e+00> : vector<16xf32>
    %326 = vector.multi_reduction <add>, %325, %cst_196 [1] : vector<16x32xf32> to vector<16xf32>
    %327 = vector.shape_cast %326 : vector<16xf32> to vector<16x1xf32>
    %cst_197 = arith.constant 3.200000e+01 : f32
    %328 = vector.broadcast %cst_197 : f32 to vector<16x1xf32>
    %329 = arith.divf %327, %328 : vector<16x1xf32>
    %cst_198 = arith.constant 9.99999996E-13 : f32
    %330 = vector.broadcast %cst_198 : f32 to vector<16x1xf32>
    %331 = arith.addf %329, %330 : vector<16x1xf32>
    %332 = math.rsqrt %331 : vector<16x1xf32>
    %333 = vector.broadcast %332 : vector<16x1xf32> to vector<16x32xf32>
    %334 = arith.mulf %324, %333 : vector<16x32xf32>
    %335 = vector.broadcast %316 : vector<1x32xf32> to vector<16x32xf32>
    %336 = arith.mulf %334, %335 : vector<16x32xf32>
    %337 = vector.broadcast %318 : vector<1x32xf32> to vector<16x32xf32>
    %338 = arith.addf %336, %337 : vector<16x32xf32>
    %c1_199 = arith.constant 1 : index
    %c0_200 = arith.constant 0 : index
    %c0_201 = arith.constant 0 : index
    %339 = vector.load %arg10[%c1_199, %c0_200, %c0_201] : memref<2x32x64xbf16, #tpu.memory_space<vmem>>, vector<1x32x64xbf16>
    %340 = vector.shape_cast %339 : vector<1x32x64xbf16> to vector<32x64xbf16>
    %341 = arith.truncf %338 : vector<16x32xf32> to vector<16x32xbf16>
    %cst_202 = arith.constant dense<0.000000e+00> : vector<16x64xf32>
    %342 = tpu.matmul %341, %340, %cst_202 {dimension_numbers = #tpu.dot_dimension_numbers<[1], [0], [0], [1], [0, 0, 1, 1], [], []>} : vector<16x32xbf16>, vector<32x64xbf16>, vector<16x64xf32> -> vector<16x64xf32>
    %c1_203 = arith.constant 1 : index
    %c0_204 = arith.constant 0 : index
    %c0_205 = arith.constant 0 : index
    %343 = vector.load %arg11[%c1_203, %c0_204, %c0_205] : memref<2x1x64xf32, #tpu.memory_space<vmem>>, vector<1x1x64xf32>
    %344 = vector.shape_cast %343 : vector<1x1x64xf32> to vector<1x64xf32>
    %345 = vector.broadcast %344 : vector<1x64xf32> to vector<16x64xf32>
    %346 = arith.addf %342, %345 : vector<16x64xf32>
    %cst_206 = arith.constant 5.000000e-01 : f32
    %347 = vector.broadcast %cst_206 : f32 to vector<16x64xf32>
    %348 = arith.mulf %347, %346 : vector<16x64xf32>
    %cst_207 = arith.constant 4.471500e-02 : f32
    %349 = vector.broadcast %cst_207 : f32 to vector<16x64xf32>
    %350 = arith.mulf %349, %346 : vector<16x64xf32>
    %351 = arith.mulf %350, %346 : vector<16x64xf32>
    %352 = arith.mulf %351, %346 : vector<16x64xf32>
    %353 = arith.addf %346, %352 : vector<16x64xf32>
    %cst_208 = arith.constant 0.797884583 : f32
    %354 = vector.broadcast %cst_208 : f32 to vector<16x64xf32>
    %355 = arith.mulf %354, %353 : vector<16x64xf32>
    %356 = math.tanh %355 : vector<16x64xf32>
    %cst_209 = arith.constant 1.000000e+00 : f32
    %357 = vector.broadcast %cst_209 : f32 to vector<16x64xf32>
    %358 = arith.addf %357, %356 : vector<16x64xf32>
    %359 = arith.mulf %348, %358 : vector<16x64xf32>
    %c1_210 = arith.constant 1 : index
    %c0_211 = arith.constant 0 : index
    %c0_212 = arith.constant 0 : index
    %360 = vector.load %arg12[%c1_210, %c0_211, %c0_212] : memref<2x64x32xbf16, #tpu.memory_space<vmem>>, vector<1x64x32xbf16>
    %361 = vector.shape_cast %360 : vector<1x64x32xbf16> to vector<64x32xbf16>
    %362 = arith.truncf %359 : vector<16x64xf32> to vector<16x64xbf16>
    %cst_213 = arith.constant dense<0.000000e+00> : vector<16x32xf32>
    %363 = tpu.matmul %362, %361, %cst_213 {dimension_numbers = #tpu.dot_dimension_numbers<[1], [0], [0], [1], [0, 0, 1, 1], [], []>} : vector<16x64xbf16>, vector<64x32xbf16>, vector<16x32xf32> -> vector<16x32xf32>
    %c1_214 = arith.constant 1 : index
    %c0_215 = arith.constant 0 : index
    %c0_216 = arith.constant 0 : index
    %364 = vector.load %arg13[%c1_214, %c0_215, %c0_216] : memref<2x1x32xf32, #tpu.memory_space<vmem>>, vector<1x1x32xf32>
    %365 = vector.shape_cast %364 : vector<1x1x32xf32> to vector<1x32xf32>
    %366 = vector.broadcast %365 : vector<1x32xf32> to vector<16x32xf32>
    %367 = arith.addf %363, %366 : vector<16x32xf32>
    %368 = arith.addf %367, %338 : vector<16x32xf32>
    %c1_217 = arith.constant 1 : index
    %c0_218 = arith.constant 0 : index
    %c0_219 = arith.constant 0 : index
    %369 = vector.load %arg14[%c1_217, %c0_218, %c0_219] : memref<2x1x32xf32, #tpu.memory_space<vmem>>, vector<1x1x32xf32>
    %370 = vector.shape_cast %369 : vector<1x1x32xf32> to vector<1x32xf32>
    %c1_220 = arith.constant 1 : index
    %c0_221 = arith.constant 0 : index
    %c0_222 = arith.constant 0 : index
    %371 = vector.load %arg15[%c1_220, %c0_221, %c0_222] : memref<2x1x32xf32, #tpu.memory_space<vmem>>, vector<1x1x32xf32>
    %372 = vector.shape_cast %371 : vector<1x1x32xf32> to vector<1x32xf32>
    %cst_223 = arith.constant dense<0.000000e+00> : vector<16xf32>
    %373 = vector.multi_reduction <add>, %368, %cst_223 [1] : vector<16x32xf32> to vector<16xf32>
    %374 = vector.shape_cast %373 : vector<16xf32> to vector<16x1xf32>
    %cst_224 = arith.constant 3.200000e+01 : f32
    %375 = vector.broadcast %cst_224 : f32 to vector<16x1xf32>
    %376 = arith.divf %374, %375 : vector<16x1xf32>
    %377 = vector.broadcast %376 : vector<16x1xf32> to vector<16x32xf32>
    %378 = arith.subf %368, %377 : vector<16x32xf32>
    %379 = arith.mulf %378, %378 : vector<16x32xf32>
    %cst_225 = arith.constant dense<0.000000e+00> : vector<16xf32>
    %380 = vector.multi_reduction <add>, %379, %cst_225 [1] : vector<16x32xf32> to vector<16xf32>
    %381 = vector.shape_cast %380 : vector<16xf32> to vector<16x1xf32>
    %cst_226 = arith.constant 3.200000e+01 : f32
    %382 = vector.broadcast %cst_226 : f32 to vector<16x1xf32>
    %383 = arith.divf %381, %382 : vector<16x1xf32>
    %cst_227 = arith.constant 9.99999996E-13 : f32
    %384 = vector.broadcast %cst_227 : f32 to vector<16x1xf32>
    %385 = arith.addf %383, %384 : vector<16x1xf32>
    %386 = math.rsqrt %385 : vector<16x1xf32>
    %387 = vector.broadcast %386 : vector<16x1xf32> to vector<16x32xf32>
    %388 = arith.mulf %378, %387 : vector<16x32xf32>
    %389 = vector.broadcast %370 : vector<1x32xf32> to vector<16x32xf32>
    %390 = arith.mulf %388, %389 : vector<16x32xf32>
    %391 = vector.broadcast %372 : vector<1x32xf32> to vector<16x32xf32>
    %392 = arith.addf %390, %391 : vector<16x32xf32>
    %c0_228 = arith.constant 0 : index
    %c0_229 = arith.constant 0 : index
    %393 = vector.load %arg16[%c0_228, %c0_229] : memref<32x32xbf16, #tpu.memory_space<vmem>>, vector<32x32xbf16>
    %394 = arith.truncf %392 : vector<16x32xf32> to vector<16x32xbf16>
    %cst_230 = arith.constant dense<0.000000e+00> : vector<16x32xf32>
    %395 = tpu.matmul %394, %393, %cst_230 {dimension_numbers = #tpu.dot_dimension_numbers<[1], [0], [0], [1], [0, 0, 1, 1], [], []>} : vector<16x32xbf16>, vector<32x32xbf16>, vector<16x32xf32> -> vector<16x32xf32>
    %c0_231 = arith.constant 0 : index
    %c0_232 = arith.constant 0 : index
    %396 = vector.load %arg17[%c0_231, %c0_232] : memref<1x32xf32, #tpu.memory_space<vmem>>, vector<1x32xf32>
    %397 = vector.broadcast %396 : vector<1x32xf32> to vector<16x32xf32>
    %398 = arith.addf %395, %397 : vector<16x32xf32>
    %cst_233 = arith.constant 0.000000e+00 : f32
    %399 = vector.broadcast %cst_233 : f32 to vector<16x32xf32>
    %400 = arith.maximumf %398, %399 : vector<16x32xf32>
    %c0_234 = arith.constant 0 : index
    %c0_235 = arith.constant 0 : index
    %401 = vector.load %arg18[%c0_234, %c0_235] : memref<32x2xbf16, #tpu.memory_space<vmem>>, vector<32x2xbf16>
    %402 = arith.truncf %400 : vector<16x32xf32> to vector<16x32xbf16>
    %cst_236 = arith.constant dense<0.000000e+00> : vector<16x2xf32>
    %403 = tpu.matmul %402, %401, %cst_236 {dimension_numbers = #tpu.dot_dimension_numbers<[1], [0], [0], [1], [0, 0, 1, 1], [], []>} : vector<16x32xbf16>, vector<32x2xbf16>, vector<16x2xf32> -> vector<16x2xf32>
    %c0_237 = arith.constant 0 : index
    %c0_238 = arith.constant 0 : index
    %404 = vector.load %arg19[%c0_237, %c0_238] : memref<1x2xf32, #tpu.memory_space<vmem>>, vector<1x2xf32>
    %405 = vector.broadcast %404 : vector<1x2xf32> to vector<16x2xf32>
    %406 = arith.addf %403, %405 : vector<16x2xf32>
    %c0_239 = arith.constant 0 : index
    %c0_240 = arith.constant 0 : index
    %407 = vector.load %arg20[%c0_239, %c0_240] : memref<16x2xf32, #tpu.memory_space<vmem>>, vector<16x2xf32>
    tpu.vector_store %arg20[%c0_239, %c0_240], %406 {strides = array<i32>} : memref<16x2xf32, #tpu.memory_space<vmem>>, vector<16x2xf32>,
    return
  }
}

</mosaic_0001>

<llo_original>
// kernel: imdb_forward.1
$region0: #{imdb_forward.1}
  #allocation0 [shape = 'u32[]', space=smem, size = 0x4, offset = 0x4, fixed_abs, tag = 'smem constant byte address 0x4 - core index']
  #allocation1 [shape = 'u32[144,128]{1,0:T(1,128)}', space=vmem, size = 0x12000, scoped, tag = 'internal scratch']
  #allocation2 [shape = 'f32[16,96]{1,0:T(8,128)}', space=vmem, size = 0x2000, scoped, tag = 'scratch operand']
  #allocation3 [shape = 'f32[16,32]{1,0:T(8,128)}', space=vmem, size = 0x2000, scoped, tag = 'scratch operand']
  %s0 = inlined_call_operand.vmem [shape: f32[16,32], index: 0, kind: input, shape index: {}]
  %s1 = inlined_call_operand.vmem [shape: f32[2,8], index: 1, kind: input, shape index: {}]
  %s2 = inlined_call_operand.vmem [shape: f32[1,32], index: 2, kind: input, shape index: {}]
  %s3 = inlined_call_operand.vmem [shape: f32[1,32], index: 3, kind: input, shape index: {}]
  %s4 = inlined_call_operand.vmem [shape: bf16[2,32,96], index: 4, kind: input, shape index: {}]
  %s5 = inlined_call_operand.vmem [shape: f32[2,1,96], index: 5, kind: input, shape index: {}]
  %s6 = inlined_call_operand.vmem [shape: bf16[2,32,32], index: 6, kind: input, shape index: {}]
  %s7 = inlined_call_operand.vmem [shape: f32[2,1,32], index: 7, kind: input, shape index: {}]
  %s8 = inlined_call_operand.vmem [shape: f32[2,1,32], index: 8, kind: input, shape index: {}]
  %s9 = inlined_call_operand.vmem [shape: f32[2,1,32], index: 9, kind: input, shape index: {}]
  %s10 = inlined_call_operand.vmem [shape: bf16[2,32,64], index: 10, kind: input, shape index: {}]
  %s11 = inlined_call_operand.vmem [shape: f32[2,1,64], index: 11, kind: input, shape index: {}]
  %s12 = inlined_call_operand.vmem [shape: bf16[2,64,32], index: 12, kind: input, shape index: {}]
  %s13 = inlined_call_operand.vmem [shape: f32[2,1,32], index: 13, kind: input, shape index: {}]
  %s14 = inlined_call_operand.vmem [shape: f32[2,1,32], index: 14, kind: input, shape index: {}]
  %s15 = inlined_call_operand.vmem [shape: f32[2,1,32], index: 15, kind: input, shape index: {}]
  %s16 = inlined_call_operand.vmem [shape: bf16[32,32], index: 16, kind: input, shape index: {}]
  %s17 = inlined_call_operand.vmem [shape: f32[1,32], index: 17, kind: input, shape index: {}]
  %s18 = inlined_call_operand.vmem [shape: bf16[32,2], index: 18, kind: input, shape index: {}]
  %s19 = inlined_call_operand.vmem [shape: f32[1,2], index: 19, kind: input, shape index: {}]
  %s20 = inlined_call_operand.vmem [shape: f32[16,2], index: 20, kind: output, shape index: {}]
  %s21 = sld [smem:[#allocation0]]
  $region90: #{imdb_forward.1} parent=0
    _
  %s23 = ssub.s32 1, %s21
  %s24 = scalar_select 0, %s23, %s21
  // Predicated region
  $region2: #{imdb_forward.1} parent=0 // pred_check
    _
  $region3: #{imdb_forward.1} parent=0 // pred_check_branch
    %26 = sbr.rel (0) target = $region5
  $region4: #{imdb_forward.1} parent=0 // pred_region
    _
  $region5: #{imdb_forward.1} parent=0 // pred_fallthru
    _
  // Predicated region
  $region6: #{imdb_forward.1} parent=0 // pred_check
    _
  $region7: #{imdb_forward.1} parent=0 // pred_check_branch
    %28 = sbr.rel (0) target = $region9
  $region8: #{imdb_forward.1} parent=0 // pred_region
    _
  $region9: #{imdb_forward.1} parent=0 // pred_fallthru
    _
  // Predicated region
  $region10: #{imdb_forward.1} parent=0 // pred_check
    _
  $region11: #{imdb_forward.1} parent=0 // pred_check_branch
    %30 = sbr.rel (0) target = $region13
  $region12: #{imdb_forward.1} parent=0 // pred_region
    _
  $region13: #{imdb_forward.1} parent=0 // pred_fallthru
    _
  // Predicated region
  $region14: #{imdb_forward.1} parent=0 // pred_check
    _
  $region15: #{imdb_forward.1} parent=0 // pred_check_branch
    %32 = sbr.rel (0) target = $region17
  $region16: #{imdb_forward.1} parent=0 // pred_region
    _
  $region17: #{imdb_forward.1} parent=0 // pred_fallthru
    _
  // Predicated region
  $region18: #{imdb_forward.1} parent=0 // pred_check
    _
  $region19: #{imdb_forward.1} parent=0 // pred_check_branch
    %34 = sbr.rel (0) target = $region21
  $region20: #{imdb_forward.1} parent=0 // pred_region
    _
  $region21: #{imdb_forward.1} parent=0 // pred_fallthru
    _
  // Predicated region
  $region22: #{imdb_forward.1} parent=0 // pred_check
    _
  $region23: #{imdb_forward.1} parent=0 // pred_check_branch
    %36 = sbr.rel (0) target = $region25
  $region24: #{imdb_forward.1} parent=0 // pred_region
    _
  $region25: #{imdb_forward.1} parent=0 // pred_fallthru
    _
  // Predicated region
  $region26: #{imdb_forward.1} parent=0 // pred_check
    _
  $region27: #{imdb_forward.1} parent=0 // pred_check_branch
    %38 = sbr.rel (0) target = $region29
  $region28: #{imdb_forward.1} parent=0 // pred_region
    _
  $region29: #{imdb_forward.1} parent=0 // pred_fallthru
    _
  // Predicated region
  $region30: #{imdb_forward.1} parent=0 // pred_check
    _
  $region31: #{imdb_forward.1} parent=0 // pred_check_branch
    %40 = sbr.rel (0) target = $region33
  $region32: #{imdb_forward.1} parent=0 // pred_region
    _
  $region33: #{imdb_forward.1} parent=0 // pred_fallthru
    _
  // Predicated region
  $region34: #{imdb_forward.1} parent=0 // pred_check
    _
  $region35: #{imdb_forward.1} parent=0 // pred_check_branch
    %42 = sbr.rel (0) target = $region37
  $region36: #{imdb_forward.1} parent=0 // pred_region
    _
  $region37: #{imdb_forward.1} parent=0 // pred_fallthru
    _
  // Predicated region
  $region38: #{imdb_forward.1} parent=0 // pred_check
    _
  $region39: #{imdb_forward.1} parent=0 // pred_check_branch
    %44 = sbr.rel (0) target = $region41
  $region40: #{imdb_forward.1} parent=0 // pred_region
    _
  $region41: #{imdb_forward.1} parent=0 // pred_fallthru
    _
  // Predicated region
  $region42: #{imdb_forward.1} parent=0 // pred_check
    _
  $region43: #{imdb_forward.1} parent=0 // pred_check_branch
    %46 = sbr.rel (0) target = $region45
  $region44: #{imdb_forward.1} parent=0 // pred_region
    _
  $region45: #{imdb_forward.1} parent=0 // pred_fallthru
    _
  // Predicated region
  $region46: #{imdb_forward.1} parent=0 // pred_check
    _
  $region47: #{imdb_forward.1} parent=0 // pred_check_branch
    %48 = sbr.rel (0) target = $region49
  $region48: #{imdb_forward.1} parent=0 // pred_region
    _
  $region49: #{imdb_forward.1} parent=0 // pred_fallthru
    _
  // Predicated region
  $region50: #{imdb_forward.1} parent=0 // pred_check
    _
  $region51: #{imdb_forward.1} parent=0 // pred_check_branch
    %50 = sbr.rel (0) target = $region53
  $region52: #{imdb_forward.1} parent=0 // pred_region
    _
  $region53: #{imdb_forward.1} parent=0 // pred_fallthru
    _
  // Predicated region
  $region54: #{imdb_forward.1} parent=0 // pred_check
    _
  $region55: #{imdb_forward.1} parent=0 // pred_check_branch
    %52 = sbr.rel (0) target = $region57
  $region56: #{imdb_forward.1} parent=0 // pred_region
    _
  $region57: #{imdb_forward.1} parent=0 // pred_fallthru
    _
  // Predicated region
  $region58: #{imdb_forward.1} parent=0 // pred_check
    _
  $region59: #{imdb_forward.1} parent=0 // pred_check_branch
    %54 = sbr.rel (0) target = $region61
  $region60: #{imdb_forward.1} parent=0 // pred_region
    _
  $region61: #{imdb_forward.1} parent=0 // pred_fallthru
    _
  // Predicated region
  $region62: #{imdb_forward.1} parent=0 // pred_check
    _
  $region63: #{imdb_forward.1} parent=0 // pred_check_branch
    %56 = sbr.rel (0) target = $region65
  $region64: #{imdb_forward.1} parent=0 // pred_region
    _
  $region65: #{imdb_forward.1} parent=0 // pred_fallthru
    _
  // Predicated region
  $region66: #{imdb_forward.1} parent=0 // pred_check
    _
  $region67: #{imdb_forward.1} parent=0 // pred_check_branch
    %58 = sbr.rel (0) target = $region69
  $region68: #{imdb_forward.1} parent=0 // pred_region
    _
  $region69: #{imdb_forward.1} parent=0 // pred_fallthru
    _
  // Predicated region
  $region70: #{imdb_forward.1} parent=0 // pred_check
    _
  $region71: #{imdb_forward.1} parent=0 // pred_check_branch
    %60 = sbr.rel (0) target = $region73
  $region72: #{imdb_forward.1} parent=0 // pred_region
    _
  $region73: #{imdb_forward.1} parent=0 // pred_fallthru
    _
  // Predicated region
  $region74: #{imdb_forward.1} parent=0 // pred_check
    _
  $region75: #{imdb_forward.1} parent=0 // pred_check_branch
    %62 = sbr.rel (0) target = $region77
  $region76: #{imdb_forward.1} parent=0 // pred_region
    _
  $region77: #{imdb_forward.1} parent=0 // pred_fallthru
    _
  // Predicated region
  $region78: #{imdb_forward.1} parent=0 // pred_check
    _
  $region79: #{imdb_forward.1} parent=0 // pred_check_branch
    %64 = sbr.rel (0) target = $region81
  $region80: #{imdb_forward.1} parent=0 // pred_region
    _
  $region81: #{imdb_forward.1} parent=0 // pred_fallthru
    _
  %v66 = vld [vmem:[%s0] sm:$0xff]
  %v67 = vld [vmem:[%s0 + $0x8] sm:$0xff]
  %v68 = vld [vmem:[%s2] sm:$0x1]
  %v69 = vld [vmem:[%s3] sm:$0x1]
  %vm70 = vcmask 261120
  %v71 = vsel %vm70, %v66, 0.0
  %72 = vadd.xlane.f32.xlu0 %v71
  %v73 = vpop.xlane.xlu0 %72
  %v74 = vsel %vm70, %v67, 0.0
  %75 = vadd.xlane.f32.xlu0 %v74
  %v76 = vpop.xlane.xlu0 %75
  %v77 = vrcp.pop 32.0
  %v78 = vmul.f32 %v73, %v77
  %v79 = vmul.f32 %v76, %v77
  %v80 = vsub.f32 %v66, %v78
  %v81 = vsub.f32 %v67, %v79
  %v82 = vmul.f32 %v80, %v80
  %v83 = vmul.f32 %v81, %v81
  %v84 = vsel %vm70, %v82, 0.0
  %85 = vadd.xlane.f32.xlu0 %v84
  %v86 = vpop.xlane.xlu0 %85
  %v87 = vsel %vm70, %v83, 0.0
  %88 = vadd.xlane.f32.xlu0 %v87
  %v89 = vpop.xlane.xlu0 %88
  %v90 = vmul.f32 %v86, %v77
  %v91 = vmul.f32 %v89, %v77
  %v92 = vadd.f32 %v90, 1e-12
  %v93 = vadd.f32 %v91, 1e-12
  %v94 = vrsqrt.pop %v92
  %v95 = vrsqrt.pop %v93
  %v96 = vmul.f32 %v80, %v94
  %v97 = vmul.f32 %v81, %v95
  %v99 = vlaneseq
  %v100 = vshrl.u32 %v99, 7
  %v101 = vsub.s32 0, %v100
  %v102 = vrot.slane %v68, %v101
  %v104 = vmul.f32 %v96, %v102
  %v105 = vmul.f32 %v97, %v102
  %v107 = vlaneseq
  %v108 = vshrl.u32 %v107, 7
  %v109 = vsub.s32 0, %v108
  %v110 = vrot.slane %v69, %v109
  %v112 = vadd.f32 %v104, %v110
  %v113 = vadd.f32 %v105, %v110
  %v114 = vld [vmem:[%s4] sm:$0xf]
  %v115 = vld [vmem:[%s4 + $0x4] sm:$0xf]
  %v116 = vld [vmem:[%s4 + $0x8] sm:$0xf]
  %v117 = vld [vmem:[%s4 + $0xc] sm:$0xf]
  %v118 = vpack.c.bf16 %v113, %v112
  %v119 = vld [vmem:[%s5] sm:$0x1]
  %v121 = vlaneseq
  %v122 = vshrl.u32 %v121, 7
  %v123 = vsub.s32 0, %v122
  %v124 = vrot.slane %v119, %v123
  %v130 = vunpack.c.l.b16 %v114
  %v131 = vunpack.c.l.b16 %v115
  %v132 = vunpack.c.l.b16 %v116
  %v133 = vunpack.c.l.b16 %v117
  %v134 = vpack.c.b16 %v131, %v130
  %v135 = vpack.c.b16 %v133, %v132
  %v139 = vsel %vm70, %v118, 0
  %141 = vmatprep.subr.bf16.mxu0 0
  %142 = vmatpush1.bf16.msra.mxu0 %v134
  %143 = vmatprep.subr.bf16.mxu0 0
  %144 = vmatpush1.bf16.msra.mxu0 %v135
  %145 = vmatprep.subr.bf16.mxu0 0
  %146 = vmatpush1.bf16.msra.mxu0 0
  %147 = vmatprep.subr.bf16.mxu0 0
  %148 = vmatpush1.bf16.msra.mxu0 0
  %149 = vmatprep.subr.bf16.mxu0 0
  %150 = vmatpush1.bf16.msra.mxu0 0
  %151 = vmatprep.subr.bf16.mxu0 0
  %152 = vmatpush1.bf16.msra.mxu0 0
  %153 = vmatprep.subr.bf16.mxu0 0
  %154 = vmatpush1.bf16.msra.mxu0 0
  %155 = vmatprep.subr.bf16.mxu0 0
  %156 = vmatpush1.bf16.msra.mxu0 0
  %157 = vmatprep.subr.bf16.mxu0 0
  %158 = vmatpush1.bf16.msra.mxu0 0
  %159 = vmatprep.subr.bf16.mxu0 0
  %160 = vmatpush1.bf16.msra.mxu0 0
  %161 = vmatprep.subr.bf16.mxu0 0
  %162 = vmatpush1.bf16.msra.mxu0 0
  %163 = vmatprep.subr.bf16.mxu0 0
  %164 = vmatpush1.bf16.msra.mxu0 0
  %165 = vmatprep.subr.bf16.mxu0 0
  %166 = vmatpush1.bf16.msra.mxu0 0
  %167 = vmatprep.subr.bf16.mxu0 0
  %168 = vmatpush1.bf16.msra.mxu0 0
  %169 = vmatprep.subr.bf16.mxu0 0
  %170 = vmatpush1.bf16.msra.mxu0 0
  %171 = vmatprep.subr.bf16.mxu0 0
  %172 = vmatpush1.bf16.msra.mxu0 0
  %173 = vmatprep.mubr.bf16.mxu0 0
  %174 = vmatmul.mubr.bf16.gmra.mrb[0].mxu0 %v139
  %v175 = vpop.f32.mrb[0].mxu0
  %v176 = vadd.f32 %v124, %v175
  %v177 = vpop.f32.mrb[0].mxu0
  %v178 = vpop.f32.mrb[0].mxu0
  %v179 = vadd.f32 %v124, %v178
  %v180 = vpop.f32.mrb[0].mxu0
  %181 = vdwg.mxu0
  %vm182 = vcmask 785408
  %183 = vst.msk [vmem:[#allocation2] sm:$0xff] %vm182, %v176
  %184 = vst.msk [vmem:[#allocation2 + $0x8] sm:$0xff] %vm182, %v179
  %v185 = vld [vmem:[%s6] sm:$0xf]
  %v186 = vld [vmem:[%s6 + $0x4] sm:$0xf]
  %v187 = vld [vmem:[%s6 + $0x8] sm:$0xf]
  %v188 = vld [vmem:[%s6 + $0xc] sm:$0xf]
  %v189 = vld [vmem:[%s1] sm:$0x1]
  %v190 = vld [vmem:[#allocation2] sm:$0xff]
  %v191 = vmul.f32 %v190, 0.25
  %v192 = vlaneseq
  %v193 = vshrl.u32 %v192, 7
  %v194 = vsub.s32 0, %v193
  %v195 = vrot.slane %v189, %v194
  %197 = vrot.lane.b32.xlu0 %v190, 96
  %v198 = vpop.permute.xlu0 %197
  %vm199 = vcmask 130048
  %v201 = vsel %vm199, %v191, 0
  %v203 = vsel %vm199, %v198, 0
  %205 = vmatprep.subr.mxu0 0.0
  %206 = vmatpush1.xpose.msra.mxu0 %v203
  %207 = vmatprep.subr.mxu0 0.0
  %208 = vmatpush1.xpose.msra.mxu0 0.0
  %209 = vmatprep.subr.mxu0 0.0
  %210 = vmatpush1.xpose.msra.mxu0 0.0
  %211 = vmatprep.subr.mxu0 0.0
  %212 = vmatpush1.xpose.msra.mxu0 0.0
  %213 = vmatprep.subr.mxu0 0.0
  %214 = vmatpush1.xpose.msra.mxu0 0.0
  %215 = vmatprep.subr.mxu0 0.0
  %216 = vmatpush1.xpose.msra.mxu0 0.0
  %217 = vmatprep.subr.mxu0 0.0
  %218 = vmatpush1.xpose.msra.mxu0 0.0
  %219 = vmatprep.subr.mxu0 0.0
  %220 = vmatpush1.xpose.msra.mxu0 0.0
  %221 = vmatprep.subr.mxu0 0.0
  %222 = vmatpush1.xpose.msra.mxu0 0.0
  %223 = vmatprep.subr.mxu0 0.0
  %224 = vmatpush1.xpose.msra.mxu0 0.0
  %225 = vmatprep.subr.mxu0 0.0
  %226 = vmatpush1.xpose.msra.mxu0 0.0
  %227 = vmatprep.subr.mxu0 0.0
  %228 = vmatpush1.xpose.msra.mxu0 0.0
  %229 = vmatprep.subr.mxu0 0.0
  %230 = vmatpush1.xpose.msra.mxu0 0.0
  %231 = vmatprep.subr.mxu0 0.0
  %232 = vmatpush1.xpose.msra.mxu0 0.0
  %233 = vmatprep.subr.mxu0 0.0
  %234 = vmatpush1.xpose.msra.mxu0 0.0
  %235 = vmatprep.subr.mxu0 0.0
  %236 = vmatpush1.xpose.msra.mxu0 0.0
  %237 = vmatprep.subr.mxu0 0.0
  %238 = vmatpush1.xpose.msra.mxu0 0.0
  %239 = vmatprep.subr.mxu0 0.0
  %240 = vmatpush1.xpose.msra.mxu0 0.0
  %241 = vmatprep.subr.mxu0 0.0
  %242 = vmatpush1.xpose.msra.mxu0 0.0
  %243 = vmatprep.subr.mxu0 0.0
  %244 = vmatpush1.xpose.msra.mxu0 0.0
  %245 = vmatprep.subr.mxu0 0.0
  %246 = vmatpush1.xpose.msra.mxu0 0.0
  %247 = vmatprep.subr.mxu0 0.0
  %248 = vmatpush1.xpose.msra.mxu0 0.0
  %249 = vmatprep.subr.mxu0 0.0
  %250 = vmatpush1.xpose.msra.mxu0 0.0
  %251 = vmatprep.subr.mxu0 0.0
  %252 = vmatpush1.xpose.msra.mxu0 0.0
  %253 = vmatprep.subr.mxu0 0.0
  %254 = vmatpush1.xpose.msra.mxu0 0.0
  %255 = vmatprep.subr.mxu0 0.0
  %256 = vmatpush1.xpose.msra.mxu0 0.0
  %257 = vmatprep.subr.mxu0 0.0
  %258 = vmatpush1.xpose.msra.mxu0 0.0
  %259 = vmatprep.subr.mxu0 0.0
  %260 = vmatpush1.xpose.msra.mxu0 0.0
  %261 = vmatprep.subr.mxu0 0.0
  %262 = vmatpush1.xpose.msra.mxu0 0.0
  %263 = vmatprep.subr.mxu0 0.0
  %264 = vmatpush1.xpose.msra.mxu0 0.0
  %265 = vmatprep.subr.mxu0 0.0
  %266 = vmatpush1.xpose.msra.mxu0 0.0
  %267 = vmatprep.subr.mxu0 0.0
  %268 = vmatpush1.xpose.msra.mxu0 0.0
  %269 = vmatprep.mubr.f32.mxu0 0.0
  %270 = vmatmul.mubr.f32.gmra.mrb[0].mxu0 %v201
  %v271 = vpop.f32.mrb[0].mxu0
  %v272 = vadd.f32 %v195, %v271
  %v273 = vpop.f32.mrb[0].mxu0
  %274 = vdwg.mxu0
  %vm275 = vcmask 64512
  %v276 = vsel %vm275, %v272, -inf
  %277 = vmax.xlane.f32.xlu0 %v276
  %v278 = vpop.xlane.xlu0 %277
  %v279 = vsub.f32 %v272, %v278
  %v280 = vmul.f32 %v279, 1.442695
  %v281 = vpow.pop %v280
  %v282 = vsel %vm275, %v281, 0.0
  %283 = vadd.xlane.f32.xlu0 %v282
  %v284 = vpop.xlane.xlu0 %283
  %v285 = vrcp.pop %v284
  %v286 = vmul.f32 %v281, %v285
  %287 = vrot.lane.b32.xlu0 %v190, 64
  %v288 = vpop.permute.xlu0 %287
  %v291 = vsel %vm275, %v286, 0
  %293 = vmatprep.subr.mxu0 0.0
  %294 = vmatpush1.msra.mxu0 %v288
  %295 = vmatprep.subr.mxu0 0.0
  %296 = vmatpush1.msra.mxu0 0.0
  %297 = vmatprep.subr.mxu0 0.0
  %298 = vmatpush1.msra.mxu0 0.0
  %299 = vmatprep.subr.mxu0 0.0
  %300 = vmatpush1.msra.mxu0 0.0
  %301 = vmatprep.subr.mxu0 0.0
  %302 = vmatpush1.msra.mxu0 0.0
  %303 = vmatprep.subr.mxu0 0.0
  %304 = vmatpush1.msra.mxu0 0.0
  %305 = vmatprep.subr.mxu0 0.0
  %306 = vmatpush1.msra.mxu0 0.0
  %307 = vmatprep.subr.mxu0 0.0
  %308 = vmatpush1.msra.mxu0 0.0
  %309 = vmatprep.subr.mxu0 0.0
  %310 = vmatpush1.msra.mxu0 0.0
  %311 = vmatprep.subr.mxu0 0.0
  %312 = vmatpush1.msra.mxu0 0.0
  %313 = vmatprep.subr.mxu0 0.0
  %314 = vmatpush1.msra.mxu0 0.0
  %315 = vmatprep.subr.mxu0 0.0
  %316 = vmatpush1.msra.mxu0 0.0
  %317 = vmatprep.subr.mxu0 0.0
  %318 = vmatpush1.msra.mxu0 0.0
  %319 = vmatprep.subr.mxu0 0.0
  %320 = vmatpush1.msra.mxu0 0.0
  %321 = vmatprep.subr.mxu0 0.0
  %322 = vmatpush1.msra.mxu0 0.0
  %323 = vmatprep.subr.mxu0 0.0
  %324 = vmatpush1.msra.mxu0 0.0
  %325 = vmatprep.subr.mxu0 0.0
  %326 = vmatpush1.msra.mxu0 0.0
  %327 = vmatprep.subr.mxu0 0.0
  %328 = vmatpush1.msra.mxu0 0.0
  %329 = vmatprep.subr.mxu0 0.0
  %330 = vmatpush1.msra.mxu0 0.0
  %331 = vmatprep.subr.mxu0 0.0
  %332 = vmatpush1.msra.mxu0 0.0
  %333 = vmatprep.subr.mxu0 0.0
  %334 = vmatpush1.msra.mxu0 0.0
  %335 = vmatprep.subr.mxu0 0.0
  %336 = vmatpush1.msra.mxu0 0.0
  %337 = vmatprep.subr.mxu0 0.0
  %338 = vmatpush1.msra.mxu0 0.0
  %339 = vmatprep.subr.mxu0 0.0
  %340 = vmatpush1.msra.mxu0 0.0
  %341 = vmatprep.subr.mxu0 0.0
  %342 = vmatpush1.msra.mxu0 0.0
  %343 = vmatprep.subr.mxu0 0.0
  %344 = vmatpush1.msra.mxu0 0.0
  %345 = vmatprep.subr.mxu0 0.0
  %346 = vmatpush1.msra.mxu0 0.0
  %347 = vmatprep.subr.mxu0 0.0
  %348 = vmatpush1.msra.mxu0 0.0
  %349 = vmatprep.subr.mxu0 0.0
  %350 = vmatpush1.msra.mxu0 0.0
  %351 = vmatprep.subr.mxu0 0.0
  %352 = vmatpush1.msra.mxu0 0.0
  %353 = vmatprep.subr.mxu0 0.0
  %354 = vmatpush1.msra.mxu0 0.0
  %355 = vmatprep.subr.mxu0 0.0
  %356 = vmatpush1.msra.mxu0 0.0
  %357 = vmatprep.mubr.f32.mxu0 0.0
  %358 = vmatmul.mubr.f32.gmra.mrb[0].mxu0 %v291
  %v359 = vpop.f32.mrb[0].mxu0
  %v360 = vadd.f32 0.0, %v359
  %v361 = vpop.f32.mrb[0].mxu0
  %362 = vdwg.mxu0
  %v363 = vpack.c.bf16 %v360, %v360
  %364 = vrot.lane.b32.xlu0 %v191, 112
  %v365 = vpop.permute.xlu0 %364
  %366 = vrot.lane.b32.xlu0 %v190, 80
  %v367 = vpop.permute.xlu0 %366
  %v368 = vsel %vm199, %v365, 0
  %v370 = vsel %vm199, %v367, 0
  %372 = vmatprep.subr.mxu0 0.0
  %373 = vmatpush1.xpose.msra.mxu0 %v370
  %374 = vmatprep.subr.mxu0 0.0
  %375 = vmatpush1.xpose.msra.mxu0 0.0
  %376 = vmatprep.subr.mxu0 0.0
  %377 = vmatpush1.xpose.msra.mxu0 0.0
  %378 = vmatprep.subr.mxu0 0.0
  %379 = vmatpush1.xpose.msra.mxu0 0.0
  %380 = vmatprep.subr.mxu0 0.0
  %381 = vmatpush1.xpose.msra.mxu0 0.0
  %382 = vmatprep.subr.mxu0 0.0
  %383 = vmatpush1.xpose.msra.mxu0 0.0
  %384 = vmatprep.subr.mxu0 0.0
  %385 = vmatpush1.xpose.msra.mxu0 0.0
  %386 = vmatprep.subr.mxu0 0.0
  %387 = vmatpush1.xpose.msra.mxu0 0.0
  %388 = vmatprep.subr.mxu0 0.0
  %389 = vmatpush1.xpose.msra.mxu0 0.0
  %390 = vmatprep.subr.mxu0 0.0
  %391 = vmatpush1.xpose.msra.mxu0 0.0
  %392 = vmatprep.subr.mxu0 0.0
  %393 = vmatpush1.xpose.msra.mxu0 0.0
  %394 = vmatprep.subr.mxu0 0.0
  %395 = vmatpush1.xpose.msra.mxu0 0.0
  %396 = vmatprep.subr.mxu0 0.0
  %397 = vmatpush1.xpose.msra.mxu0 0.0
  %398 = vmatprep.subr.mxu0 0.0
  %399 = vmatpush1.xpose.msra.mxu0 0.0
  %400 = vmatprep.subr.mxu0 0.0
  %401 = vmatpush1.xpose.msra.mxu0 0.0
  %402 = vmatprep.subr.mxu0 0.0
  %403 = vmatpush1.xpose.msra.mxu0 0.0
  %404 = vmatprep.subr.mxu0 0.0
  %405 = vmatpush1.xpose.msra.mxu0 0.0
  %406 = vmatprep.subr.mxu0 0.0
  %407 = vmatpush1.xpose.msra.mxu0 0.0
  %408 = vmatprep.subr.mxu0 0.0
  %409 = vmatpush1.xpose.msra.mxu0 0.0
  %410 = vmatprep.subr.mxu0 0.0
  %411 = vmatpush1.xpose.msra.mxu0 0.0
  %412 = vmatprep.subr.mxu0 0.0
  %413 = vmatpush1.xpose.msra.mxu0 0.0
  %414 = vmatprep.subr.mxu0 0.0
  %415 = vmatpush1.xpose.msra.mxu0 0.0
  %416 = vmatprep.subr.mxu0 0.0
  %417 = vmatpush1.xpose.msra.mxu0 0.0
  %418 = vmatprep.subr.mxu0 0.0
  %419 = vmatpush1.xpose.msra.mxu0 0.0
  %420 = vmatprep.subr.mxu0 0.0
  %421 = vmatpush1.xpose.msra.mxu0 0.0
  %422 = vmatprep.subr.mxu0 0.0
  %423 = vmatpush1.xpose.msra.mxu0 0.0
  %424 = vmatprep.subr.mxu0 0.0
  %425 = vmatpush1.xpose.msra.mxu0 0.0
  %426 = vmatprep.subr.mxu0 0.0
  %427 = vmatpush1.xpose.msra.mxu0 0.0
  %428 = vmatprep.subr.mxu0 0.0
  %429 = vmatpush1.xpose.msra.mxu0 0.0
  %430 = vmatprep.subr.mxu0 0.0
  %431 = vmatpush1.xpose.msra.mxu0 0.0
  %432 = vmatprep.subr.mxu0 0.0
  %433 = vmatpush1.xpose.msra.mxu0 0.0
  %434 = vmatprep.subr.mxu0 0.0
  %435 = vmatpush1.xpose.msra.mxu0 0.0
  %436 = vmatprep.mubr.f32.mxu0 0.0
  %437 = vmatmul.mubr.f32.gmra.mrb[0].mxu0 %v368
  %v438 = vpop.f32.mrb[0].mxu0
  %v439 = vadd.f32 %v195, %v438
  %v440 = vpop.f32.mrb[0].mxu0
  %441 = vdwg.mxu0
  %v442 = vsel %vm275, %v439, -inf
  %443 = vmax.xlane.f32.xlu0 %v442
  %v444 = vpop.xlane.xlu0 %443
  %v445 = vsub.f32 %v439, %v444
  %v446 = vmul.f32 %v445, 1.442695
  %v447 = vpow.pop %v446
  %v448 = vsel %vm275, %v447, 0.0
  %449 = vadd.xlane.f32.xlu0 %v448
  %v450 = vpop.xlane.xlu0 %449
  %v451 = vrcp.pop %v450
  %v452 = vmul.f32 %v447, %v451
  %453 = vrot.lane.b32.xlu0 %v190, 48
  %v454 = vpop.permute.xlu0 %453
  %v457 = vsel %vm275, %v452, 0
  %459 = vmatprep.subr.mxu0 0.0
  %460 = vmatpush1.msra.mxu0 %v454
  %461 = vmatprep.subr.mxu0 0.0
  %462 = vmatpush1.msra.mxu0 0.0
  %463 = vmatprep.subr.mxu0 0.0
  %464 = vmatpush1.msra.mxu0 0.0
  %465 = vmatprep.subr.mxu0 0.0
  %466 = vmatpush1.msra.mxu0 0.0
  %467 = vmatprep.subr.mxu0 0.0
  %468 = vmatpush1.msra.mxu0 0.0
  %469 = vmatprep.subr.mxu0 0.0
  %470 = vmatpush1.msra.mxu0 0.0
  %471 = vmatprep.subr.mxu0 0.0
  %472 = vmatpush1.msra.mxu0 0.0
  %473 = vmatprep.subr.mxu0 0.0
  %474 = vmatpush1.msra.mxu0 0.0
  %475 = vmatprep.subr.mxu0 0.0
  %476 = vmatpush1.msra.mxu0 0.0
  %477 = vmatprep.subr.mxu0 0.0
  %478 = vmatpush1.msra.mxu0 0.0
  %479 = vmatprep.subr.mxu0 0.0
  %480 = vmatpush1.msra.mxu0 0.0
  %481 = vmatprep.subr.mxu0 0.0
  %482 = vmatpush1.msra.mxu0 0.0
  %483 = vmatprep.subr.mxu0 0.0
  %484 = vmatpush1.msra.mxu0 0.0
  %485 = vmatprep.subr.mxu0 0.0
  %486 = vmatpush1.msra.mxu0 0.0
  %487 = vmatprep.subr.mxu0 0.0
  %488 = vmatpush1.msra.mxu0 0.0
  %489 = vmatprep.subr.mxu0 0.0
  %490 = vmatpush1.msra.mxu0 0.0
  %491 = vmatprep.subr.mxu0 0.0
  %492 = vmatpush1.msra.mxu0 0.0
  %493 = vmatprep.subr.mxu0 0.0
  %494 = vmatpush1.msra.mxu0 0.0
  %495 = vmatprep.subr.mxu0 0.0
  %496 = vmatpush1.msra.mxu0 0.0
  %497 = vmatprep.subr.mxu0 0.0
  %498 = vmatpush1.msra.mxu0 0.0
  %499 = vmatprep.subr.mxu0 0.0
  %500 = vmatpush1.msra.mxu0 0.0
  %501 = vmatprep.subr.mxu0 0.0
  %502 = vmatpush1.msra.mxu0 0.0
  %503 = vmatprep.subr.mxu0 0.0
  %504 = vmatpush1.msra.mxu0 0.0
  %505 = vmatprep.subr.mxu0 0.0
  %506 = vmatpush1.msra.mxu0 0.0
  %507 = vmatprep.subr.mxu0 0.0
  %508 = vmatpush1.msra.mxu0 0.0
  %509 = vmatprep.subr.mxu0 0.0
  %510 = vmatpush1.msra.mxu0 0.0
  %511 = vmatprep.subr.mxu0 0.0
  %512 = vmatpush1.msra.mxu0 0.0
  %513 = vmatprep.subr.mxu0 0.0
  %514 = vmatpush1.msra.mxu0 0.0
  %515 = vmatprep.subr.mxu0 0.0
  %516 = vmatpush1.msra.mxu0 0.0
  %517 = vmatprep.subr.mxu0 0.0
  %518 = vmatpush1.msra.mxu0 0.0
  %519 = vmatprep.subr.mxu0 0.0
  %520 = vmatpush1.msra.mxu0 0.0
  %521 = vmatprep.subr.mxu0 0.0
  %522 = vmatpush1.msra.mxu0 0.0
  %523 = vmatprep.mubr.f32.mxu0 0.0
  %524 = vmatmul.mubr.f32.gmra.mrb[0].mxu0 %v457
  %v525 = vpop.f32.mrb[0].mxu0
  %v526 = vadd.f32 0.0, %v525
  %v527 = vpop.f32.mrb[0].mxu0
  %528 = vdwg.mxu0
  %v529 = vpack.c.bf16 %v526, %v526
  %v532 = vunpack.c.l.b16 %v187
  %v533 = vunpack.c.l.b16 %v188
  %v534 = vpack.c.b16 %v533, %v532
  %v537 = vsel %vm199, %v529, 0
  %539 = vmatprep.subr.bf16.mxu0 0
  %540 = vmatpush1.bf16.msra.mxu0 %v534
  %541 = vmatprep.subr.bf16.mxu0 0
  %542 = vmatpush1.bf16.msra.mxu0 0
  %543 = vmatprep.subr.bf16.mxu0 0
  %544 = vmatpush1.bf16.msra.mxu0 0
  %545 = vmatprep.subr.bf16.mxu0 0
  %546 = vmatpush1.bf16.msra.mxu0 0
  %547 = vmatprep.subr.bf16.mxu0 0
  %548 = vmatpush1.bf16.msra.mxu0 0
  %549 = vmatprep.subr.bf16.mxu0 0
  %550 = vmatpush1.bf16.msra.mxu0 0
  %551 = vmatprep.subr.bf16.mxu0 0
  %552 = vmatpush1.bf16.msra.mxu0 0
  %553 = vmatprep.subr.bf16.mxu0 0
  %554 = vmatpush1.bf16.msra.mxu0 0
  %555 = vmatprep.subr.bf16.mxu0 0
  %556 = vmatpush1.bf16.msra.mxu0 0
  %557 = vmatprep.subr.bf16.mxu0 0
  %558 = vmatpush1.bf16.msra.mxu0 0
  %559 = vmatprep.subr.bf16.mxu0 0
  %560 = vmatpush1.bf16.msra.mxu0 0
  %561 = vmatprep.subr.bf16.mxu0 0
  %562 = vmatpush1.bf16.msra.mxu0 0
  %563 = vmatprep.subr.bf16.mxu0 0
  %564 = vmatpush1.bf16.msra.mxu0 0
  %565 = vmatprep.subr.bf16.mxu0 0
  %566 = vmatpush1.bf16.msra.mxu0 0
  %567 = vmatprep.subr.bf16.mxu0 0
  %568 = vmatpush1.bf16.msra.mxu0 0
  %569 = vmatprep.subr.bf16.mxu0 0
  %570 = vmatpush1.bf16.msra.mxu0 0
  %571 = vmatprep.mubr.bf16.mxu0 0
  %572 = vmatmul.mubr.bf16.gmra.mrb[0].mxu0 %v537
  %v573 = vpop.f32.mrb[0].mxu0
  %v574 = vadd.f32 0.0, %v573
  %v575 = vpop.f32.mrb[0].mxu0
  %v576 = vpop.f32.mrb[0].mxu0
  %v577 = vpop.f32.mrb[0].mxu0
  %578 = vdwg.mxu0
  %v581 = vunpack.c.l.b16 %v185
  %v582 = vunpack.c.l.b16 %v186
  %v583 = vpack.c.b16 %v582, %v581
  %v586 = vsel %vm199, %v363, 0
  %588 = vmatprep.subr.bf16.mxu0 0
  %589 = vmatpush1.bf16.msra.mxu0 %v583
  %590 = vmatprep.subr.bf16.mxu0 0
  %591 = vmatpush1.bf16.msra.mxu0 0
  %592 = vmatprep.subr.bf16.mxu0 0
  %593 = vmatpush1.bf16.msra.mxu0 0
  %594 = vmatprep.subr.bf16.mxu0 0
  %595 = vmatpush1.bf16.msra.mxu0 0
  %596 = vmatprep.subr.bf16.mxu0 0
  %597 = vmatpush1.bf16.msra.mxu0 0
  %598 = vmatprep.subr.bf16.mxu0 0
  %599 = vmatpush1.bf16.msra.mxu0 0
  %600 = vmatprep.subr.bf16.mxu0 0
  %601 = vmatpush1.bf16.msra.mxu0 0
  %602 = vmatprep.subr.bf16.mxu0 0
  %603 = vmatpush1.bf16.msra.mxu0 0
  %604 = vmatprep.subr.bf16.mxu0 0
  %605 = vmatpush1.bf16.msra.mxu0 0
  %606 = vmatprep.subr.bf16.mxu0 0
  %607 = vmatpush1.bf16.msra.mxu0 0
  %608 = vmatprep.subr.bf16.mxu0 0
  %609 = vmatpush1.bf16.msra.mxu0 0
  %610 = vmatprep.subr.bf16.mxu0 0
  %611 = vmatpush1.bf16.msra.mxu0 0
  %612 = vmatprep.subr.bf16.mxu0 0
  %613 = vmatpush1.bf16.msra.mxu0 0
  %614 = vmatprep.subr.bf16.mxu0 0
  %615 = vmatpush1.bf16.msra.mxu0 0
  %616 = vmatprep.subr.bf16.mxu0 0
  %617 = vmatpush1.bf16.msra.mxu0 0
  %618 = vmatprep.subr.bf16.mxu0 0
  %619 = vmatpush1.bf16.msra.mxu0 0
  %620 = vmatprep.mubr.bf16.mxu0 0
  %621 = vmatmul.mubr.bf16.gmra.mrb[0].mxu0 %v586
  %v622 = vpop.f32.mrb[0].mxu0
  %v623 = vadd.f32 %v574, %v622
  %v624 = vpop.f32.mrb[0].mxu0
  %v625 = vpop.f32.mrb[0].mxu0
  %v626 = vpop.f32.mrb[0].mxu0
  %627 = vdwg.mxu0
  %628 = vst.msk [vmem:[#allocation3] sm:$0xff] %vm70, %v623
  %v629 = vld [vmem:[%s1 + $0x1] sm:$0x1]
  %v630 = vld [vmem:[#allocation2 + $0x8] sm:$0xff]
  %v631 = vmul.f32 %v630, 0.25
  %v632 = vlaneseq
  %v633 = vshrl.u32 %v632, 7
  %v634 = vsub.s32 0, %v633
  %v635 = vrot.slane %v629, %v634
  %637 = vrot.lane.b32.xlu0 %v630, 96
  %v638 = vpop.permute.xlu0 %637
  %v640 = vsel %vm199, %v631, 0
  %v642 = vsel %vm199, %v638, 0
  %644 = vmatprep.subr.mxu0 0.0
  %645 = vmatpush1.xpose.msra.mxu0 %v642
  %646 = vmatprep.subr.mxu0 0.0
  %647 = vmatpush1.xpose.msra.mxu0 0.0
  %648 = vmatprep.subr.mxu0 0.0
  %649 = vmatpush1.xpose.msra.mxu0 0.0
  %650 = vmatprep.subr.mxu0 0.0
  %651 = vmatpush1.xpose.msra.mxu0 0.0
  %652 = vmatprep.subr.mxu0 0.0
  %653 = vmatpush1.xpose.msra.mxu0 0.0
  %654 = vmatprep.subr.mxu0 0.0
  %655 = vmatpush1.xpose.msra.mxu0 0.0
  %656 = vmatprep.subr.mxu0 0.0
  %657 = vmatpush1.xpose.msra.mxu0 0.0
  %658 = vmatprep.subr.mxu0 0.0
  %659 = vmatpush1.xpose.msra.mxu0 0.0
  %660 = vmatprep.subr.mxu0 0.0
  %661 = vmatpush1.xpose.msra.mxu0 0.0
  %662 = vmatprep.subr.mxu0 0.0
  %663 = vmatpush1.xpose.msra.mxu0 0.0
  %664 = vmatprep.subr.mxu0 0.0
  %665 = vmatpush1.xpose.msra.mxu0 0.0
  %666 = vmatprep.subr.mxu0 0.0
  %667 = vmatpush1.xpose.msra.mxu0 0.0
  %668 = vmatprep.subr.mxu0 0.0
  %669 = vmatpush1.xpose.msra.mxu0 0.0
  %670 = vmatprep.subr.mxu0 0.0
  %671 = vmatpush1.xpose.msra.mxu0 0.0
  %672 = vmatprep.subr.mxu0 0.0
  %673 = vmatpush1.xpose.msra.mxu0 0.0
  %674 = vmatprep.subr.mxu0 0.0
  %675 = vmatpush1.xpose.msra.mxu0 0.0
  %676 = vmatprep.subr.mxu0 0.0
  %677 = vmatpush1.xpose.msra.mxu0 0.0
  %678 = vmatprep.subr.mxu0 0.0
  %679 = vmatpush1.xpose.msra.mxu0 0.0
  %680 = vmatprep.subr.mxu0 0.0
  %681 = vmatpush1.xpose.msra.mxu0 0.0
  %682 = vmatprep.subr.mxu0 0.0
  %683 = vmatpush1.xpose.msra.mxu0 0.0
  %684 = vmatprep.subr.mxu0 0.0
  %685 = vmatpush1.xpose.msra.mxu0 0.0
  %686 = vmatprep.subr.mxu0 0.0
  %687 = vmatpush1.xpose.msra.mxu0 0.0
  %688 = vmatprep.subr.mxu0 0.0
  %689 = vmatpush1.xpose.msra.mxu0 0.0
  %690 = vmatprep.subr.mxu0 0.0
  %691 = vmatpush1.xpose.msra.mxu0 0.0
  %692 = vmatprep.subr.mxu0 0.0
  %693 = vmatpush1.xpose.msra.mxu0 0.0
  %694 = vmatprep.subr.mxu0 0.0
  %695 = vmatpush1.xpose.msra.mxu0 0.0
  %696 = vmatprep.subr.mxu0 0.0
  %697 = vmatpush1.xpose.msra.mxu0 0.0
  %698 = vmatprep.subr.mxu0 0.0
  %699 = vmatpush1.xpose.msra.mxu0 0.0
  %700 = vmatprep.subr.mxu0 0.0
  %701 = vmatpush1.xpose.msra.mxu0 0.0
  %702 = vmatprep.subr.mxu0 0.0
  %703 = vmatpush1.xpose.msra.mxu0 0.0
  %704 = vmatprep.subr.mxu0 0.0
  %705 = vmatpush1.xpose.msra.mxu0 0.0
  %706 = vmatprep.subr.mxu0 0.0
  %707 = vmatpush1.xpose.msra.mxu0 0.0
  %708 = vmatprep.mubr.f32.mxu0 0.0
  %709 = vmatmul.mubr.f32.gmra.mrb[0].mxu0 %v640
  %v710 = vpop.f32.mrb[0].mxu0
  %v711 = vadd.f32 %v635, %v710
  %v712 = vpop.f32.mrb[0].mxu0
  %713 = vdwg.mxu0
  %v714 = vsel %vm275, %v711, -inf
  %715 = vmax.xlane.f32.xlu0 %v714
  %v716 = vpop.xlane.xlu0 %715
  %v717 = vsub.f32 %v711, %v716
  %v718 = vmul.f32 %v717, 1.442695
  %v719 = vpow.pop %v718
  %v720 = vsel %vm275, %v719, 0.0
  %721 = vadd.xlane.f32.xlu0 %v720
  %v722 = vpop.xlane.xlu0 %721
  %v723 = vrcp.pop %v722
  %v724 = vmul.f32 %v719, %v723
  %725 = vrot.lane.b32.xlu0 %v630, 64
  %v726 = vpop.permute.xlu0 %725
  %v729 = vsel %vm275, %v724, 0
  %731 = vmatprep.subr.mxu0 0.0
  %732 = vmatpush1.msra.mxu0 %v726
  %733 = vmatprep.subr.mxu0 0.0
  %734 = vmatpush1.msra.mxu0 0.0
  %735 = vmatprep.subr.mxu0 0.0
  %736 = vmatpush1.msra.mxu0 0.0
  %737 = vmatprep.subr.mxu0 0.0
  %738 = vmatpush1.msra.mxu0 0.0
  %739 = vmatprep.subr.mxu0 0.0
  %740 = vmatpush1.msra.mxu0 0.0
  %741 = vmatprep.subr.mxu0 0.0
  %742 = vmatpush1.msra.mxu0 0.0
  %743 = vmatprep.subr.mxu0 0.0
  %744 = vmatpush1.msra.mxu0 0.0
  %745 = vmatprep.subr.mxu0 0.0
  %746 = vmatpush1.msra.mxu0 0.0
  %747 = vmatprep.subr.mxu0 0.0
  %748 = vmatpush1.msra.mxu0 0.0
  %749 = vmatprep.subr.mxu0 0.0
  %750 = vmatpush1.msra.mxu0 0.0
  %751 = vmatprep.subr.mxu0 0.0
  %752 = vmatpush1.msra.mxu0 0.0
  %753 = vmatprep.subr.mxu0 0.0
  %754 = vmatpush1.msra.mxu0 0.0
  %755 = vmatprep.subr.mxu0 0.0
  %756 = vmatpush1.msra.mxu0 0.0
  %757 = vmatprep.subr.mxu0 0.0
  %758 = vmatpush1.msra.mxu0 0.0
  %759 = vmatprep.subr.mxu0 0.0
  %760 = vmatpush1.msra.mxu0 0.0
  %761 = vmatprep.subr.mxu0 0.0
  %762 = vmatpush1.msra.mxu0 0.0
  %763 = vmatprep.subr.mxu0 0.0
  %764 = vmatpush1.msra.mxu0 0.0
  %765 = vmatprep.subr.mxu0 0.0
  %766 = vmatpush1.msra.mxu0 0.0
  %767 = vmatprep.subr.mxu0 0.0
  %768 = vmatpush1.msra.mxu0 0.0
  %769 = vmatprep.subr.mxu0 0.0
  %770 = vmatpush1.msra.mxu0 0.0
  %771 = vmatprep.subr.mxu0 0.0
  %772 = vmatpush1.msra.mxu0 0.0
  %773 = vmatprep.subr.mxu0 0.0
  %774 = vmatpush1.msra.mxu0 0.0
  %775 = vmatprep.subr.mxu0 0.0
  %776 = vmatpush1.msra.mxu0 0.0
  %777 = vmatprep.subr.mxu0 0.0
  %778 = vmatpush1.msra.mxu0 0.0
  %779 = vmatprep.subr.mxu0 0.0
  %780 = vmatpush1.msra.mxu0 0.0
  %781 = vmatprep.subr.mxu0 0.0
  %782 = vmatpush1.msra.mxu0 0.0
  %783 = vmatprep.subr.mxu0 0.0
  %784 = vmatpush1.msra.mxu0 0.0
  %785 = vmatprep.subr.mxu0 0.0
  %786 = vmatpush1.msra.mxu0 0.0
  %787 = vmatprep.subr.mxu0 0.0
  %788 = vmatpush1.msra.mxu0 0.0
  %789 = vmatprep.subr.mxu0 0.0
  %790 = vmatpush1.msra.mxu0 0.0
  %791 = vmatprep.subr.mxu0 0.0
  %792 = vmatpush1.msra.mxu0 0.0
  %793 = vmatprep.subr.mxu0 0.0
  %794 = vmatpush1.msra.mxu0 0.0
  %795 = vmatprep.mubr.f32.mxu0 0.0
  %796 = vmatmul.mubr.f32.gmra.mrb[0].mxu0 %v729
  %v797 = vpop.f32.mrb[0].mxu0
  %v798 = vadd.f32 0.0, %v797
  %v799 = vpop.f32.mrb[0].mxu0
  %800 = vdwg.mxu0
  %v801 = vpack.c.bf16 %v798, %v798
  %802 = vrot.lane.b32.xlu0 %v631, 112
  %v803 = vpop.permute.xlu0 %802
  %804 = vrot.lane.b32.xlu0 %v630, 80
  %v805 = vpop.permute.xlu0 %804
  %v806 = vsel %vm199, %v803, 0
  %v808 = vsel %vm199, %v805, 0
  %810 = vmatprep.subr.mxu0 0.0
  %811 = vmatpush1.xpose.msra.mxu0 %v808
  %812 = vmatprep.subr.mxu0 0.0
  %813 = vmatpush1.xpose.msra.mxu0 0.0
  %814 = vmatprep.subr.mxu0 0.0
  %815 = vmatpush1.xpose.msra.mxu0 0.0
  %816 = vmatprep.subr.mxu0 0.0
  %817 = vmatpush1.xpose.msra.mxu0 0.0
  %818 = vmatprep.subr.mxu0 0.0
  %819 = vmatpush1.xpose.msra.mxu0 0.0
  %820 = vmatprep.subr.mxu0 0.0
  %821 = vmatpush1.xpose.msra.mxu0 0.0
  %822 = vmatprep.subr.mxu0 0.0
  %823 = vmatpush1.xpose.msra.mxu0 0.0
  %824 = vmatprep.subr.mxu0 0.0
  %825 = vmatpush1.xpose.msra.mxu0 0.0
  %826 = vmatprep.subr.mxu0 0.0
  %827 = vmatpush1.xpose.msra.mxu0 0.0
  %828 = vmatprep.subr.mxu0 0.0
  %829 = vmatpush1.xpose.msra.mxu0 0.0
  %830 = vmatprep.subr.mxu0 0.0
  %831 = vmatpush1.xpose.msra.mxu0 0.0
  %832 = vmatprep.subr.mxu0 0.0
  %833 = vmatpush1.xpose.msra.mxu0 0.0
  %834 = vmatprep.subr.mxu0 0.0
  %835 = vmatpush1.xpose.msra.mxu0 0.0
  %836 = vmatprep.subr.mxu0 0.0
  %837 = vmatpush1.xpose.msra.mxu0 0.0
  %838 = vmatprep.subr.mxu0 0.0
  %839 = vmatpush1.xpose.msra.mxu0 0.0
  %840 = vmatprep.subr.mxu0 0.0
  %841 = vmatpush1.xpose.msra.mxu0 0.0
  %842 = vmatprep.subr.mxu0 0.0
  %843 = vmatpush1.xpose.msra.mxu0 0.0
  %844 = vmatprep.subr.mxu0 0.0
  %845 = vmatpush1.xpose.msra.mxu0 0.0
  %846 = vmatprep.subr.mxu0 0.0
  %847 = vmatpush1.xpose.msra.mxu0 0.0
  %848 = vmatprep.subr.mxu0 0.0
  %849 = vmatpush1.xpose.msra.mxu0 0.0
  %850 = vmatprep.subr.mxu0 0.0
  %851 = vmatpush1.xpose.msra.mxu0 0.0
  %852 = vmatprep.subr.mxu0 0.0
  %853 = vmatpush1.xpose.msra.mxu0 0.0
  %854 = vmatprep.subr.mxu0 0.0
  %855 = vmatpush1.xpose.msra.mxu0 0.0
  %856 = vmatprep.subr.mxu0 0.0
  %857 = vmatpush1.xpose.msra.mxu0 0.0
  %858 = vmatprep.subr.mxu0 0.0
  %859 = vmatpush1.xpose.msra.mxu0 0.0
  %860 = vmatprep.subr.mxu0 0.0
  %861 = vmatpush1.xpose.msra.mxu0 0.0
  %862 = vmatprep.subr.mxu0 0.0
  %863 = vmatpush1.xpose.msra.mxu0 0.0
  %864 = vmatprep.subr.mxu0 0.0
  %865 = vmatpush1.xpose.msra.mxu0 0.0
  %866 = vmatprep.subr.mxu0 0.0
  %867 = vmatpush1.xpose.msra.mxu0 0.0
  %868 = vmatprep.subr.mxu0 0.0
  %869 = vmatpush1.xpose.msra.mxu0 0.0
  %870 = vmatprep.subr.mxu0 0.0
  %871 = vmatpush1.xpose.msra.mxu0 0.0
  %872 = vmatprep.subr.mxu0 0.0
  %873 = vmatpush1.xpose.msra.mxu0 0.0
  %874 = vmatprep.mubr.f32.mxu0 0.0
  %875 = vmatmul.mubr.f32.gmra.mrb[0].mxu0 %v806
  %v876 = vpop.f32.mrb[0].mxu0
  %v877 = vadd.f32 %v635, %v876
  %v878 = vpop.f32.mrb[0].mxu0
  %879 = vdwg.mxu0
  %v880 = vsel %vm275, %v877, -inf
  %881 = vmax.xlane.f32.xlu0 %v880
  %v882 = vpop.xlane.xlu0 %881
  %v883 = vsub.f32 %v877, %v882
  %v884 = vmul.f32 %v883, 1.442695
  %v885 = vpow.pop %v884
  %v886 = vsel %vm275, %v885, 0.0
  %887 = vadd.xlane.f32.xlu0 %v886
  %v888 = vpop.xlane.xlu0 %887
  %v889 = vrcp.pop %v888
  %v890 = vmul.f32 %v885, %v889
  %891 = vrot.lane.b32.xlu0 %v630, 48
  %v892 = vpop.permute.xlu0 %891
  %v895 = vsel %vm275, %v890, 0
  %897 = vmatprep.subr.mxu0 0.0
  %898 = vmatpush1.msra.mxu0 %v892
  %899 = vmatprep.subr.mxu0 0.0
  %900 = vmatpush1.msra.mxu0 0.0
  %901 = vmatprep.subr.mxu0 0.0
  %902 = vmatpush1.msra.mxu0 0.0
  %903 = vmatprep.subr.mxu0 0.0
  %904 = vmatpush1.msra.mxu0 0.0
  %905 = vmatprep.subr.mxu0 0.0
  %906 = vmatpush1.msra.mxu0 0.0
  %907 = vmatprep.subr.mxu0 0.0
  %908 = vmatpush1.msra.mxu0 0.0
  %909 = vmatprep.subr.mxu0 0.0
  %910 = vmatpush1.msra.mxu0 0.0
  %911 = vmatprep.subr.mxu0 0.0
  %912 = vmatpush1.msra.mxu0 0.0
  %913 = vmatprep.subr.mxu0 0.0
  %914 = vmatpush1.msra.mxu0 0.0
  %915 = vmatprep.subr.mxu0 0.0
  %916 = vmatpush1.msra.mxu0 0.0
  %917 = vmatprep.subr.mxu0 0.0
  %918 = vmatpush1.msra.mxu0 0.0
  %919 = vmatprep.subr.mxu0 0.0
  %920 = vmatpush1.msra.mxu0 0.0
  %921 = vmatprep.subr.mxu0 0.0
  %922 = vmatpush1.msra.mxu0 0.0
  %923 = vmatprep.subr.mxu0 0.0
  %924 = vmatpush1.msra.mxu0 0.0
  %925 = vmatprep.subr.mxu0 0.0
  %926 = vmatpush1.msra.mxu0 0.0
  %927 = vmatprep.subr.mxu0 0.0
  %928 = vmatpush1.msra.mxu0 0.0
  %929 = vmatprep.subr.mxu0 0.0
  %930 = vmatpush1.msra.mxu0 0.0
  %931 = vmatprep.subr.mxu0 0.0
  %932 = vmatpush1.msra.mxu0 0.0
  %933 = vmatprep.subr.mxu0 0.0
  %934 = vmatpush1.msra.mxu0 0.0
  %935 = vmatprep.subr.mxu0 0.0
  %936 = vmatpush1.msra.mxu0 0.0
  %937 = vmatprep.subr.mxu0 0.0
  %938 = vmatpush1.msra.mxu0 0.0
  %939 = vmatprep.subr.mxu0 0.0
  %940 = vmatpush1.msra.mxu0 0.0
  %941 = vmatprep.subr.mxu0 0.0
  %942 = vmatpush1.msra.mxu0 0.0
  %943 = vmatprep.subr.mxu0 0.0
  %944 = vmatpush1.msra.mxu0 0.0
  %945 = vmatprep.subr.mxu0 0.0
  %946 = vmatpush1.msra.mxu0 0.0
  %947 = vmatprep.subr.mxu0 0.0
  %948 = vmatpush1.msra.mxu0 0.0
  %949 = vmatprep.subr.mxu0 0.0
  %950 = vmatpush1.msra.mxu0 0.0
  %951 = vmatprep.subr.mxu0 0.0
  %952 = vmatpush1.msra.mxu0 0.0
  %953 = vmatprep.subr.mxu0 0.0
  %954 = vmatpush1.msra.mxu0 0.0
  %955 = vmatprep.subr.mxu0 0.0
  %956 = vmatpush1.msra.mxu0 0.0
  %957 = vmatprep.subr.mxu0 0.0
  %958 = vmatpush1.msra.mxu0 0.0
  %959 = vmatprep.subr.mxu0 0.0
  %960 = vmatpush1.msra.mxu0 0.0
  %961 = vmatprep.mubr.f32.mxu0 0.0
  %962 = vmatmul.mubr.f32.gmra.mrb[0].mxu0 %v895
  %v963 = vpop.f32.mrb[0].mxu0
  %v964 = vadd.f32 0.0, %v963
  %v965 = vpop.f32.mrb[0].mxu0
  %966 = vdwg.mxu0
  %v967 = vpack.c.bf16 %v964, %v964
  %v969 = vsel %vm199, %v967, 0
  %971 = vmatprep.subr.bf16.mxu0 0
  %972 = vmatpush1.bf16.msra.mxu0 %v534
  %973 = vmatprep.subr.bf16.mxu0 0
  %974 = vmatpush1.bf16.msra.mxu0 0
  %975 = vmatprep.subr.bf16.mxu0 0
  %976 = vmatpush1.bf16.msra.mxu0 0
  %977 = vmatprep.subr.bf16.mxu0 0
  %978 = vmatpush1.bf16.msra.mxu0 0
  %979 = vmatprep.subr.bf16.mxu0 0
  %980 = vmatpush1.bf16.msra.mxu0 0
  %981 = vmatprep.subr.bf16.mxu0 0
  %982 = vmatpush1.bf16.msra.mxu0 0
  %983 = vmatprep.subr.bf16.mxu0 0
  %984 = vmatpush1.bf16.msra.mxu0 0
  %985 = vmatprep.subr.bf16.mxu0 0
  %986 = vmatpush1.bf16.msra.mxu0 0
  %987 = vmatprep.subr.bf16.mxu0 0
  %988 = vmatpush1.bf16.msra.mxu0 0
  %989 = vmatprep.subr.bf16.mxu0 0
  %990 = vmatpush1.bf16.msra.mxu0 0
  %991 = vmatprep.subr.bf16.mxu0 0
  %992 = vmatpush1.bf16.msra.mxu0 0
  %993 = vmatprep.subr.bf16.mxu0 0
  %994 = vmatpush1.bf16.msra.mxu0 0
  %995 = vmatprep.subr.bf16.mxu0 0
  %996 = vmatpush1.bf16.msra.mxu0 0
  %997 = vmatprep.subr.bf16.mxu0 0
  %998 = vmatpush1.bf16.msra.mxu0 0
  %999 = vmatprep.subr.bf16.mxu0 0
  %1000 = vmatpush1.bf16.msra.mxu0 0
  %1001 = vmatprep.subr.bf16.mxu0 0
  %1002 = vmatpush1.bf16.msra.mxu0 0
  %1003 = vmatprep.mubr.bf16.mxu0 0
  %1004 = vmatmul.mubr.bf16.gmra.mrb[0].mxu0 %v969
  %v1005 = vpop.f32.mrb[0].mxu0
  %v1006 = vadd.f32 0.0, %v1005
  %v1007 = vpop.f32.mrb[0].mxu0
  %v1008 = vpop.f32.mrb[0].mxu0
  %v1009 = vpop.f32.mrb[0].mxu0
  %1010 = vdwg.mxu0
  %v1012 = vsel %vm199, %v801, 0
  %1014 = vmatprep.subr.bf16.mxu0 0
  %1015 = vmatpush1.bf16.msra.mxu0 %v583
  %1016 = vmatprep.subr.bf16.mxu0 0
  %1017 = vmatpush1.bf16.msra.mxu0 0
  %1018 = vmatprep.subr.bf16.mxu0 0
  %1019 = vmatpush1.bf16.msra.mxu0 0
  %1020 = vmatprep.subr.bf16.mxu0 0
  %1021 = vmatpush1.bf16.msra.mxu0 0
  %1022 = vmatprep.subr.bf16.mxu0 0
  %1023 = vmatpush1.bf16.msra.mxu0 0
  %1024 = vmatprep.subr.bf16.mxu0 0
  %1025 = vmatpush1.bf16.msra.mxu0 0
  %1026 = vmatprep.subr.bf16.mxu0 0
  %1027 = vmatpush1.bf16.msra.mxu0 0
  %1028 = vmatprep.subr.bf16.mxu0 0
  %1029 = vmatpush1.bf16.msra.mxu0 0
  %1030 = vmatprep.subr.bf16.mxu0 0
  %1031 = vmatpush1.bf16.msra.mxu0 0
  %1032 = vmatprep.subr.bf16.mxu0 0
  %1033 = vmatpush1.bf16.msra.mxu0 0
  %1034 = vmatprep.subr.bf16.mxu0 0
  %1035 = vmatpush1.bf16.msra.mxu0 0
  %1036 = vmatprep.subr.bf16.mxu0 0
  %1037 = vmatpush1.bf16.msra.mxu0 0
  %1038 = vmatprep.subr.bf16.mxu0 0
  %1039 = vmatpush1.bf16.msra.mxu0 0
  %1040 = vmatprep.subr.bf16.mxu0 0
  %1041 = vmatpush1.bf16.msra.mxu0 0
  %1042 = vmatprep.subr.bf16.mxu0 0
  %1043 = vmatpush1.bf16.msra.mxu0 0
  %1044 = vmatprep.subr.bf16.mxu0 0
  %1045 = vmatpush1.bf16.msra.mxu0 0
  %1046 = vmatprep.mubr.bf16.mxu0 0
  %1047 = vmatmul.mubr.bf16.gmra.mrb[0].mxu0 %v1012
  %v1048 = vpop.f32.mrb[0].mxu0
  %v1049 = vadd.f32 %v1006, %v1048
  %v1050 = vpop.f32.mrb[0].mxu0
  %v1051 = vpop.f32.mrb[0].mxu0
  %v1052 = vpop.f32.mrb[0].mxu0
  %1053 = vdwg.mxu0
  %1054 = vst.msk [vmem:[#allocation3 + $0x8] sm:$0xff] %vm70, %v1049
  %v1055 = vld [vmem:[#allocation3] sm:$0xff]
  %v1056 = vld [vmem:[#allocation3 + $0x8] sm:$0xff]
  %v1057 = vld [vmem:[%s7] sm:$0x1]
  %v1059 = vlaneseq
  %v1060 = vshrl.u32 %v1059, 7
  %v1061 = vsub.s32 0, %v1060
  %v1062 = vrot.slane %v1057, %v1061
  %v1064 = vadd.f32 %v1055, %v1062
  %v1065 = vadd.f32 %v1056, %v1062
  %v1066 = vadd.f32 %v1064, %v112
  %v1067 = vadd.f32 %v1065, %v113
  %v1068 = vld [vmem:[%s8] sm:$0x1]
  %v1069 = vld [vmem:[%s9] sm:$0x1]
  %v1070 = vsel %vm70, %v1066, 0.0
  %1071 = vadd.xlane.f32.xlu0 %v1070
  %v1072 = vpop.xlane.xlu0 %1071
  %v1073 = vsel %vm70, %v1067, 0.0
  %1074 = vadd.xlane.f32.xlu0 %v1073
  %v1075 = vpop.xlane.xlu0 %1074
  %v1076 = vmul.f32 %v1072, %v77
  %v1077 = vmul.f32 %v1075, %v77
  %v1078 = vsub.f32 %v1066, %v1076
  %v1079 = vsub.f32 %v1067, %v1077
  %v1080 = vmul.f32 %v1078, %v1078
  %v1081 = vmul.f32 %v1079, %v1079
  %v1082 = vsel %vm70, %v1080, 0.0
  %1083 = vadd.xlane.f32.xlu0 %v1082
  %v1084 = vpop.xlane.xlu0 %1083
  %v1085 = vsel %vm70, %v1081, 0.0
  %1086 = vadd.xlane.f32.xlu0 %v1085
  %v1087 = vpop.xlane.xlu0 %1086
  %v1088 = vmul.f32 %v1084, %v77
  %v1089 = vmul.f32 %v1087, %v77
  %v1090 = vadd.f32 %v1088, 1e-12
  %v1091 = vadd.f32 %v1089, 1e-12
  %v1092 = vrsqrt.pop %v1090
  %v1093 = vrsqrt.pop %v1091
  %v1094 = vmul.f32 %v1078, %v1092
  %v1095 = vmul.f32 %v1079, %v1093
  %v1097 = vlaneseq
  %v1098 = vshrl.u32 %v1097, 7
  %v1099 = vsub.s32 0, %v1098
  %v1100 = vrot.slane %v1068, %v1099
  %v1102 = vmul.f32 %v1094, %v1100
  %v1103 = vmul.f32 %v1095, %v1100
  %v1105 = vlaneseq
  %v1106 = vshrl.u32 %v1105, 7
  %v1107 = vsub.s32 0, %v1106
  %v1108 = vrot.slane %v1069, %v1107
  %v1110 = vadd.f32 %v1102, %v1108
  %v1111 = vadd.f32 %v1103, %v1108
  %v1112 = vld [vmem:[%s10] sm:$0xf]
  %v1113 = vld [vmem:[%s10 + $0x4] sm:$0xf]
  %v1114 = vld [vmem:[%s10 + $0x8] sm:$0xf]
  %v1115 = vld [vmem:[%s10 + $0xc] sm:$0xf]
  %v1116 = vpack.c.bf16 %v1111, %v1110
  %v1117 = vld [vmem:[%s11] sm:$0x1]
  %v1119 = vlaneseq
  %v1120 = vshrl.u32 %v1119, 7
  %v1121 = vsub.s32 0, %v1120
  %v1122 = vrot.slane %v1117, %v1121
  %v1128 = vunpack.c.l.b16 %v1112
  %v1129 = vunpack.c.l.b16 %v1113
  %v1130 = vunpack.c.l.b16 %v1114
  %v1131 = vunpack.c.l.b16 %v1115
  %v1132 = vpack.c.b16 %v1129, %v1128
  %v1133 = vpack.c.b16 %v1131, %v1130
  %v1137 = vsel %vm70, %v1116, 0
  %1139 = vmatprep.subr.bf16.mxu0 0
  %1140 = vmatpush1.bf16.msra.mxu0 %v1132
  %1141 = vmatprep.subr.bf16.mxu0 0
  %1142 = vmatpush1.bf16.msra.mxu0 %v1133
  %1143 = vmatprep.subr.bf16.mxu0 0
  %1144 = vmatpush1.bf16.msra.mxu0 0
  %1145 = vmatprep.subr.bf16.mxu0 0
  %1146 = vmatpush1.bf16.msra.mxu0 0
  %1147 = vmatprep.subr.bf16.mxu0 0
  %1148 = vmatpush1.bf16.msra.mxu0 0
  %1149 = vmatprep.subr.bf16.mxu0 0
  %1150 = vmatpush1.bf16.msra.mxu0 0
  %1151 = vmatprep.subr.bf16.mxu0 0
  %1152 = vmatpush1.bf16.msra.mxu0 0
  %1153 = vmatprep.subr.bf16.mxu0 0
  %1154 = vmatpush1.bf16.msra.mxu0 0
  %1155 = vmatprep.subr.bf16.mxu0 0
  %1156 = vmatpush1.bf16.msra.mxu0 0
  %1157 = vmatprep.subr.bf16.mxu0 0
  %1158 = vmatpush1.bf16.msra.mxu0 0
  %1159 = vmatprep.subr.bf16.mxu0 0
  %1160 = vmatpush1.bf16.msra.mxu0 0
  %1161 = vmatprep.subr.bf16.mxu0 0
  %1162 = vmatpush1.bf16.msra.mxu0 0
  %1163 = vmatprep.subr.bf16.mxu0 0
  %1164 = vmatpush1.bf16.msra.mxu0 0
  %1165 = vmatprep.subr.bf16.mxu0 0
  %1166 = vmatpush1.bf16.msra.mxu0 0
  %1167 = vmatprep.subr.bf16.mxu0 0
  %1168 = vmatpush1.bf16.msra.mxu0 0
  %1169 = vmatprep.subr.bf16.mxu0 0
  %1170 = vmatpush1.bf16.msra.mxu0 0
  %1171 = vmatprep.mubr.bf16.mxu0 0
  %1172 = vmatmul.mubr.bf16.gmra.mrb[0].mxu0 %v1137
  %v1173 = vpop.f32.mrb[0].mxu0
  %v1174 = vadd.f32 %v1122, %v1173
  %v1175 = vpop.f32.mrb[0].mxu0
  %v1176 = vpop.f32.mrb[0].mxu0
  %v1177 = vadd.f32 %v1122, %v1176
  %v1178 = vpop.f32.mrb[0].mxu0
  %1179 = vdwg.mxu0
  %v1180 = vmul.f32 %v1174, 0.5
  %v1181 = vmul.f32 %v1177, 0.5
  %v1182 = vmul.f32 %v1174, 0.044715
  %v1183 = vmul.f32 %v1177, 0.044715
  %v1184 = vmul.f32 %v1182, %v1174
  %v1185 = vmul.f32 %v1183, %v1177
  %v1186 = vmul.f32 %v1184, %v1174
  %v1187 = vmul.f32 %v1185, %v1177
  %v1188 = vadd.f32 %v1174, %v1186
  %v1189 = vadd.f32 %v1177, %v1187
  %v1190 = vmul.f32 %v1188, 0.7978846
  %v1191 = vmul.f32 %v1189, 0.7978846
  %v1192 = vtanh.pop %v1190
  %v1193 = vtanh.pop %v1191
  %v1194 = vadd.f32 %v1192, 1.0
  %v1195 = vadd.f32 %v1193, 1.0
  %v1196 = vmul.f32 %v1180, %v1194
  %v1197 = vmul.f32 %v1181, %v1195
  %v1198 = vld [vmem:[%s12] sm:$0xf]
  %v1199 = vld [vmem:[%s12 + $0x4] sm:$0xf]
  %v1200 = vld [vmem:[%s12 + $0x8] sm:$0xf]
  %v1201 = vld [vmem:[%s12 + $0xc] sm:$0xf]
  %v1202 = vld [vmem:[%s12 + $0x10] sm:$0xf]
  %v1203 = vld [vmem:[%s12 + $0x14] sm:$0xf]
  %v1204 = vld [vmem:[%s12 + $0x18] sm:$0xf]
  %v1205 = vld [vmem:[%s12 + $0x1c] sm:$0xf]
  %v1206 = vpack.c.bf16 %v1197, %v1196
  %v1207 = vld [vmem:[%s13] sm:$0x1]
  %v1209 = vlaneseq
  %v1210 = vshrl.u32 %v1209, 7
  %v1211 = vsub.s32 0, %v1210
  %v1212 = vrot.slane %v1207, %v1211
  %v1222 = vunpack.c.l.b16 %v1198
  %v1223 = vunpack.c.l.b16 %v1199
  %v1224 = vunpack.c.l.b16 %v1200
  %v1225 = vunpack.c.l.b16 %v1201
  %v1226 = vunpack.c.l.b16 %v1202
  %v1227 = vunpack.c.l.b16 %v1203
  %v1228 = vunpack.c.l.b16 %v1204
  %v1229 = vunpack.c.l.b16 %v1205
  %v1230 = vpack.c.b16 %v1223, %v1222
  %v1231 = vpack.c.b16 %v1225, %v1224
  %v1232 = vpack.c.b16 %v1227, %v1226
  %v1233 = vpack.c.b16 %v1229, %v1228
  %vm1238 = vcmask 523264
  %v1240 = vsel %vm1238, %v1206, 0
  %1242 = vmatprep.subr.bf16.mxu0 0
  %1243 = vmatpush1.bf16.msra.mxu0 %v1230
  %1244 = vmatprep.subr.bf16.mxu0 0
  %1245 = vmatpush1.bf16.msra.mxu0 %v1231
  %1246 = vmatprep.subr.bf16.mxu0 0
  %1247 = vmatpush1.bf16.msra.mxu0 %v1232
  %1248 = vmatprep.subr.bf16.mxu0 0
  %1249 = vmatpush1.bf16.msra.mxu0 %v1233
  %1250 = vmatprep.subr.bf16.mxu0 0
  %1251 = vmatpush1.bf16.msra.mxu0 0
  %1252 = vmatprep.subr.bf16.mxu0 0
  %1253 = vmatpush1.bf16.msra.mxu0 0
  %1254 = vmatprep.subr.bf16.mxu0 0
  %1255 = vmatpush1.bf16.msra.mxu0 0
  %1256 = vmatprep.subr.bf16.mxu0 0
  %1257 = vmatpush1.bf16.msra.mxu0 0
  %1258 = vmatprep.subr.bf16.mxu0 0
  %1259 = vmatpush1.bf16.msra.mxu0 0
  %1260 = vmatprep.subr.bf16.mxu0 0
  %1261 = vmatpush1.bf16.msra.mxu0 0
  %1262 = vmatprep.subr.bf16.mxu0 0
  %1263 = vmatpush1.bf16.msra.mxu0 0
  %1264 = vmatprep.subr.bf16.mxu0 0
  %1265 = vmatpush1.bf16.msra.mxu0 0
  %1266 = vmatprep.subr.bf16.mxu0 0
  %1267 = vmatpush1.bf16.msra.mxu0 0
  %1268 = vmatprep.subr.bf16.mxu0 0
  %1269 = vmatpush1.bf16.msra.mxu0 0
  %1270 = vmatprep.subr.bf16.mxu0 0
  %1271 = vmatpush1.bf16.msra.mxu0 0
  %1272 = vmatprep.subr.bf16.mxu0 0
  %1273 = vmatpush1.bf16.msra.mxu0 0
  %1274 = vmatprep.mubr.bf16.mxu0 0
  %1275 = vmatmul.mubr.bf16.gmra.mrb[0].mxu0 %v1240
  %v1276 = vpop.f32.mrb[0].mxu0
  %v1277 = vadd.f32 %v1212, %v1276
  %v1278 = vpop.f32.mrb[0].mxu0
  %v1279 = vpop.f32.mrb[0].mxu0
  %v1280 = vadd.f32 %v1212, %v1279
  %v1281 = vpop.f32.mrb[0].mxu0
  %1282 = vdwg.mxu0
  %v1283 = vadd.f32 %v1277, %v1110
  %v1284 = vadd.f32 %v1280, %v1111
  %v1285 = vld [vmem:[%s14] sm:$0x1]
  %v1286 = vld [vmem:[%s15] sm:$0x1]
  %v1287 = vsel %vm70, %v1283, 0.0
  %1288 = vadd.xlane.f32.xlu0 %v1287
  %v1289 = vpop.xlane.xlu0 %1288
  %v1290 = vsel %vm70, %v1284, 0.0
  %1291 = vadd.xlane.f32.xlu0 %v1290
  %v1292 = vpop.xlane.xlu0 %1291
  %v1293 = vmul.f32 %v1289, %v77
  %v1294 = vmul.f32 %v1292, %v77
  %v1295 = vsub.f32 %v1283, %v1293
  %v1296 = vsub.f32 %v1284, %v1294
  %v1297 = vmul.f32 %v1295, %v1295
  %v1298 = vmul.f32 %v1296, %v1296
  %v1299 = vsel %vm70, %v1297, 0.0
  %1300 = vadd.xlane.f32.xlu0 %v1299
  %v1301 = vpop.xlane.xlu0 %1300
  %v1302 = vsel %vm70, %v1298, 0.0
  %1303 = vadd.xlane.f32.xlu0 %v1302
  %v1304 = vpop.xlane.xlu0 %1303
  %v1305 = vmul.f32 %v1301, %v77
  %v1306 = vmul.f32 %v1304, %v77
  %v1307 = vadd.f32 %v1305, 1e-12
  %v1308 = vadd.f32 %v1306, 1e-12
  %v1309 = vrsqrt.pop %v1307
  %v1310 = vrsqrt.pop %v1308
  %v1311 = vmul.f32 %v1295, %v1309
  %v1312 = vmul.f32 %v1296, %v1310
  %v1314 = vlaneseq
  %v1315 = vshrl.u32 %v1314, 7
  %v1316 = vsub.s32 0, %v1315
  %v1317 = vrot.slane %v1285, %v1316
  %v1319 = vmul.f32 %v1311, %v1317
  %v1320 = vmul.f32 %v1312, %v1317
  %v1322 = vlaneseq
  %v1323 = vshrl.u32 %v1322, 7
  %v1324 = vsub.s32 0, %v1323
  %v1325 = vrot.slane %v1286, %v1324
  %v1327 = vadd.f32 %v1319, %v1325
  %v1328 = vadd.f32 %v1320, %v1325
  %s1329 = scalar_lea.vmem %s4, 16
  %v1330 = vld [vmem:[%s1329] sm:$0xf]
  %v1331 = vld [vmem:[%s1329 + $0x4] sm:$0xf]
  %v1332 = vld [vmem:[%s1329 + $0x8] sm:$0xf]
  %v1333 = vld [vmem:[%s1329 + $0xc] sm:$0xf]
  %v1334 = vpack.c.bf16 %v1328, %v1327
  %s1335 = scalar_lea.vmem %s5, 1
  %v1336 = vld [vmem:[%s1335] sm:$0x1]
  %v1338 = vlaneseq
  %v1339 = vshrl.u32 %v1338, 7
  %v1340 = vsub.s32 0, %v1339
  %v1341 = vrot.slane %v1336, %v1340
  %v1347 = vunpack.c.l.b16 %v1330
  %v1348 = vunpack.c.l.b16 %v1331
  %v1349 = vunpack.c.l.b16 %v1332
  %v1350 = vunpack.c.l.b16 %v1333
  %v1351 = vpack.c.b16 %v1348, %v1347
  %v1352 = vpack.c.b16 %v1350, %v1349
  %v1356 = vsel %vm70, %v1334, 0
  %1358 = vmatprep.subr.bf16.mxu0 0
  %1359 = vmatpush1.bf16.msra.mxu0 %v1351
  %1360 = vmatprep.subr.bf16.mxu0 0
  %1361 = vmatpush1.bf16.msra.mxu0 %v1352
  %1362 = vmatprep.subr.bf16.mxu0 0
  %1363 = vmatpush1.bf16.msra.mxu0 0
  %1364 = vmatprep.subr.bf16.mxu0 0
  %1365 = vmatpush1.bf16.msra.mxu0 0
  %1366 = vmatprep.subr.bf16.mxu0 0
  %1367 = vmatpush1.bf16.msra.mxu0 0
  %1368 = vmatprep.subr.bf16.mxu0 0
  %1369 = vmatpush1.bf16.msra.mxu0 0
  %1370 = vmatprep.subr.bf16.mxu0 0
  %1371 = vmatpush1.bf16.msra.mxu0 0
  %1372 = vmatprep.subr.bf16.mxu0 0
  %1373 = vmatpush1.bf16.msra.mxu0 0
  %1374 = vmatprep.subr.bf16.mxu0 0
  %1375 = vmatpush1.bf16.msra.mxu0 0
  %1376 = vmatprep.subr.bf16.mxu0 0
  %1377 = vmatpush1.bf16.msra.mxu0 0
  %1378 = vmatprep.subr.bf16.mxu0 0
  %1379 = vmatpush1.bf16.msra.mxu0 0
  %1380 = vmatprep.subr.bf16.mxu0 0
  %1381 = vmatpush1.bf16.msra.mxu0 0
  %1382 = vmatprep.subr.bf16.mxu0 0
  %1383 = vmatpush1.bf16.msra.mxu0 0
  %1384 = vmatprep.subr.bf16.mxu0 0
  %1385 = vmatpush1.bf16.msra.mxu0 0
  %1386 = vmatprep.subr.bf16.mxu0 0
  %1387 = vmatpush1.bf16.msra.mxu0 0
  %1388 = vmatprep.subr.bf16.mxu0 0
  %1389 = vmatpush1.bf16.msra.mxu0 0
  %1390 = vmatprep.mubr.bf16.mxu0 0
  %1391 = vmatmul.mubr.bf16.gmra.mrb[0].mxu0 %v1356
  %v1392 = vpop.f32.mrb[0].mxu0
  %v1393 = vadd.f32 %v1341, %v1392
  %v1394 = vpop.f32.mrb[0].mxu0
  %v1395 = vpop.f32.mrb[0].mxu0
  %v1396 = vadd.f32 %v1341, %v1395
  %v1397 = vpop.f32.mrb[0].mxu0
  %1398 = vdwg.mxu0
  %1399 = vst.msk [vmem:[#allocation2] sm:$0xff] %vm182, %v1393
  %1400 = vst.msk [vmem:[#allocation2 + $0x8] sm:$0xff] %vm182, %v1396
  %s1401 = scalar_lea.vmem %s6, 16
  %v1402 = vld [vmem:[%s1401] sm:$0xf]
  %v1403 = vld [vmem:[%s1401 + $0x4] sm:$0xf]
  %v1404 = vld [vmem:[%s1401 + $0x8] sm:$0xf]
  %v1405 = vld [vmem:[%s1401 + $0xc] sm:$0xf]
  %v1406 = vld [vmem:[%s1] sm:$0x1]
  %v1407 = vld [vmem:[#allocation2] sm:$0xff]
  %v1408 = vmul.f32 %v1407, 0.25
  %v1409 = vlaneseq
  %v1410 = vshrl.u32 %v1409, 7
  %v1411 = vsub.s32 0, %v1410
  %v1412 = vrot.slane %v1406, %v1411
  %1414 = vrot.lane.b32.xlu0 %v1407, 96
  %v1415 = vpop.permute.xlu0 %1414
  %v1417 = vsel %vm199, %v1408, 0
  %v1419 = vsel %vm199, %v1415, 0
  %1421 = vmatprep.subr.mxu0 0.0
  %1422 = vmatpush1.xpose.msra.mxu0 %v1419
  %1423 = vmatprep.subr.mxu0 0.0
  %1424 = vmatpush1.xpose.msra.mxu0 0.0
  %1425 = vmatprep.subr.mxu0 0.0
  %1426 = vmatpush1.xpose.msra.mxu0 0.0
  %1427 = vmatprep.subr.mxu0 0.0
  %1428 = vmatpush1.xpose.msra.mxu0 0.0
  %1429 = vmatprep.subr.mxu0 0.0
  %1430 = vmatpush1.xpose.msra.mxu0 0.0
  %1431 = vmatprep.subr.mxu0 0.0
  %1432 = vmatpush1.xpose.msra.mxu0 0.0
  %1433 = vmatprep.subr.mxu0 0.0
  %1434 = vmatpush1.xpose.msra.mxu0 0.0
  %1435 = vmatprep.subr.mxu0 0.0
  %1436 = vmatpush1.xpose.msra.mxu0 0.0
  %1437 = vmatprep.subr.mxu0 0.0
  %1438 = vmatpush1.xpose.msra.mxu0 0.0
  %1439 = vmatprep.subr.mxu0 0.0
  %1440 = vmatpush1.xpose.msra.mxu0 0.0
  %1441 = vmatprep.subr.mxu0 0.0
  %1442 = vmatpush1.xpose.msra.mxu0 0.0
  %1443 = vmatprep.subr.mxu0 0.0
  %1444 = vmatpush1.xpose.msra.mxu0 0.0
  %1445 = vmatprep.subr.mxu0 0.0
  %1446 = vmatpush1.xpose.msra.mxu0 0.0
  %1447 = vmatprep.subr.mxu0 0.0
  %1448 = vmatpush1.xpose.msra.mxu0 0.0
  %1449 = vmatprep.subr.mxu0 0.0
  %1450 = vmatpush1.xpose.msra.mxu0 0.0
  %1451 = vmatprep.subr.mxu0 0.0
  %1452 = vmatpush1.xpose.msra.mxu0 0.0
  %1453 = vmatprep.subr.mxu0 0.0
  %1454 = vmatpush1.xpose.msra.mxu0 0.0
  %1455 = vmatprep.subr.mxu0 0.0
  %1456 = vmatpush1.xpose.msra.mxu0 0.0
  %1457 = vmatprep.subr.mxu0 0.0
  %1458 = vmatpush1.xpose.msra.mxu0 0.0
  %1459 = vmatprep.subr.mxu0 0.0
  %1460 = vmatpush1.xpose.msra.mxu0 0.0
  %1461 = vmatprep.subr.mxu0 0.0
  %1462 = vmatpush1.xpose.msra.mxu0 0.0
  %1463 = vmatprep.subr.mxu0 0.0
  %1464 = vmatpush1.xpose.msra.mxu0 0.0
  %1465 = vmatprep.subr.mxu0 0.0
  %1466 = vmatpush1.xpose.msra.mxu0 0.0
  %1467 = vmatprep.subr.mxu0 0.0
  %1468 = vmatpush1.xpose.msra.mxu0 0.0
  %1469 = vmatprep.subr.mxu0 0.0
  %1470 = vmatpush1.xpose.msra.mxu0 0.0
  %1471 = vmatprep.subr.mxu0 0.0
  %1472 = vmatpush1.xpose.msra.mxu0 0.0
  %1473 = vmatprep.subr.mxu0 0.0
  %1474 = vmatpush1.xpose.msra.mxu0 0.0
  %1475 = vmatprep.subr.mxu0 0.0
  %1476 = vmatpush1.xpose.msra.mxu0 0.0
  %1477 = vmatprep.subr.mxu0 0.0
  %1478 = vmatpush1.xpose.msra.mxu0 0.0
  %1479 = vmatprep.subr.mxu0 0.0
  %1480 = vmatpush1.xpose.msra.mxu0 0.0
  %1481 = vmatprep.subr.mxu0 0.0
  %1482 = vmatpush1.xpose.msra.mxu0 0.0
  %1483 = vmatprep.subr.mxu0 0.0
  %1484 = vmatpush1.xpose.msra.mxu0 0.0
  %1485 = vmatprep.mubr.f32.mxu0 0.0
  %1486 = vmatmul.mubr.f32.gmra.mrb[0].mxu0 %v1417
  %v1487 = vpop.f32.mrb[0].mxu0
  %v1488 = vadd.f32 %v1412, %v1487
  %v1489 = vpop.f32.mrb[0].mxu0
  %1490 = vdwg.mxu0
  %v1491 = vsel %vm275, %v1488, -inf
  %1492 = vmax.xlane.f32.xlu0 %v1491
  %v1493 = vpop.xlane.xlu0 %1492
  %v1494 = vsub.f32 %v1488, %v1493
  %v1495 = vmul.f32 %v1494, 1.442695
  %v1496 = vpow.pop %v1495
  %v1497 = vsel %vm275, %v1496, 0.0
  %1498 = vadd.xlane.f32.xlu0 %v1497
  %v1499 = vpop.xlane.xlu0 %1498
  %v1500 = vrcp.pop %v1499
  %v1501 = vmul.f32 %v1496, %v1500
  %1502 = vrot.lane.b32.xlu0 %v1407, 64
  %v1503 = vpop.permute.xlu0 %1502
  %v1506 = vsel %vm275, %v1501, 0
  %1508 = vmatprep.subr.mxu0 0.0
  %1509 = vmatpush1.msra.mxu0 %v1503
  %1510 = vmatprep.subr.mxu0 0.0
  %1511 = vmatpush1.msra.mxu0 0.0
  %1512 = vmatprep.subr.mxu0 0.0
  %1513 = vmatpush1.msra.mxu0 0.0
  %1514 = vmatprep.subr.mxu0 0.0
  %1515 = vmatpush1.msra.mxu0 0.0
  %1516 = vmatprep.subr.mxu0 0.0
  %1517 = vmatpush1.msra.mxu0 0.0
  %1518 = vmatprep.subr.mxu0 0.0
  %1519 = vmatpush1.msra.mxu0 0.0
  %1520 = vmatprep.subr.mxu0 0.0
  %1521 = vmatpush1.msra.mxu0 0.0
  %1522 = vmatprep.subr.mxu0 0.0
  %1523 = vmatpush1.msra.mxu0 0.0
  %1524 = vmatprep.subr.mxu0 0.0
  %1525 = vmatpush1.msra.mxu0 0.0
  %1526 = vmatprep.subr.mxu0 0.0
  %1527 = vmatpush1.msra.mxu0 0.0
  %1528 = vmatprep.subr.mxu0 0.0
  %1529 = vmatpush1.msra.mxu0 0.0
  %1530 = vmatprep.subr.mxu0 0.0
  %1531 = vmatpush1.msra.mxu0 0.0
  %1532 = vmatprep.subr.mxu0 0.0
  %1533 = vmatpush1.msra.mxu0 0.0
  %1534 = vmatprep.subr.mxu0 0.0
  %1535 = vmatpush1.msra.mxu0 0.0
  %1536 = vmatprep.subr.mxu0 0.0
  %1537 = vmatpush1.msra.mxu0 0.0
  %1538 = vmatprep.subr.mxu0 0.0
  %1539 = vmatpush1.msra.mxu0 0.0
  %1540 = vmatprep.subr.mxu0 0.0
  %1541 = vmatpush1.msra.mxu0 0.0
  %1542 = vmatprep.subr.mxu0 0.0
  %1543 = vmatpush1.msra.mxu0 0.0
  %1544 = vmatprep.subr.mxu0 0.0
  %1545 = vmatpush1.msra.mxu0 0.0
  %1546 = vmatprep.subr.mxu0 0.0
  %1547 = vmatpush1.msra.mxu0 0.0
  %1548 = vmatprep.subr.mxu0 0.0
  %1549 = vmatpush1.msra.mxu0 0.0
  %1550 = vmatprep.subr.mxu0 0.0
  %1551 = vmatpush1.msra.mxu0 0.0
  %1552 = vmatprep.subr.mxu0 0.0
  %1553 = vmatpush1.msra.mxu0 0.0
  %1554 = vmatprep.subr.mxu0 0.0
  %1555 = vmatpush1.msra.mxu0 0.0
  %1556 = vmatprep.subr.mxu0 0.0
  %1557 = vmatpush1.msra.mxu0 0.0
  %1558 = vmatprep.subr.mxu0 0.0
  %1559 = vmatpush1.msra.mxu0 0.0
  %1560 = vmatprep.subr.mxu0 0.0
  %1561 = vmatpush1.msra.mxu0 0.0
  %1562 = vmatprep.subr.mxu0 0.0
  %1563 = vmatpush1.msra.mxu0 0.0
  %1564 = vmatprep.subr.mxu0 0.0
  %1565 = vmatpush1.msra.mxu0 0.0
  %1566 = vmatprep.subr.mxu0 0.0
  %1567 = vmatpush1.msra.mxu0 0.0
  %1568 = vmatprep.subr.mxu0 0.0
  %1569 = vmatpush1.msra.mxu0 0.0
  %1570 = vmatprep.subr.mxu0 0.0
  %1571 = vmatpush1.msra.mxu0 0.0
  %1572 = vmatprep.mubr.f32.mxu0 0.0
  %1573 = vmatmul.mubr.f32.gmra.mrb[0].mxu0 %v1506
  %v1574 = vpop.f32.mrb[0].mxu0
  %v1575 = vadd.f32 0.0, %v1574
  %v1576 = vpop.f32.mrb[0].mxu0
  %1577 = vdwg.mxu0
  %v1578 = vpack.c.bf16 %v1575, %v1575
  %1579 = vrot.lane.b32.xlu0 %v1408, 112
  %v1580 = vpop.permute.xlu0 %1579
  %1581 = vrot.lane.b32.xlu0 %v1407, 80
  %v1582 = vpop.permute.xlu0 %1581
  %v1583 = vsel %vm199, %v1580, 0
  %v1585 = vsel %vm199, %v1582, 0
  %1587 = vmatprep.subr.mxu0 0.0
  %1588 = vmatpush1.xpose.msra.mxu0 %v1585
  %1589 = vmatprep.subr.mxu0 0.0
  %1590 = vmatpush1.xpose.msra.mxu0 0.0
  %1591 = vmatprep.subr.mxu0 0.0
  %1592 = vmatpush1.xpose.msra.mxu0 0.0
  %1593 = vmatprep.subr.mxu0 0.0
  %1594 = vmatpush1.xpose.msra.mxu0 0.0
  %1595 = vmatprep.subr.mxu0 0.0
  %1596 = vmatpush1.xpose.msra.mxu0 0.0
  %1597 = vmatprep.subr.mxu0 0.0
  %1598 = vmatpush1.xpose.msra.mxu0 0.0
  %1599 = vmatprep.subr.mxu0 0.0
  %1600 = vmatpush1.xpose.msra.mxu0 0.0
  %1601 = vmatprep.subr.mxu0 0.0
  %1602 = vmatpush1.xpose.msra.mxu0 0.0
  %1603 = vmatprep.subr.mxu0 0.0
  %1604 = vmatpush1.xpose.msra.mxu0 0.0
  %1605 = vmatprep.subr.mxu0 0.0
  %1606 = vmatpush1.xpose.msra.mxu0 0.0
  %1607 = vmatprep.subr.mxu0 0.0
  %1608 = vmatpush1.xpose.msra.mxu0 0.0
  %1609 = vmatprep.subr.mxu0 0.0
  %1610 = vmatpush1.xpose.msra.mxu0 0.0
  %1611 = vmatprep.subr.mxu0 0.0
  %1612 = vmatpush1.xpose.msra.mxu0 0.0
  %1613 = vmatprep.subr.mxu0 0.0
  %1614 = vmatpush1.xpose.msra.mxu0 0.0
  %1615 = vmatprep.subr.mxu0 0.0
  %1616 = vmatpush1.xpose.msra.mxu0 0.0
  %1617 = vmatprep.subr.mxu0 0.0
  %1618 = vmatpush1.xpose.msra.mxu0 0.0
  %1619 = vmatprep.subr.mxu0 0.0
  %1620 = vmatpush1.xpose.msra.mxu0 0.0
  %1621 = vmatprep.subr.mxu0 0.0
  %1622 = vmatpush1.xpose.msra.mxu0 0.0
  %1623 = vmatprep.subr.mxu0 0.0
  %1624 = vmatpush1.xpose.msra.mxu0 0.0
  %1625 = vmatprep.subr.mxu0 0.0
  %1626 = vmatpush1.xpose.msra.mxu0 0.0
  %1627 = vmatprep.subr.mxu0 0.0
  %1628 = vmatpush1.xpose.msra.mxu0 0.0
  %1629 = vmatprep.subr.mxu0 0.0
  %1630 = vmatpush1.xpose.msra.mxu0 0.0
  %1631 = vmatprep.subr.mxu0 0.0
  %1632 = vmatpush1.xpose.msra.mxu0 0.0
  %1633 = vmatprep.subr.mxu0 0.0
  %1634 = vmatpush1.xpose.msra.mxu0 0.0
  %1635 = vmatprep.subr.mxu0 0.0
  %1636 = vmatpush1.xpose.msra.mxu0 0.0
  %1637 = vmatprep.subr.mxu0 0.0
  %1638 = vmatpush1.xpose.msra.mxu0 0.0
  %1639 = vmatprep.subr.mxu0 0.0
  %1640 = vmatpush1.xpose.msra.mxu0 0.0
  %1641 = vmatprep.subr.mxu0 0.0
  %1642 = vmatpush1.xpose.msra.mxu0 0.0
  %1643 = vmatprep.subr.mxu0 0.0
  %1644 = vmatpush1.xpose.msra.mxu0 0.0
  %1645 = vmatprep.subr.mxu0 0.0
  %1646 = vmatpush1.xpose.msra.mxu0 0.0
  %1647 = vmatprep.subr.mxu0 0.0
  %1648 = vmatpush1.xpose.msra.mxu0 0.0
  %1649 = vmatprep.subr.mxu0 0.0
  %1650 = vmatpush1.xpose.msra.mxu0 0.0
  %1651 = vmatprep.mubr.f32.mxu0 0.0
  %1652 = vmatmul.mubr.f32.gmra.mrb[0].mxu0 %v1583
  %v1653 = vpop.f32.mrb[0].mxu0
  %v1654 = vadd.f32 %v1412, %v1653
  %v1655 = vpop.f32.mrb[0].mxu0
  %1656 = vdwg.mxu0
  %v1657 = vsel %vm275, %v1654, -inf
  %1658 = vmax.xlane.f32.xlu0 %v1657
  %v1659 = vpop.xlane.xlu0 %1658
  %v1660 = vsub.f32 %v1654, %v1659
  %v1661 = vmul.f32 %v1660, 1.442695
  %v1662 = vpow.pop %v1661
  %v1663 = vsel %vm275, %v1662, 0.0
  %1664 = vadd.xlane.f32.xlu0 %v1663
  %v1665 = vpop.xlane.xlu0 %1664
  %v1666 = vrcp.pop %v1665
  %v1667 = vmul.f32 %v1662, %v1666
  %1668 = vrot.lane.b32.xlu0 %v1407, 48
  %v1669 = vpop.permute.xlu0 %1668
  %v1672 = vsel %vm275, %v1667, 0
  %1674 = vmatprep.subr.mxu0 0.0
  %1675 = vmatpush1.msra.mxu0 %v1669
  %1676 = vmatprep.subr.mxu0 0.0
  %1677 = vmatpush1.msra.mxu0 0.0
  %1678 = vmatprep.subr.mxu0 0.0
  %1679 = vmatpush1.msra.mxu0 0.0
  %1680 = vmatprep.subr.mxu0 0.0
  %1681 = vmatpush1.msra.mxu0 0.0
  %1682 = vmatprep.subr.mxu0 0.0
  %1683 = vmatpush1.msra.mxu0 0.0
  %1684 = vmatprep.subr.mxu0 0.0
  %1685 = vmatpush1.msra.mxu0 0.0
  %1686 = vmatprep.subr.mxu0 0.0
  %1687 = vmatpush1.msra.mxu0 0.0
  %1688 = vmatprep.subr.mxu0 0.0
  %1689 = vmatpush1.msra.mxu0 0.0
  %1690 = vmatprep.subr.mxu0 0.0
  %1691 = vmatpush1.msra.mxu0 0.0
  %1692 = vmatprep.subr.mxu0 0.0
  %1693 = vmatpush1.msra.mxu0 0.0
  %1694 = vmatprep.subr.mxu0 0.0
  %1695 = vmatpush1.msra.mxu0 0.0
  %1696 = vmatprep.subr.mxu0 0.0
  %1697 = vmatpush1.msra.mxu0 0.0
  %1698 = vmatprep.subr.mxu0 0.0
  %1699 = vmatpush1.msra.mxu0 0.0
  %1700 = vmatprep.subr.mxu0 0.0
  %1701 = vmatpush1.msra.mxu0 0.0
  %1702 = vmatprep.subr.mxu0 0.0
  %1703 = vmatpush1.msra.mxu0 0.0
  %1704 = vmatprep.subr.mxu0 0.0
  %1705 = vmatpush1.msra.mxu0 0.0
  %1706 = vmatprep.subr.mxu0 0.0
  %1707 = vmatpush1.msra.mxu0 0.0
  %1708 = vmatprep.subr.mxu0 0.0
  %1709 = vmatpush1.msra.mxu0 0.0
  %1710 = vmatprep.subr.mxu0 0.0
  %1711 = vmatpush1.msra.mxu0 0.0
  %1712 = vmatprep.subr.mxu0 0.0
  %1713 = vmatpush1.msra.mxu0 0.0
  %1714 = vmatprep.subr.mxu0 0.0
  %1715 = vmatpush1.msra.mxu0 0.0
  %1716 = vmatprep.subr.mxu0 0.0
  %1717 = vmatpush1.msra.mxu0 0.0
  %1718 = vmatprep.subr.mxu0 0.0
  %1719 = vmatpush1.msra.mxu0 0.0
  %1720 = vmatprep.subr.mxu0 0.0
  %1721 = vmatpush1.msra.mxu0 0.0
  %1722 = vmatprep.subr.mxu0 0.0
  %1723 = vmatpush1.msra.mxu0 0.0
  %1724 = vmatprep.subr.mxu0 0.0
  %1725 = vmatpush1.msra.mxu0 0.0
  %1726 = vmatprep.subr.mxu0 0.0
  %1727 = vmatpush1.msra.mxu0 0.0
  %1728 = vmatprep.subr.mxu0 0.0
  %1729 = vmatpush1.msra.mxu0 0.0
  %1730 = vmatprep.subr.mxu0 0.0
  %1731 = vmatpush1.msra.mxu0 0.0
  %1732 = vmatprep.subr.mxu0 0.0
  %1733 = vmatpush1.msra.mxu0 0.0
  %1734 = vmatprep.subr.mxu0 0.0
  %1735 = vmatpush1.msra.mxu0 0.0
  %1736 = vmatprep.subr.mxu0 0.0
  %1737 = vmatpush1.msra.mxu0 0.0
  %1738 = vmatprep.mubr.f32.mxu0 0.0
  %1739 = vmatmul.mubr.f32.gmra.mrb[0].mxu0 %v1672
  %v1740 = vpop.f32.mrb[0].mxu0
  %v1741 = vadd.f32 0.0, %v1740
  %v1742 = vpop.f32.mrb[0].mxu0
  %1743 = vdwg.mxu0
  %v1744 = vpack.c.bf16 %v1741, %v1741
  %v1747 = vunpack.c.l.b16 %v1404
  %v1748 = vunpack.c.l.b16 %v1405
  %v1749 = vpack.c.b16 %v1748, %v1747
  %v1752 = vsel %vm199, %v1744, 0
  %1754 = vmatprep.subr.bf16.mxu0 0
  %1755 = vmatpush1.bf16.msra.mxu0 %v1749
  %1756 = vmatprep.subr.bf16.mxu0 0
  %1757 = vmatpush1.bf16.msra.mxu0 0
  %1758 = vmatprep.subr.bf16.mxu0 0
  %1759 = vmatpush1.bf16.msra.mxu0 0
  %1760 = vmatprep.subr.bf16.mxu0 0
  %1761 = vmatpush1.bf16.msra.mxu0 0
  %1762 = vmatprep.subr.bf16.mxu0 0
  %1763 = vmatpush1.bf16.msra.mxu0 0
  %1764 = vmatprep.subr.bf16.mxu0 0
  %1765 = vmatpush1.bf16.msra.mxu0 0
  %1766 = vmatprep.subr.bf16.mxu0 0
  %1767 = vmatpush1.bf16.msra.mxu0 0
  %1768 = vmatprep.subr.bf16.mxu0 0
  %1769 = vmatpush1.bf16.msra.mxu0 0
  %1770 = vmatprep.subr.bf16.mxu0 0
  %1771 = vmatpush1.bf16.msra.mxu0 0
  %1772 = vmatprep.subr.bf16.mxu0 0
  %1773 = vmatpush1.bf16.msra.mxu0 0
  %1774 = vmatprep.subr.bf16.mxu0 0
  %1775 = vmatpush1.bf16.msra.mxu0 0
  %1776 = vmatprep.subr.bf16.mxu0 0
  %1777 = vmatpush1.bf16.msra.mxu0 0
  %1778 = vmatprep.subr.bf16.mxu0 0
  %1779 = vmatpush1.bf16.msra.mxu0 0
  %1780 = vmatprep.subr.bf16.mxu0 0
  %1781 = vmatpush1.bf16.msra.mxu0 0
  %1782 = vmatprep.subr.bf16.mxu0 0
  %1783 = vmatpush1.bf16.msra.mxu0 0
  %1784 = vmatprep.subr.bf16.mxu0 0
  %1785 = vmatpush1.bf16.msra.mxu0 0
  %1786 = vmatprep.mubr.bf16.mxu0 0
  %1787 = vmatmul.mubr.bf16.gmra.mrb[0].mxu0 %v1752
  %v1788 = vpop.f32.mrb[0].mxu0
  %v1789 = vadd.f32 0.0, %v1788
  %v1790 = vpop.f32.mrb[0].mxu0
  %v1791 = vpop.f32.mrb[0].mxu0
  %v1792 = vpop.f32.mrb[0].mxu0
  %1793 = vdwg.mxu0
  %v1796 = vunpack.c.l.b16 %v1402
  %v1797 = vunpack.c.l.b16 %v1403
  %v1798 = vpack.c.b16 %v1797, %v1796
  %v1801 = vsel %vm199, %v1578, 0
  %1803 = vmatprep.subr.bf16.mxu0 0
  %1804 = vmatpush1.bf16.msra.mxu0 %v1798
  %1805 = vmatprep.subr.bf16.mxu0 0
  %1806 = vmatpush1.bf16.msra.mxu0 0
  %1807 = vmatprep.subr.bf16.mxu0 0
  %1808 = vmatpush1.bf16.msra.mxu0 0
  %1809 = vmatprep.subr.bf16.mxu0 0
  %1810 = vmatpush1.bf16.msra.mxu0 0
  %1811 = vmatprep.subr.bf16.mxu0 0
  %1812 = vmatpush1.bf16.msra.mxu0 0
  %1813 = vmatprep.subr.bf16.mxu0 0
  %1814 = vmatpush1.bf16.msra.mxu0 0
  %1815 = vmatprep.subr.bf16.mxu0 0
  %1816 = vmatpush1.bf16.msra.mxu0 0
  %1817 = vmatprep.subr.bf16.mxu0 0
  %1818 = vmatpush1.bf16.msra.mxu0 0
  %1819 = vmatprep.subr.bf16.mxu0 0
  %1820 = vmatpush1.bf16.msra.mxu0 0
  %1821 = vmatprep.subr.bf16.mxu0 0
  %1822 = vmatpush1.bf16.msra.mxu0 0
  %1823 = vmatprep.subr.bf16.mxu0 0
  %1824 = vmatpush1.bf16.msra.mxu0 0
  %1825 = vmatprep.subr.bf16.mxu0 0
  %1826 = vmatpush1.bf16.msra.mxu0 0
  %1827 = vmatprep.subr.bf16.mxu0 0
  %1828 = vmatpush1.bf16.msra.mxu0 0
  %1829 = vmatprep.subr.bf16.mxu0 0
  %1830 = vmatpush1.bf16.msra.mxu0 0
  %1831 = vmatprep.subr.bf16.mxu0 0
  %1832 = vmatpush1.bf16.msra.mxu0 0
  %1833 = vmatprep.subr.bf16.mxu0 0
  %1834 = vmatpush1.bf16.msra.mxu0 0
  %1835 = vmatprep.mubr.bf16.mxu0 0
  %1836 = vmatmul.mubr.bf16.gmra.mrb[0].mxu0 %v1801
  %v1837 = vpop.f32.mrb[0].mxu0
  %v1838 = vadd.f32 %v1789, %v1837
  %v1839 = vpop.f32.mrb[0].mxu0
  %v1840 = vpop.f32.mrb[0].mxu0
  %v1841 = vpop.f32.mrb[0].mxu0
  %1842 = vdwg.mxu0
  %1843 = vst.msk [vmem:[#allocation3] sm:$0xff] %vm70, %v1838
  %v1844 = vld [vmem:[%s1 + $0x1] sm:$0x1]
  %v1845 = vld [vmem:[#allocation2 + $0x8] sm:$0xff]
  %v1846 = vmul.f32 %v1845, 0.25
  %v1847 = vlaneseq
  %v1848 = vshrl.u32 %v1847, 7
  %v1849 = vsub.s32 0, %v1848
  %v1850 = vrot.slane %v1844, %v1849
  %1852 = vrot.lane.b32.xlu0 %v1845, 96
  %v1853 = vpop.permute.xlu0 %1852
  %v1855 = vsel %vm199, %v1846, 0
  %v1857 = vsel %vm199, %v1853, 0
  %1859 = vmatprep.subr.mxu0 0.0
  %1860 = vmatpush1.xpose.msra.mxu0 %v1857
  %1861 = vmatprep.subr.mxu0 0.0
  %1862 = vmatpush1.xpose.msra.mxu0 0.0
  %1863 = vmatprep.subr.mxu0 0.0
  %1864 = vmatpush1.xpose.msra.mxu0 0.0
  %1865 = vmatprep.subr.mxu0 0.0
  %1866 = vmatpush1.xpose.msra.mxu0 0.0
  %1867 = vmatprep.subr.mxu0 0.0
  %1868 = vmatpush1.xpose.msra.mxu0 0.0
  %1869 = vmatprep.subr.mxu0 0.0
  %1870 = vmatpush1.xpose.msra.mxu0 0.0
  %1871 = vmatprep.subr.mxu0 0.0
  %1872 = vmatpush1.xpose.msra.mxu0 0.0
  %1873 = vmatprep.subr.mxu0 0.0
  %1874 = vmatpush1.xpose.msra.mxu0 0.0
  %1875 = vmatprep.subr.mxu0 0.0
  %1876 = vmatpush1.xpose.msra.mxu0 0.0
  %1877 = vmatprep.subr.mxu0 0.0
  %1878 = vmatpush1.xpose.msra.mxu0 0.0
  %1879 = vmatprep.subr.mxu0 0.0
  %1880 = vmatpush1.xpose.msra.mxu0 0.0
  %1881 = vmatprep.subr.mxu0 0.0
  %1882 = vmatpush1.xpose.msra.mxu0 0.0
  %1883 = vmatprep.subr.mxu0 0.0
  %1884 = vmatpush1.xpose.msra.mxu0 0.0
  %1885 = vmatprep.subr.mxu0 0.0
  %1886 = vmatpush1.xpose.msra.mxu0 0.0
  %1887 = vmatprep.subr.mxu0 0.0
  %1888 = vmatpush1.xpose.msra.mxu0 0.0
  %1889 = vmatprep.subr.mxu0 0.0
  %1890 = vmatpush1.xpose.msra.mxu0 0.0
  %1891 = vmatprep.subr.mxu0 0.0
  %1892 = vmatpush1.xpose.msra.mxu0 0.0
  %1893 = vmatprep.subr.mxu0 0.0
  %1894 = vmatpush1.xpose.msra.mxu0 0.0
  %1895 = vmatprep.subr.mxu0 0.0
  %1896 = vmatpush1.xpose.msra.mxu0 0.0
  %1897 = vmatprep.subr.mxu0 0.0
  %1898 = vmatpush1.xpose.msra.mxu0 0.0
  %1899 = vmatprep.subr.mxu0 0.0
  %1900 = vmatpush1.xpose.msra.mxu0 0.0
  %1901 = vmatprep.subr.mxu0 0.0
  %1902 = vmatpush1.xpose.msra.mxu0 0.0
  %1903 = vmatprep.subr.mxu0 0.0
  %1904 = vmatpush1.xpose.msra.mxu0 0.0
  %1905 = vmatprep.subr.mxu0 0.0
  %1906 = vmatpush1.xpose.msra.mxu0 0.0
  %1907 = vmatprep.subr.mxu0 0.0
  %1908 = vmatpush1.xpose.msra.mxu0 0.0
  %1909 = vmatprep.subr.mxu0 0.0
  %1910 = vmatpush1.xpose.msra.mxu0 0.0
  %1911 = vmatprep.subr.mxu0 0.0
  %1912 = vmatpush1.xpose.msra.mxu0 0.0
  %1913 = vmatprep.subr.mxu0 0.0
  %1914 = vmatpush1.xpose.msra.mxu0 0.0
  %1915 = vmatprep.subr.mxu0 0.0
  %1916 = vmatpush1.xpose.msra.mxu0 0.0
  %1917 = vmatprep.subr.mxu0 0.0
  %1918 = vmatpush1.xpose.msra.mxu0 0.0
  %1919 = vmatprep.subr.mxu0 0.0
  %1920 = vmatpush1.xpose.msra.mxu0 0.0
  %1921 = vmatprep.subr.mxu0 0.0
  %1922 = vmatpush1.xpose.msra.mxu0 0.0
  %1923 = vmatprep.mubr.f32.mxu0 0.0
  %1924 = vmatmul.mubr.f32.gmra.mrb[0].mxu0 %v1855
  %v1925 = vpop.f32.mrb[0].mxu0
  %v1926 = vadd.f32 %v1850, %v1925
  %v1927 = vpop.f32.mrb[0].mxu0
  %1928 = vdwg.mxu0
  %v1929 = vsel %vm275, %v1926, -inf
  %1930 = vmax.xlane.f32.xlu0 %v1929
  %v1931 = vpop.xlane.xlu0 %1930
  %v1932 = vsub.f32 %v1926, %v1931
  %v1933 = vmul.f32 %v1932, 1.442695
  %v1934 = vpow.pop %v1933
  %v1935 = vsel %vm275, %v1934, 0.0
  %1936 = vadd.xlane.f32.xlu0 %v1935
  %v1937 = vpop.xlane.xlu0 %1936
  %v1938 = vrcp.pop %v1937
  %v1939 = vmul.f32 %v1934, %v1938
  %1940 = vrot.lane.b32.xlu0 %v1845, 64
  %v1941 = vpop.permute.xlu0 %1940
  %v1944 = vsel %vm275, %v1939, 0
  %1946 = vmatprep.subr.mxu0 0.0
  %1947 = vmatpush1.msra.mxu0 %v1941
  %1948 = vmatprep.subr.mxu0 0.0
  %1949 = vmatpush1.msra.mxu0 0.0
  %1950 = vmatprep.subr.mxu0 0.0
  %1951 = vmatpush1.msra.mxu0 0.0
  %1952 = vmatprep.subr.mxu0 0.0
  %1953 = vmatpush1.msra.mxu0 0.0
  %1954 = vmatprep.subr.mxu0 0.0
  %1955 = vmatpush1.msra.mxu0 0.0
  %1956 = vmatprep.subr.mxu0 0.0
  %1957 = vmatpush1.msra.mxu0 0.0
  %1958 = vmatprep.subr.mxu0 0.0
  %1959 = vmatpush1.msra.mxu0 0.0
  %1960 = vmatprep.subr.mxu0 0.0
  %1961 = vmatpush1.msra.mxu0 0.0
  %1962 = vmatprep.subr.mxu0 0.0
  %1963 = vmatpush1.msra.mxu0 0.0
  %1964 = vmatprep.subr.mxu0 0.0
  %1965 = vmatpush1.msra.mxu0 0.0
  %1966 = vmatprep.subr.mxu0 0.0
  %1967 = vmatpush1.msra.mxu0 0.0
  %1968 = vmatprep.subr.mxu0 0.0
  %1969 = vmatpush1.msra.mxu0 0.0
  %1970 = vmatprep.subr.mxu0 0.0
  %1971 = vmatpush1.msra.mxu0 0.0
  %1972 = vmatprep.subr.mxu0 0.0
  %1973 = vmatpush1.msra.mxu0 0.0
  %1974 = vmatprep.subr.mxu0 0.0
  %1975 = vmatpush1.msra.mxu0 0.0
  %1976 = vmatprep.subr.mxu0 0.0
  %1977 = vmatpush1.msra.mxu0 0.0
  %1978 = vmatprep.subr.mxu0 0.0
  %1979 = vmatpush1.msra.mxu0 0.0
  %1980 = vmatprep.subr.mxu0 0.0
  %1981 = vmatpush1.msra.mxu0 0.0
  %1982 = vmatprep.subr.mxu0 0.0
  %1983 = vmatpush1.msra.mxu0 0.0
  %1984 = vmatprep.subr.mxu0 0.0
  %1985 = vmatpush1.msra.mxu0 0.0
  %1986 = vmatprep.subr.mxu0 0.0
  %1987 = vmatpush1.msra.mxu0 0.0
  %1988 = vmatprep.subr.mxu0 0.0
  %1989 = vmatpush1.msra.mxu0 0.0
  %1990 = vmatprep.subr.mxu0 0.0
  %1991 = vmatpush1.msra.mxu0 0.0
  %1992 = vmatprep.subr.mxu0 0.0
  %1993 = vmatpush1.msra.mxu0 0.0
  %1994 = vmatprep.subr.mxu0 0.0
  %1995 = vmatpush1.msra.mxu0 0.0
  %1996 = vmatprep.subr.mxu0 0.0
  %1997 = vmatpush1.msra.mxu0 0.0
  %1998 = vmatprep.subr.mxu0 0.0
  %1999 = vmatpush1.msra.mxu0 0.0
  %2000 = vmatprep.subr.mxu0 0.0
  %2001 = vmatpush1.msra.mxu0 0.0
  %2002 = vmatprep.subr.mxu0 0.0
  %2003 = vmatpush1.msra.mxu0 0.0
  %2004 = vmatprep.subr.mxu0 0.0
  %2005 = vmatpush1.msra.mxu0 0.0
  %2006 = vmatprep.subr.mxu0 0.0
  %2007 = vmatpush1.msra.mxu0 0.0
  %2008 = vmatprep.subr.mxu0 0.0
  %2009 = vmatpush1.msra.mxu0 0.0
  %2010 = vmatprep.mubr.f32.mxu0 0.0
  %2011 = vmatmul.mubr.f32.gmra.mrb[0].mxu0 %v1944
  %v2012 = vpop.f32.mrb[0].mxu0
  %v2013 = vadd.f32 0.0, %v2012
  %v2014 = vpop.f32.mrb[0].mxu0
  %2015 = vdwg.mxu0
  %v2016 = vpack.c.bf16 %v2013, %v2013
  %2017 = vrot.lane.b32.xlu0 %v1846, 112
  %v2018 = vpop.permute.xlu0 %2017
  %2019 = vrot.lane.b32.xlu0 %v1845, 80
  %v2020 = vpop.permute.xlu0 %2019
  %v2021 = vsel %vm199, %v2018, 0
  %v2023 = vsel %vm199, %v2020, 0
  %2025 = vmatprep.subr.mxu0 0.0
  %2026 = vmatpush1.xpose.msra.mxu0 %v2023
  %2027 = vmatprep.subr.mxu0 0.0
  %2028 = vmatpush1.xpose.msra.mxu0 0.0
  %2029 = vmatprep.subr.mxu0 0.0
  %2030 = vmatpush1.xpose.msra.mxu0 0.0
  %2031 = vmatprep.subr.mxu0 0.0
  %2032 = vmatpush1.xpose.msra.mxu0 0.0
  %2033 = vmatprep.subr.mxu0 0.0
  %2034 = vmatpush1.xpose.msra.mxu0 0.0
  %2035 = vmatprep.subr.mxu0 0.0
  %2036 = vmatpush1.xpose.msra.mxu0 0.0
  %2037 = vmatprep.subr.mxu0 0.0
  %2038 = vmatpush1.xpose.msra.mxu0 0.0
  %2039 = vmatprep.subr.mxu0 0.0
  %2040 = vmatpush1.xpose.msra.mxu0 0.0
  %2041 = vmatprep.subr.mxu0 0.0
  %2042 = vmatpush1.xpose.msra.mxu0 0.0
  %2043 = vmatprep.subr.mxu0 0.0
  %2044 = vmatpush1.xpose.msra.mxu0 0.0
  %2045 = vmatprep.subr.mxu0 0.0
  %2046 = vmatpush1.xpose.msra.mxu0 0.0
  %2047 = vmatprep.subr.mxu0 0.0
  %2048 = vmatpush1.xpose.msra.mxu0 0.0
  %2049 = vmatprep.subr.mxu0 0.0
  %2050 = vmatpush1.xpose.msra.mxu0 0.0
  %2051 = vmatprep.subr.mxu0 0.0
  %2052 = vmatpush1.xpose.msra.mxu0 0.0
  %2053 = vmatprep.subr.mxu0 0.0
  %2054 = vmatpush1.xpose.msra.mxu0 0.0
  %2055 = vmatprep.subr.mxu0 0.0
  %2056 = vmatpush1.xpose.msra.mxu0 0.0
  %2057 = vmatprep.subr.mxu0 0.0
  %2058 = vmatpush1.xpose.msra.mxu0 0.0
  %2059 = vmatprep.subr.mxu0 0.0
  %2060 = vmatpush1.xpose.msra.mxu0 0.0
  %2061 = vmatprep.subr.mxu0 0.0
  %2062 = vmatpush1.xpose.msra.mxu0 0.0
  %2063 = vmatprep.subr.mxu0 0.0
  %2064 = vmatpush1.xpose.msra.mxu0 0.0
  %2065 = vmatprep.subr.mxu0 0.0
  %2066 = vmatpush1.xpose.msra.mxu0 0.0
  %2067 = vmatprep.subr.mxu0 0.0
  %2068 = vmatpush1.xpose.msra.mxu0 0.0
  %2069 = vmatprep.subr.mxu0 0.0
  %2070 = vmatpush1.xpose.msra.mxu0 0.0
  %2071 = vmatprep.subr.mxu0 0.0
  %2072 = vmatpush1.xpose.msra.mxu0 0.0
  %2073 = vmatprep.subr.mxu0 0.0
  %2074 = vmatpush1.xpose.msra.mxu0 0.0
  %2075 = vmatprep.subr.mxu0 0.0
  %2076 = vmatpush1.xpose.msra.mxu0 0.0
  %2077 = vmatprep.subr.mxu0 0.0
  %2078 = vmatpush1.xpose.msra.mxu0 0.0
  %2079 = vmatprep.subr.mxu0 0.0
  %2080 = vmatpush1.xpose.msra.mxu0 0.0
  %2081 = vmatprep.subr.mxu0 0.0
  %2082 = vmatpush1.xpose.msra.mxu0 0.0
  %2083 = vmatprep.subr.mxu0 0.0
  %2084 = vmatpush1.xpose.msra.mxu0 0.0
  %2085 = vmatprep.subr.mxu0 0.0
  %2086 = vmatpush1.xpose.msra.mxu0 0.0
  %2087 = vmatprep.subr.mxu0 0.0
  %2088 = vmatpush1.xpose.msra.mxu0 0.0
  %2089 = vmatprep.mubr.f32.mxu0 0.0
  %2090 = vmatmul.mubr.f32.gmra.mrb[0].mxu0 %v2021
  %v2091 = vpop.f32.mrb[0].mxu0
  %v2092 = vadd.f32 %v1850, %v2091
  %v2093 = vpop.f32.mrb[0].mxu0
  %2094 = vdwg.mxu0
  %v2095 = vsel %vm275, %v2092, -inf
  %2096 = vmax.xlane.f32.xlu0 %v2095
  %v2097 = vpop.xlane.xlu0 %2096
  %v2098 = vsub.f32 %v2092, %v2097
  %v2099 = vmul.f32 %v2098, 1.442695
  %v2100 = vpow.pop %v2099
  %v2101 = vsel %vm275, %v2100, 0.0
  %2102 = vadd.xlane.f32.xlu0 %v2101
  %v2103 = vpop.xlane.xlu0 %2102
  %v2104 = vrcp.pop %v2103
  %v2105 = vmul.f32 %v2100, %v2104
  %2106 = vrot.lane.b32.xlu0 %v1845, 48
  %v2107 = vpop.permute.xlu0 %2106
  %v2110 = vsel %vm275, %v2105, 0
  %2112 = vmatprep.subr.mxu0 0.0
  %2113 = vmatpush1.msra.mxu0 %v2107
  %2114 = vmatprep.subr.mxu0 0.0
  %2115 = vmatpush1.msra.mxu0 0.0
  %2116 = vmatprep.subr.mxu0 0.0
  %2117 = vmatpush1.msra.mxu0 0.0
  %2118 = vmatprep.subr.mxu0 0.0
  %2119 = vmatpush1.msra.mxu0 0.0
  %2120 = vmatprep.subr.mxu0 0.0
  %2121 = vmatpush1.msra.mxu0 0.0
  %2122 = vmatprep.subr.mxu0 0.0
  %2123 = vmatpush1.msra.mxu0 0.0
  %2124 = vmatprep.subr.mxu0 0.0
  %2125 = vmatpush1.msra.mxu0 0.0
  %2126 = vmatprep.subr.mxu0 0.0
  %2127 = vmatpush1.msra.mxu0 0.0
  %2128 = vmatprep.subr.mxu0 0.0
  %2129 = vmatpush1.msra.mxu0 0.0
  %2130 = vmatprep.subr.mxu0 0.0
  %2131 = vmatpush1.msra.mxu0 0.0
  %2132 = vmatprep.subr.mxu0 0.0
  %2133 = vmatpush1.msra.mxu0 0.0
  %2134 = vmatprep.subr.mxu0 0.0
  %2135 = vmatpush1.msra.mxu0 0.0
  %2136 = vmatprep.subr.mxu0 0.0
  %2137 = vmatpush1.msra.mxu0 0.0
  %2138 = vmatprep.subr.mxu0 0.0
  %2139 = vmatpush1.msra.mxu0 0.0
  %2140 = vmatprep.subr.mxu0 0.0
  %2141 = vmatpush1.msra.mxu0 0.0
  %2142 = vmatprep.subr.mxu0 0.0
  %2143 = vmatpush1.msra.mxu0 0.0
  %2144 = vmatprep.subr.mxu0 0.0
  %2145 = vmatpush1.msra.mxu0 0.0
  %2146 = vmatprep.subr.mxu0 0.0
  %2147 = vmatpush1.msra.mxu0 0.0
  %2148 = vmatprep.subr.mxu0 0.0
  %2149 = vmatpush1.msra.mxu0 0.0
  %2150 = vmatprep.subr.mxu0 0.0
  %2151 = vmatpush1.msra.mxu0 0.0
  %2152 = vmatprep.subr.mxu0 0.0
  %2153 = vmatpush1.msra.mxu0 0.0
  %2154 = vmatprep.subr.mxu0 0.0
  %2155 = vmatpush1.msra.mxu0 0.0
  %2156 = vmatprep.subr.mxu0 0.0
  %2157 = vmatpush1.msra.mxu0 0.0
  %2158 = vmatprep.subr.mxu0 0.0
  %2159 = vmatpush1.msra.mxu0 0.0
  %2160 = vmatprep.subr.mxu0 0.0
  %2161 = vmatpush1.msra.mxu0 0.0
  %2162 = vmatprep.subr.mxu0 0.0
  %2163 = vmatpush1.msra.mxu0 0.0
  %2164 = vmatprep.subr.mxu0 0.0
  %2165 = vmatpush1.msra.mxu0 0.0
  %2166 = vmatprep.subr.mxu0 0.0
  %2167 = vmatpush1.msra.mxu0 0.0
  %2168 = vmatprep.subr.mxu0 0.0
  %2169 = vmatpush1.msra.mxu0 0.0
  %2170 = vmatprep.subr.mxu0 0.0
  %2171 = vmatpush1.msra.mxu0 0.0
  %2172 = vmatprep.subr.mxu0 0.0
  %2173 = vmatpush1.msra.mxu0 0.0
  %2174 = vmatprep.subr.mxu0 0.0
  %2175 = vmatpush1.msra.mxu0 0.0
  %2176 = vmatprep.mubr.f32.mxu0 0.0
  %2177 = vmatmul.mubr.f32.gmra.mrb[0].mxu0 %v2110
  %v2178 = vpop.f32.mrb[0].mxu0
  %v2179 = vadd.f32 0.0, %v2178
  %v2180 = vpop.f32.mrb[0].mxu0
  %2181 = vdwg.mxu0
  %v2182 = vpack.c.bf16 %v2179, %v2179
  %v2184 = vsel %vm199, %v2182, 0
  %2186 = vmatprep.subr.bf16.mxu0 0
  %2187 = vmatpush1.bf16.msra.mxu0 %v1749
  %2188 = vmatprep.subr.bf16.mxu0 0
  %2189 = vmatpush1.bf16.msra.mxu0 0
  %2190 = vmatprep.subr.bf16.mxu0 0
  %2191 = vmatpush1.bf16.msra.mxu0 0
  %2192 = vmatprep.subr.bf16.mxu0 0
  %2193 = vmatpush1.bf16.msra.mxu0 0
  %2194 = vmatprep.subr.bf16.mxu0 0
  %2195 = vmatpush1.bf16.msra.mxu0 0
  %2196 = vmatprep.subr.bf16.mxu0 0
  %2197 = vmatpush1.bf16.msra.mxu0 0
  %2198 = vmatprep.subr.bf16.mxu0 0
  %2199 = vmatpush1.bf16.msra.mxu0 0
  %2200 = vmatprep.subr.bf16.mxu0 0
  %2201 = vmatpush1.bf16.msra.mxu0 0
  %2202 = vmatprep.subr.bf16.mxu0 0
  %2203 = vmatpush1.bf16.msra.mxu0 0
  %2204 = vmatprep.subr.bf16.mxu0 0
  %2205 = vmatpush1.bf16.msra.mxu0 0
  %2206 = vmatprep.subr.bf16.mxu0 0
  %2207 = vmatpush1.bf16.msra.mxu0 0
  %2208 = vmatprep.subr.bf16.mxu0 0
  %2209 = vmatpush1.bf16.msra.mxu0 0
  %2210 = vmatprep.subr.bf16.mxu0 0
  %2211 = vmatpush1.bf16.msra.mxu0 0
  %2212 = vmatprep.subr.bf16.mxu0 0
  %2213 = vmatpush1.bf16.msra.mxu0 0
  %2214 = vmatprep.subr.bf16.mxu0 0
  %2215 = vmatpush1.bf16.msra.mxu0 0
  %2216 = vmatprep.subr.bf16.mxu0 0
  %2217 = vmatpush1.bf16.msra.mxu0 0
  %2218 = vmatprep.mubr.bf16.mxu0 0
  %2219 = vmatmul.mubr.bf16.gmra.mrb[0].mxu0 %v2184
  %v2220 = vpop.f32.mrb[0].mxu0
  %v2221 = vadd.f32 0.0, %v2220
  %v2222 = vpop.f32.mrb[0].mxu0
  %v2223 = vpop.f32.mrb[0].mxu0
  %v2224 = vpop.f32.mrb[0].mxu0
  %2225 = vdwg.mxu0
  %v2227 = vsel %vm199, %v2016, 0
  %2229 = vmatprep.subr.bf16.mxu0 0
  %2230 = vmatpush1.bf16.msra.mxu0 %v1798
  %2231 = vmatprep.subr.bf16.mxu0 0
  %2232 = vmatpush1.bf16.msra.mxu0 0
  %2233 = vmatprep.subr.bf16.mxu0 0
  %2234 = vmatpush1.bf16.msra.mxu0 0
  %2235 = vmatprep.subr.bf16.mxu0 0
  %2236 = vmatpush1.bf16.msra.mxu0 0
  %2237 = vmatprep.subr.bf16.mxu0 0
  %2238 = vmatpush1.bf16.msra.mxu0 0
  %2239 = vmatprep.subr.bf16.mxu0 0
  %2240 = vmatpush1.bf16.msra.mxu0 0
  %2241 = vmatprep.subr.bf16.mxu0 0
  %2242 = vmatpush1.bf16.msra.mxu0 0
  %2243 = vmatprep.subr.bf16.mxu0 0
  %2244 = vmatpush1.bf16.msra.mxu0 0
  %2245 = vmatprep.subr.bf16.mxu0 0
  %2246 = vmatpush1.bf16.msra.mxu0 0
  %2247 = vmatprep.subr.bf16.mxu0 0
  %2248 = vmatpush1.bf16.msra.mxu0 0
  %2249 = vmatprep.subr.bf16.mxu0 0
  %2250 = vmatpush1.bf16.msra.mxu0 0
  %2251 = vmatprep.subr.bf16.mxu0 0
  %2252 = vmatpush1.bf16.msra.mxu0 0
  %2253 = vmatprep.subr.bf16.mxu0 0
  %2254 = vmatpush1.bf16.msra.mxu0 0
  %2255 = vmatprep.subr.bf16.mxu0 0
  %2256 = vmatpush1.bf16.msra.mxu0 0
  %2257 = vmatprep.subr.bf16.mxu0 0
  %2258 = vmatpush1.bf16.msra.mxu0 0
  %2259 = vmatprep.subr.bf16.mxu0 0
  %2260 = vmatpush1.bf16.msra.mxu0 0
  %2261 = vmatprep.mubr.bf16.mxu0 0
  %2262 = vmatmul.mubr.bf16.gmra.mrb[0].mxu0 %v2227
  %v2263 = vpop.f32.mrb[0].mxu0
  %v2264 = vadd.f32 %v2221, %v2263
  %v2265 = vpop.f32.mrb[0].mxu0
  %v2266 = vpop.f32.mrb[0].mxu0
  %v2267 = vpop.f32.mrb[0].mxu0
  %2268 = vdwg.mxu0
  %2269 = vst.msk [vmem:[#allocation3 + $0x8] sm:$0xff] %vm70, %v2264
  %v2270 = vld [vmem:[#allocation3] sm:$0xff]
  %v2271 = vld [vmem:[#allocation3 + $0x8] sm:$0xff]
  %s2272 = scalar_lea.vmem %s7, 1
  %v2273 = vld [vmem:[%s2272] sm:$0x1]
  %v2275 = vlaneseq
  %v2276 = vshrl.u32 %v2275, 7
  %v2277 = vsub.s32 0, %v2276
  %v2278 = vrot.slane %v2273, %v2277
  %v2280 = vadd.f32 %v2270, %v2278
  %v2281 = vadd.f32 %v2271, %v2278
  %v2282 = vadd.f32 %v2280, %v1327
  %v2283 = vadd.f32 %v2281, %v1328
  %s2284 = scalar_lea.vmem %s8, 1
  %v2285 = vld [vmem:[%s2284] sm:$0x1]
  %s2286 = scalar_lea.vmem %s9, 1
  %v2287 = vld [vmem:[%s2286] sm:$0x1]
  %v2288 = vsel %vm70, %v2282, 0.0
  %2289 = vadd.xlane.f32.xlu0 %v2288
  %v2290 = vpop.xlane.xlu0 %2289
  %v2291 = vsel %vm70, %v2283, 0.0
  %2292 = vadd.xlane.f32.xlu0 %v2291
  %v2293 = vpop.xlane.xlu0 %2292
  %v2294 = vmul.f32 %v2290, %v77
  %v2295 = vmul.f32 %v2293, %v77
  %v2296 = vsub.f32 %v2282, %v2294
  %v2297 = vsub.f32 %v2283, %v2295
  %v2298 = vmul.f32 %v2296, %v2296
  %v2299 = vmul.f32 %v2297, %v2297
  %v2300 = vsel %vm70, %v2298, 0.0
  %2301 = vadd.xlane.f32.xlu0 %v2300
  %v2302 = vpop.xlane.xlu0 %2301
  %v2303 = vsel %vm70, %v2299, 0.0
  %2304 = vadd.xlane.f32.xlu0 %v2303
  %v2305 = vpop.xlane.xlu0 %2304
  %v2306 = vmul.f32 %v2302, %v77
  %v2307 = vmul.f32 %v2305, %v77
  %v2308 = vadd.f32 %v2306, 1e-12
  %v2309 = vadd.f32 %v2307, 1e-12
  %v2310 = vrsqrt.pop %v2308
  %v2311 = vrsqrt.pop %v2309
  %v2312 = vmul.f32 %v2296, %v2310
  %v2313 = vmul.f32 %v2297, %v2311
  %v2315 = vlaneseq
  %v2316 = vshrl.u32 %v2315, 7
  %v2317 = vsub.s32 0, %v2316
  %v2318 = vrot.slane %v2285, %v2317
  %v2320 = vmul.f32 %v2312, %v2318
  %v2321 = vmul.f32 %v2313, %v2318
  %v2323 = vlaneseq
  %v2324 = vshrl.u32 %v2323, 7
  %v2325 = vsub.s32 0, %v2324
  %v2326 = vrot.slane %v2287, %v2325
  %v2328 = vadd.f32 %v2320, %v2326
  %v2329 = vadd.f32 %v2321, %v2326
  %s2330 = scalar_lea.vmem %s10, 16
  %v2331 = vld [vmem:[%s2330] sm:$0xf]
  %v2332 = vld [vmem:[%s2330 + $0x4] sm:$0xf]
  %v2333 = vld [vmem:[%s2330 + $0x8] sm:$0xf]
  %v2334 = vld [vmem:[%s2330 + $0xc] sm:$0xf]
  %v2335 = vpack.c.bf16 %v2329, %v2328
  %s2336 = scalar_lea.vmem %s11, 1
  %v2337 = vld [vmem:[%s2336] sm:$0x1]
  %v2339 = vlaneseq
  %v2340 = vshrl.u32 %v2339, 7
  %v2341 = vsub.s32 0, %v2340
  %v2342 = vrot.slane %v2337, %v2341
  %v2348 = vunpack.c.l.b16 %v2331
  %v2349 = vunpack.c.l.b16 %v2332
  %v2350 = vunpack.c.l.b16 %v2333
  %v2351 = vunpack.c.l.b16 %v2334
  %v2352 = vpack.c.b16 %v2349, %v2348
  %v2353 = vpack.c.b16 %v2351, %v2350
  %v2357 = vsel %vm70, %v2335, 0
  %2359 = vmatprep.subr.bf16.mxu0 0
  %2360 = vmatpush1.bf16.msra.mxu0 %v2352
  %2361 = vmatprep.subr.bf16.mxu0 0
  %2362 = vmatpush1.bf16.msra.mxu0 %v2353
  %2363 = vmatprep.subr.bf16.mxu0 0
  %2364 = vmatpush1.bf16.msra.mxu0 0
  %2365 = vmatprep.subr.bf16.mxu0 0
  %2366 = vmatpush1.bf16.msra.mxu0 0
  %2367 = vmatprep.subr.bf16.mxu0 0
  %2368 = vmatpush1.bf16.msra.mxu0 0
  %2369 = vmatprep.subr.bf16.mxu0 0
  %2370 = vmatpush1.bf16.msra.mxu0 0
  %2371 = vmatprep.subr.bf16.mxu0 0
  %2372 = vmatpush1.bf16.msra.mxu0 0
  %2373 = vmatprep.subr.bf16.mxu0 0
  %2374 = vmatpush1.bf16.msra.mxu0 0
  %2375 = vmatprep.subr.bf16.mxu0 0
  %2376 = vmatpush1.bf16.msra.mxu0 0
  %2377 = vmatprep.subr.bf16.mxu0 0
  %2378 = vmatpush1.bf16.msra.mxu0 0
  %2379 = vmatprep.subr.bf16.mxu0 0
  %2380 = vmatpush1.bf16.msra.mxu0 0
  %2381 = vmatprep.subr.bf16.mxu0 0
  %2382 = vmatpush1.bf16.msra.mxu0 0
  %2383 = vmatprep.subr.bf16.mxu0 0
  %2384 = vmatpush1.bf16.msra.mxu0 0
  %2385 = vmatprep.subr.bf16.mxu0 0
  %2386 = vmatpush1.bf16.msra.mxu0 0
  %2387 = vmatprep.subr.bf16.mxu0 0
  %2388 = vmatpush1.bf16.msra.mxu0 0
  %2389 = vmatprep.subr.bf16.mxu0 0
  %2390 = vmatpush1.bf16.msra.mxu0 0
  %2391 = vmatprep.mubr.bf16.mxu0 0
  %2392 = vmatmul.mubr.bf16.gmra.mrb[0].mxu0 %v2357
  %v2393 = vpop.f32.mrb[0].mxu0
  %v2394 = vadd.f32 %v2342, %v2393
  %v2395 = vpop.f32.mrb[0].mxu0
  %v2396 = vpop.f32.mrb[0].mxu0
  %v2397 = vadd.f32 %v2342, %v2396
  %v2398 = vpop.f32.mrb[0].mxu0
  %2399 = vdwg.mxu0
  %v2400 = vmul.f32 %v2394, 0.5
  %v2401 = vmul.f32 %v2397, 0.5
  %v2402 = vmul.f32 %v2394, 0.044715
  %v2403 = vmul.f32 %v2397, 0.044715
  %v2404 = vmul.f32 %v2402, %v2394
  %v2405 = vmul.f32 %v2403, %v2397
  %v2406 = vmul.f32 %v2404, %v2394
  %v2407 = vmul.f32 %v2405, %v2397
  %v2408 = vadd.f32 %v2394, %v2406
  %v2409 = vadd.f32 %v2397, %v2407
  %v2410 = vmul.f32 %v2408, 0.7978846
  %v2411 = vmul.f32 %v2409, 0.7978846
  %v2412 = vtanh.pop %v2410
  %v2413 = vtanh.pop %v2411
  %v2414 = vadd.f32 %v2412, 1.0
  %v2415 = vadd.f32 %v2413, 1.0
  %v2416 = vmul.f32 %v2400, %v2414
  %v2417 = vmul.f32 %v2401, %v2415
  %s2418 = scalar_lea.vmem %s12, 32
  %v2419 = vld [vmem:[%s2418] sm:$0xf]
  %v2420 = vld [vmem:[%s2418 + $0x4] sm:$0xf]
  %v2421 = vld [vmem:[%s2418 + $0x8] sm:$0xf]
  %v2422 = vld [vmem:[%s2418 + $0xc] sm:$0xf]
  %v2423 = vld [vmem:[%s2418 + $0x10] sm:$0xf]
  %v2424 = vld [vmem:[%s2418 + $0x14] sm:$0xf]
  %v2425 = vld [vmem:[%s2418 + $0x18] sm:$0xf]
  %v2426 = vld [vmem:[%s2418 + $0x1c] sm:$0xf]
  %v2427 = vpack.c.bf16 %v2417, %v2416
  %s2428 = scalar_lea.vmem %s13, 1
  %v2429 = vld [vmem:[%s2428] sm:$0x1]
  %v2431 = vlaneseq
  %v2432 = vshrl.u32 %v2431, 7
  %v2433 = vsub.s32 0, %v2432
  %v2434 = vrot.slane %v2429, %v2433
  %v2444 = vunpack.c.l.b16 %v2419
  %v2445 = vunpack.c.l.b16 %v2420
  %v2446 = vunpack.c.l.b16 %v2421
  %v2447 = vunpack.c.l.b16 %v2422
  %v2448 = vunpack.c.l.b16 %v2423
  %v2449 = vunpack.c.l.b16 %v2424
  %v2450 = vunpack.c.l.b16 %v2425
  %v2451 = vunpack.c.l.b16 %v2426
  %v2452 = vpack.c.b16 %v2445, %v2444
  %v2453 = vpack.c.b16 %v2447, %v2446
  %v2454 = vpack.c.b16 %v2449, %v2448
  %v2455 = vpack.c.b16 %v2451, %v2450
  %v2461 = vsel %vm1238, %v2427, 0
  %2463 = vmatprep.subr.bf16.mxu0 0
  %2464 = vmatpush1.bf16.msra.mxu0 %v2452
  %2465 = vmatprep.subr.bf16.mxu0 0
  %2466 = vmatpush1.bf16.msra.mxu0 %v2453
  %2467 = vmatprep.subr.bf16.mxu0 0
  %2468 = vmatpush1.bf16.msra.mxu0 %v2454
  %2469 = vmatprep.subr.bf16.mxu0 0
  %2470 = vmatpush1.bf16.msra.mxu0 %v2455
  %2471 = vmatprep.subr.bf16.mxu0 0
  %2472 = vmatpush1.bf16.msra.mxu0 0
  %2473 = vmatprep.subr.bf16.mxu0 0
  %2474 = vmatpush1.bf16.msra.mxu0 0
  %2475 = vmatprep.subr.bf16.mxu0 0
  %2476 = vmatpush1.bf16.msra.mxu0 0
  %2477 = vmatprep.subr.bf16.mxu0 0
  %2478 = vmatpush1.bf16.msra.mxu0 0
  %2479 = vmatprep.subr.bf16.mxu0 0
  %2480 = vmatpush1.bf16.msra.mxu0 0
  %2481 = vmatprep.subr.bf16.mxu0 0
  %2482 = vmatpush1.bf16.msra.mxu0 0
  %2483 = vmatprep.subr.bf16.mxu0 0
  %2484 = vmatpush1.bf16.msra.mxu0 0
  %2485 = vmatprep.subr.bf16.mxu0 0
  %2486 = vmatpush1.bf16.msra.mxu0 0
  %2487 = vmatprep.subr.bf16.mxu0 0
  %2488 = vmatpush1.bf16.msra.mxu0 0
  %2489 = vmatprep.subr.bf16.mxu0 0
  %2490 = vmatpush1.bf16.msra.mxu0 0
  %2491 = vmatprep.subr.bf16.mxu0 0
  %2492 = vmatpush1.bf16.msra.mxu0 0
  %2493 = vmatprep.subr.bf16.mxu0 0
  %2494 = vmatpush1.bf16.msra.mxu0 0
  %2495 = vmatprep.mubr.bf16.mxu0 0
  %2496 = vmatmul.mubr.bf16.gmra.mrb[0].mxu0 %v2461
  %v2497 = vpop.f32.mrb[0].mxu0
  %v2498 = vadd.f32 %v2434, %v2497
  %v2499 = vpop.f32.mrb[0].mxu0
  %v2500 = vpop.f32.mrb[0].mxu0
  %v2501 = vadd.f32 %v2434, %v2500
  %v2502 = vpop.f32.mrb[0].mxu0
  %2503 = vdwg.mxu0
  %v2504 = vadd.f32 %v2498, %v2328
  %v2505 = vadd.f32 %v2501, %v2329
  %s2506 = scalar_lea.vmem %s14, 1
  %v2507 = vld [vmem:[%s2506] sm:$0x1]
  %s2508 = scalar_lea.vmem %s15, 1
  %v2509 = vld [vmem:[%s2508] sm:$0x1]
  %v2510 = vsel %vm70, %v2504, 0.0
  %2511 = vadd.xlane.f32.xlu0 %v2510
  %v2512 = vpop.xlane.xlu0 %2511
  %v2513 = vsel %vm70, %v2505, 0.0
  %2514 = vadd.xlane.f32.xlu0 %v2513
  %v2515 = vpop.xlane.xlu0 %2514
  %v2516 = vmul.f32 %v2512, %v77
  %v2517 = vmul.f32 %v2515, %v77
  %v2518 = vsub.f32 %v2504, %v2516
  %v2519 = vsub.f32 %v2505, %v2517
  %v2520 = vmul.f32 %v2518, %v2518
  %v2521 = vmul.f32 %v2519, %v2519
  %v2522 = vsel %vm70, %v2520, 0.0
  %2523 = vadd.xlane.f32.xlu0 %v2522
  %v2524 = vpop.xlane.xlu0 %2523
  %v2525 = vsel %vm70, %v2521, 0.0
  %2526 = vadd.xlane.f32.xlu0 %v2525
  %v2527 = vpop.xlane.xlu0 %2526
  %v2528 = vmul.f32 %v2524, %v77
  %v2529 = vmul.f32 %v2527, %v77
  %v2530 = vadd.f32 %v2528, 1e-12
  %v2531 = vadd.f32 %v2529, 1e-12
  %v2532 = vrsqrt.pop %v2530
  %v2533 = vrsqrt.pop %v2531
  %v2534 = vmul.f32 %v2518, %v2532
  %v2535 = vmul.f32 %v2519, %v2533
  %v2537 = vlaneseq
  %v2538 = vshrl.u32 %v2537, 7
  %v2539 = vsub.s32 0, %v2538
  %v2540 = vrot.slane %v2507, %v2539
  %v2542 = vmul.f32 %v2534, %v2540
  %v2543 = vmul.f32 %v2535, %v2540
  %v2545 = vlaneseq
  %v2546 = vshrl.u32 %v2545, 7
  %v2547 = vsub.s32 0, %v2546
  %v2548 = vrot.slane %v2509, %v2547
  %v2550 = vadd.f32 %v2542, %v2548
  %v2551 = vadd.f32 %v2543, %v2548
  %v2552 = vld [vmem:[%s16] sm:$0xf]
  %v2553 = vld [vmem:[%s16 + $0x4] sm:$0xf]
  %v2554 = vld [vmem:[%s16 + $0x8] sm:$0xf]
  %v2555 = vld [vmem:[%s16 + $0xc] sm:$0xf]
  %v2556 = vpack.c.bf16 %v2551, %v2550
  %v2557 = vld [vmem:[%s17] sm:$0x1]
  %v2559 = vlaneseq
  %v2560 = vshrl.u32 %v2559, 7
  %v2561 = vsub.s32 0, %v2560
  %v2562 = vrot.slane %v2557, %v2561
  %v2568 = vunpack.c.l.b16 %v2552
  %v2569 = vunpack.c.l.b16 %v2553
  %v2570 = vunpack.c.l.b16 %v2554
  %v2571 = vunpack.c.l.b16 %v2555
  %v2572 = vpack.c.b16 %v2569, %v2568
  %v2573 = vpack.c.b16 %v2571, %v2570
  %v2577 = vsel %vm70, %v2556, 0
  %2579 = vmatprep.subr.bf16.mxu0 0
  %2580 = vmatpush1.bf16.msra.mxu0 %v2572
  %2581 = vmatprep.subr.bf16.mxu0 0
  %2582 = vmatpush1.bf16.msra.mxu0 %v2573
  %2583 = vmatprep.subr.bf16.mxu0 0
  %2584 = vmatpush1.bf16.msra.mxu0 0
  %2585 = vmatprep.subr.bf16.mxu0 0
  %2586 = vmatpush1.bf16.msra.mxu0 0
  %2587 = vmatprep.subr.bf16.mxu0 0
  %2588 = vmatpush1.bf16.msra.mxu0 0
  %2589 = vmatprep.subr.bf16.mxu0 0
  %2590 = vmatpush1.bf16.msra.mxu0 0
  %2591 = vmatprep.subr.bf16.mxu0 0
  %2592 = vmatpush1.bf16.msra.mxu0 0
  %2593 = vmatprep.subr.bf16.mxu0 0
  %2594 = vmatpush1.bf16.msra.mxu0 0
  %2595 = vmatprep.subr.bf16.mxu0 0
  %2596 = vmatpush1.bf16.msra.mxu0 0
  %2597 = vmatprep.subr.bf16.mxu0 0
  %2598 = vmatpush1.bf16.msra.mxu0 0
  %2599 = vmatprep.subr.bf16.mxu0 0
  %2600 = vmatpush1.bf16.msra.mxu0 0
  %2601 = vmatprep.subr.bf16.mxu0 0
  %2602 = vmatpush1.bf16.msra.mxu0 0
  %2603 = vmatprep.subr.bf16.mxu0 0
  %2604 = vmatpush1.bf16.msra.mxu0 0
  %2605 = vmatprep.subr.bf16.mxu0 0
  %2606 = vmatpush1.bf16.msra.mxu0 0
  %2607 = vmatprep.subr.bf16.mxu0 0
  %2608 = vmatpush1.bf16.msra.mxu0 0
  %2609 = vmatprep.subr.bf16.mxu0 0
  %2610 = vmatpush1.bf16.msra.mxu0 0
  %2611 = vmatprep.mubr.bf16.mxu0 0
  %2612 = vmatmul.mubr.bf16.gmra.mrb[0].mxu0 %v2577
  %v2613 = vpop.f32.mrb[0].mxu0
  %v2614 = vadd.f32 %v2562, %v2613
  %v2615 = vpop.f32.mrb[0].mxu0
  %v2616 = vpop.f32.mrb[0].mxu0
  %v2617 = vadd.f32 %v2562, %v2616
  %v2618 = vpop.f32.mrb[0].mxu0
  %2619 = vdwg.mxu0
  %v2620 = vmax.f32 %v2614, 0.0
  %v2621 = vmax.f32 %v2617, 0.0
  %v2622 = vld [vmem:[%s18] sm:$0xf]
  %v2623 = vld [vmem:[%s18 + $0x4] sm:$0xf]
  %v2624 = vld [vmem:[%s18 + $0x8] sm:$0xf]
  %v2625 = vld [vmem:[%s18 + $0xc] sm:$0xf]
  %v2626 = vpack.c.bf16 %v2621, %v2620
  %v2627 = vld [vmem:[%s19] sm:$0x1]
  %v2629 = vlaneseq
  %v2630 = vshrl.u32 %v2629, 7
  %v2631 = vsub.s32 0, %v2630
  %v2632 = vrot.slane %v2627, %v2631
  %v2638 = vunpack.c.l.b16 %v2622
  %v2639 = vunpack.c.l.b16 %v2623
  %v2640 = vunpack.c.l.b16 %v2624
  %v2641 = vunpack.c.l.b16 %v2625
  %v2642 = vpack.c.b16 %v2639, %v2638
  %v2643 = vpack.c.b16 %v2641, %v2640
  %v2647 = vsel %vm70, %v2626, 0
  %2649 = vmatprep.subr.bf16.mxu0 0
  %2650 = vmatpush1.bf16.msra.mxu0 %v2642
  %2651 = vmatprep.subr.bf16.mxu0 0
  %2652 = vmatpush1.bf16.msra.mxu0 %v2643
  %2653 = vmatprep.subr.bf16.mxu0 0
  %2654 = vmatpush1.bf16.msra.mxu0 0
  %2655 = vmatprep.subr.bf16.mxu0 0
  %2656 = vmatpush1.bf16.msra.mxu0 0
  %2657 = vmatprep.subr.bf16.mxu0 0
  %2658 = vmatpush1.bf16.msra.mxu0 0
  %2659 = vmatprep.subr.bf16.mxu0 0
  %2660 = vmatpush1.bf16.msra.mxu0 0
  %2661 = vmatprep.subr.bf16.mxu0 0
  %2662 = vmatpush1.bf16.msra.mxu0 0
  %2663 = vmatprep.subr.bf16.mxu0 0
  %2664 = vmatpush1.bf16.msra.mxu0 0
  %2665 = vmatprep.subr.bf16.mxu0 0
  %2666 = vmatpush1.bf16.msra.mxu0 0
  %2667 = vmatprep.subr.bf16.mxu0 0
  %2668 = vmatpush1.bf16.msra.mxu0 0
  %2669 = vmatprep.subr.bf16.mxu0 0
  %2670 = vmatpush1.bf16.msra.mxu0 0
  %2671 = vmatprep.subr.bf16.mxu0 0
  %2672 = vmatpush1.bf16.msra.mxu0 0
  %2673 = vmatprep.subr.bf16.mxu0 0
  %2674 = vmatpush1.bf16.msra.mxu0 0
  %2675 = vmatprep.subr.bf16.mxu0 0
  %2676 = vmatpush1.bf16.msra.mxu0 0
  %2677 = vmatprep.subr.bf16.mxu0 0
  %2678 = vmatpush1.bf16.msra.mxu0 0
  %2679 = vmatprep.subr.bf16.mxu0 0
  %2680 = vmatpush1.bf16.msra.mxu0 0
  %2681 = vmatprep.mubr.bf16.mxu0 0
  %2682 = vmatmul.mubr.bf16.gmra.mrb[0].mxu0 %v2647
  %v2683 = vpop.f32.mrb[0].mxu0
  %v2684 = vadd.f32 %v2632, %v2683
  %v2685 = vpop.f32.mrb[0].mxu0
  %v2686 = vpop.f32.mrb[0].mxu0
  %v2687 = vadd.f32 %v2632, %v2686
  %v2688 = vpop.f32.mrb[0].mxu0
  %2689 = vdwg.mxu0
  %vm2690 = vcmask 15360
  %2691 = vst.msk [vmem:[%s20] sm:$0xff] %vm2690, %v2684
  %2692 = vst.msk [vmem:[%s20 + $0x8] sm:$0xff] %vm2690, %v2687
  // Predicated region
  $region82: #{imdb_forward.1} parent=0 // pred_check
    _
  $region83: #{imdb_forward.1} parent=0 // pred_check_branch
    %2694 = sbr.rel (0) target = $region85
  $region84: #{imdb_forward.1} parent=0 // pred_region
    _
  $region85: #{imdb_forward.1} parent=0 // pred_fallthru
    _
  // Predicated region
  $region86: #{imdb_forward.1} parent=0 // pred_check
    _
  $region87: #{imdb_forward.1} parent=0 // pred_check_branch
    %2696 = sbr.rel (0) target = $region89
  $region88: #{imdb_forward.1} parent=0 // pred_region
    _
  $region89: #{imdb_forward.1} parent=0 // pred_fallthru
    _

</llo_original>
